<compile_context>
chip_gen: v7x
topology: tpu7x:2x2x1
jax: 0.10.0
libtpu: 0.0.40
codegen_flags: <defaults>
</compile_context>

<pallas_src>
import functools

import jax
import jax.numpy as jnp
import numpy as np
from jax import lax
from jax.experimental import pallas as pl
from jax.experimental.pallas import tpu as pltpu

EPS = 1e-5
F32 = jnp.float32


def _ceil_to(x, m):
    return ((x + m - 1) // m) * m


def _vmem_capacity_bytes():
    """Physical VMEM of the local TPU generation (v5e/v6e: 128 MiB, v7x: 64 MiB/TC)."""
    try:
        return int(pltpu.get_tpu_info().vmem_capacity_bytes)
    except Exception:  # conservative fallback that is safe on every generation
        return 64 * 1024 * 1024


# --------------------------------------------------------------------------- #
# kernel helpers
# --------------------------------------------------------------------------- #
def _bn_relu(x, scale, shift):
    # per-channel affine (scale = gamma*rsqrt(var+eps), shift = beta - mean*scale) + ReLU
    return jnp.maximum(x.astype(F32) * scale + shift, 0.0)


def _accum_stats(s_ref, v, is_first):
    # one-pass BN statistics: per-channel sum / sum-of-squares, f32 resident accumulator.
    # TODO(synk): per-lane (C,128) partial accumulation would drop the per-step
    # cross-lane reduce and improve f32 summation accuracy at very large N*H*W.
    @pl.when(is_first)
    def _():
        s_ref[...] = jnp.zeros_like(s_ref)

    s_ref[0, :, :] += jnp.sum(v, axis=1, keepdims=True)
    s_ref[1, :, :] += jnp.sum(v * v, axis=1, keepdims=True)


def _deconv(yb, w2c_ref, colk, rowk, W):
    """3x3 stride-2 transposed conv as 4 accumulating MXU dots on shifted views.

    w2c_ref[j] is the (4*Cmid_p, Cmid_p) weight acting on the j-th shifted view
    [y, y_down, y_right, y_downright]; the output rows are the 4 output parities
    (0,0),(0,1),(1,0),(1,1). Shifts are lane rotations (XLU slot) + boundary
    masks — valid because every tile holds whole images (no halo needed).
    No concat: keeps the peak VMEM working set small (matters on v7x 64 MiB).
    """
    T = yb.shape[-1]
    y_r = pltpu.roll(yb, (T - 1) % T, axis=1) * colk                 # y[a, b+1]
    y_d = pltpu.roll(yb, (T - W) % T, axis=1) * rowk                 # y[a+1, b]
    y_dr = pltpu.roll(yb, (T - W - 1) % T, axis=1) * (colk * rowk)   # y[a+1, b+1]
    q = jnp.dot(w2c_ref[0], yb, preferred_element_type=F32)
    q += jnp.dot(w2c_ref[1], y_d, preferred_element_type=F32)
    q += jnp.dot(w2c_ref[2], y_r, preferred_element_type=F32)
    q += jnp.dot(w2c_ref[3], y_dr, preferred_element_type=F32)
    return q


# --------------------------------------------------------------------------- #
# kernels
# --------------------------------------------------------------------------- #
def conv1_stats_kernel(x_ref, w1_ref, y_ref, s1_ref, *, hw):
    """Pass A: in-kernel NCHW->channel-major relayout + 1x1 conv + BN1 stats.

    x_ref: (k, Cin, H*W) f32 whole-image block straight from the NCHW input.
    y_ref: (Cmid_p, k*H*W) channel-major tile (bf16 by default).
    Conv biases are dropped: exactly cancelled by the BN mean subtraction.
    """
    @pl.when(pl.program_id(1) == 0)
    def _():
        s1_ref[...] = jnp.zeros_like(s1_ref)

    k = x_ref.shape[0]
    w1 = w1_ref[...]

    def one_image(n, off):
        y = jnp.dot(w1, x_ref[n], preferred_element_type=F32)   # (Cmid_p, H*W) f32
        y_ref[:, pl.ds(off, hw)] = y.astype(y_ref.dtype)         # bf16 on store
        s1_ref[0, :, :] += jnp.sum(y, axis=1, keepdims=True)     # stats from f32 value
        s1_ref[1, :, :] += jnp.sum(y * y, axis=1, keepdims=True)

    if k <= 8:                              # short static trip count: full unroll
        for n in range(k):
            one_image(n, n * hw)
    else:                                   # many images per tile: in-kernel loop
        @pl.loop(0, k)
        def _(n):
            off = n * hw
            if hw % 128 == 0:
                off = pl.multiple_of(off, 128)
            one_image(n, off)


def deconv_stats_kernel(y_ref, sc1_ref, sh1_ref, colk_ref, rowk_ref, w2c_ref,
                        s2_ref, *, W):
    # Pass B: BN1 apply + ReLU, transposed-conv dots, BN2 stats ONLY (the 4x-wider
    # quadrants are not written back; pass C recomputes them — cheaper than the
    # 4*Cmid*NHW HBM round-trip).
    yb = _bn_relu(y_ref[...], sc1_ref[...], sh1_ref[...])
    q = _deconv(yb, w2c_ref, colk_ref[...], rowk_ref[...], W)
    _accum_stats(s2_ref, q, pl.program_id(1) == 0)


def conv3_stats_kernel(y_ref, sc1_ref, sh1_ref, colk_ref, rowk_ref, w2c_ref,
                       sc2_ref, sh2_ref, w3b_ref, z_ref, s3_ref, *, W):
    # Pass C: recompute deconv, BN2 apply + ReLU, block-diag conv3, BN3 stats.
    yb = _bn_relu(y_ref[...], sc1_ref[...], sh1_ref[...])
    q = _deconv(yb, w2c_ref, colk_ref[...], rowk_ref[...], W)
    qb = jnp.maximum(q * sc2_ref[...] + sh2_ref[...], 0.0)
    z = jnp.dot(w3b_ref[...], qb, preferred_element_type=F32)
    z_ref[...] = z.astype(z_ref.dtype)                            # bf16 on store
    _accum_stats(s3_ref, z, pl.program_id(1) == 0)                # stats from f32 value


# --------------------------------------------------------------------------- #
# wrapper
# --------------------------------------------------------------------------- #
def _choose_tile(n_img, hw, bytes_per_lane, budget, max_lanes=None):
    """Largest whole-image tile (T = k*hw lanes, k | N) under the VMEM budget.

    Falls back to the SMALLEST valid whole-image tile (never the whole array).
    # TODO(synk): sub-image tiling with halo handling if a single image exceeds budget.
    """
    cands = []
    for k in range(1, n_img + 1):
        if n_img % k:
            continue
        t = k * hw
        if t % 128 != 0 and k != n_img:
            continue                        # lane alignment (or the full flat axis)
        cands.append(t)
    cands.sort()
    best = cands[0]
    for t in cands:
        if t * bytes_per_lane <= budget and (max_lanes is None or t <= max_lanes):
            best = t
    return best


def _finalize_bn(s, count, gamma, beta, groups=1):
    # s: (n_split, 2, C, 128); every lane holds the same per-channel partial sum.
    ssum = jnp.sum(s[:, 0, :, 0], axis=0)
    ssq = jnp.sum(s[:, 1, :, 0], axis=0)
    if groups > 1:                          # quadrant-stacked channels share BN params
        ssum = ssum.reshape(groups, -1).sum(axis=0)
        ssq = ssq.reshape(groups, -1).sum(axis=0)
    mean = ssum / count
    var = jnp.maximum(ssq / count - mean * mean, 0.0)
    scale = gamma * lax.rsqrt(var + EPS)
    shift = beta - mean * scale
    return scale.reshape(-1, 1), shift.reshape(-1, 1)


@functools.partial(jax.jit, static_argnames=("inter_dtype", "max_tile_lanes"))
def decoder_block_pallas(x, p, *, inter_dtype=jnp.bfloat16, max_tile_lanes=None):
    """x: NCHW float32. Returns NCHW (N, n_filters, 2H, 2W) float32."""
    N, Cin, H, W = x.shape
    Cmid = p["w1"].shape[0]
    Cout = p["w3"].shape[0]
    HW = H * W
    S = N * HW

    # channels padded only to the 8-sublane multiple (NOT to the MXU width: the
    # whole pipeline is HBM-bound, wider channels would just multiply traffic).
    cmid_p, cout_p = _ceil_to(Cmid, 8), _ceil_to(Cout, 8)

    # ---- tile & VMEM budget (pass C is the binding pass) ---------------------------
    isz = jnp.dtype(inter_dtype).itemsize
    bytes_per_lane = int(1.25 * (            # 1.25x headroom for compiler temporaries
        2 * cmid_p * isz                     # y1 tile in  (double-buffered)
        + 2 * 4 * cout_p * isz               # z  tile out (double-buffered)
        + (12 * cmid_p + 4 * cout_p) * 4     # f32 temps: yb, 3 shifted views, q, qb, z
        + 16))                               # boundary masks
    vmem_cap = _vmem_capacity_bytes()
    tile_budget = (vmem_cap * 6) // 10       # pass-C working-set target (~60% of VMEM)
    vmem_limit = int(min((vmem_cap * 85) // 100, 100 * 1024 * 1024))

    T = _choose_tile(N, HW, bytes_per_lane, tile_budget, max_tile_lanes)
    k_img = T // HW                          # whole images per tile
    nt = S // T
    # leading "parallel" grid axis: shards the stats passes across v7x's 2 TensorCores,
    # ~free on single-core v5e/v6e (each core/slot owns its own stats accumulator).
    n_split = 2 if (nt % 2 == 0 and nt >= 2) else 1
    nt2 = nt // n_split

    # ---- parameters -----------------------------------------------------------------
    x3 = x.reshape(N, Cin, HW).astype(F32)   # free view; the relayout happens in pass A

    pad_rows = lambda a, r: jnp.pad(a.astype(F32), ((0, r - a.shape[0]), (0, 0)))
    pad1 = lambda v, n: jnp.pad(v.astype(F32), (0, n - v.shape[0]))

    w1_p = pad_rows(p["w1"], cmid_p)                                   # (Cmid_p, Cin)
    g1_p, be1_p = pad1(p["g1"], cmid_p), pad1(p["be1"], cmid_p)
    g2_p, be2_p = pad1(p["g2"], cmid_p), pad1(p["be2"], cmid_p)
    g3_p, be3_p = pad1(p["g3"], cout_p), pad1(p["be3"], cout_p)

    # ConvTranspose2d weight (Cin, Cout, kh, kw) -> per-tap (Cout_p, Cin_p) matrices.
    # w2cols[j] acts on the j-th shifted view [y, y_down, y_right, y_downright];
    # its 4 row blocks are the output parities (0,0),(0,1),(1,0),(1,1).
    w2t = jnp.transpose(p["w2"].astype(F32), (2, 3, 1, 0))
    w2t = jnp.pad(w2t, ((0, 0), (0, 0), (0, cmid_p - Cmid), (0, cmid_p - Cmid)))
    zb = jnp.zeros((cmid_p, cmid_p), F32)
    cols = [
        [w2t[1, 1], w2t[1, 2], w2t[2, 1], w2t[2, 2]],   # acts on y
        [zb,        zb,        w2t[0, 1], w2t[0, 2]],   # acts on y_down
        [zb,        w2t[1, 0], zb,        w2t[2, 0]],   # acts on y_right
        [zb,        zb,        zb,        w2t[0, 0]],   # acts on y_downright
    ]
    w2cols = jnp.stack([jnp.concatenate(c, axis=0) for c in cols])   # (4, 4*Cmid_p, Cmid_p)

    w3_p = jnp.pad(p["w3"].astype(F32), ((0, cout_p - Cout), (0, cmid_p - Cmid)))
    w3b = jnp.kron(jnp.eye(4, dtype=F32), w3_p)    # block-diag conv3 over the 4 parities

    # image-boundary masks for the shifted views (identical for every tile)
    idx = jnp.arange(T)
    colk = ((idx % W) < (W - 1)).astype(F32).reshape(1, T)
    rowk = (((idx // W) % H) < (H - 1)).astype(F32).reshape(1, T)

    # ---- specs ------------------------------------------------------------------------
    cp = pltpu.CompilerParams(dimension_semantics=("parallel", "arbitrary"),
                              vmem_limit_bytes=vmem_limit)

    def full_spec(shape):
        nd = len(shape)
        return pl.BlockSpec(shape, lambda c, i, _nd=nd: (0,) * _nd)

    def tiled_spec(rows):
        return pl.BlockSpec((rows, T), lambda c, i: (0, c * nt2 + i))

    def stats_spec(rows):
        # per-core-slot resident accumulator: same block across the "arbitrary" axis,
        # one slot per "parallel" index (summed in the XLA finalize).
        return pl.BlockSpec((None, 2, rows, 128), lambda c, i: (c, 0, 0, 0))

    x_spec = pl.BlockSpec((k_img, Cin, HW), lambda c, i: (c * nt2 + i, 0, 0))
    grid = (n_split, nt2)

    # ---- pass A: conv1 (+ in-kernel input relayout) + BN1 stats ------------------------
    y1, s1 = pl.pallas_call(
        functools.partial(conv1_stats_kernel, hw=HW),
        grid=grid,
        in_specs=[x_spec, full_spec(w1_p.shape)],
        out_specs=[tiled_spec(cmid_p), stats_spec(cmid_p)],
        out_shape=[jax.ShapeDtypeStruct((cmid_p, S), inter_dtype),
                   jax.ShapeDtypeStruct((n_split, 2, cmid_p, 128), F32)],
        compiler_params=cp,
    )(x3, w1_p)

    sc1, sh1 = _finalize_bn(s1, S, g1_p, be1_p)

    # ---- pass B: BN1 apply + deconv -> BN2 stats (stats only, no HBM writeback) --------
    s2 = pl.pallas_call(
        functools.partial(deconv_stats_kernel, W=W),
        grid=grid,
        in_specs=[tiled_spec(cmid_p), full_spec(sc1.shape), full_spec(sh1.shape),
                  full_spec(colk.shape), full_spec(rowk.shape), full_spec(w2cols.shape)],
        out_specs=stats_spec(4 * cmid_p),
        out_shape=jax.ShapeDtypeStruct((n_split, 2, 4 * cmid_p, 128), F32),
        compiler_params=cp,
    )(y1, sc1, sh1, colk, rowk, w2cols)

    sc2, sh2 = _finalize_bn(s2, 4 * S, g2_p, be2_p, groups=4)
    sc2q, sh2q = jnp.tile(sc2, (4, 1)), jnp.tile(sh2, (4, 1))

    # ---- pass C: deconv + BN2 apply + conv3 -> z (bf16) + BN3 stats --------------------
    z, s3 = pl.pallas_call(
        functools.partial(conv3_stats_kernel, W=W),
        grid=grid,
        in_specs=[tiled_spec(cmid_p), full_spec(sc1.shape), full_spec(sh1.shape),
                  full_spec(colk.shape), full_spec(rowk.shape), full_spec(w2cols.shape),
                  full_spec(sc2q.shape), full_spec(sh2q.shape), full_spec(w3b.shape)],
        out_specs=[tiled_spec(4 * cout_p), stats_spec(4 * cout_p)],
        out_shape=[jax.ShapeDtypeStruct((4 * cout_p, S), inter_dtype),
                   jax.ShapeDtypeStruct((n_split, 2, 4 * cout_p, 128), F32)],
        compiler_params=cp,
    )(y1, sc1, sh1, colk, rowk, w2cols, sc2q, sh2q, w3b)

    sc3, sh3 = _finalize_bn(s3, 4 * S, g3_p, be3_p, groups=4)

    # ---- BN3 apply + ReLU fused into the parity interleave (pass D eliminated) ---------
    zq = z.reshape(4, cout_p, N, H, W).astype(F32)
    o = jnp.maximum(zq * sc3.reshape(1, cout_p, 1, 1, 1)
                    + sh3.reshape(1, cout_p, 1, 1, 1), 0.0)[:, :Cout]
    o = o.reshape(2, 2, Cout, N, H, W)
    return jnp.transpose(o, (3, 2, 4, 0, 5, 1)).reshape(N, Cout, 2 * H, 2 * W)


# --------------------------------------------------------------------------- #
# pure-JAX reference (PyTorch semantics, training-mode BN, biases kept)
# --------------------------------------------------------------------------- #
def decoder_block_reference(x, p):
    def bn(v, g, b):
        mean = v.mean(axis=(0, 2, 3), keepdims=True)
        var = ((v - mean) ** 2).mean(axis=(0, 2, 3), keepdims=True)
        return (v - mean) * lax.rsqrt(var + EPS) * g.reshape(1, -1, 1, 1) \
            + b.reshape(1, -1, 1, 1)

    dn = ("NCHW", "OIHW", "NCHW")
    y = lax.conv_general_dilated(x, p["w1"][:, :, None, None], (1, 1), "VALID",
                                 dimension_numbers=dn) + p["b1"].reshape(1, -1, 1, 1)
    y = jax.nn.relu(bn(y, p["g1"], p["be1"]))

    # ConvTranspose2d(k=3, s=2, p=1, op=1) == lhs-dilated conv w/ swapped+flipped kernel
    rhs = jnp.flip(jnp.transpose(p["w2"], (1, 0, 2, 3)), axis=(2, 3))
    y = lax.conv_general_dilated(y, rhs, (1, 1), ((1, 2), (1, 2)),
                                 lhs_dilation=(2, 2),
                                 dimension_numbers=dn) + p["b2"].reshape(1, -1, 1, 1)
    y = jax.nn.relu(bn(y, p["g2"], p["be2"]))

    y = lax.conv_general_dilated(y, p["w3"][:, :, None, None], (1, 1), "VALID",
                                 dimension_numbers=dn) + p["b3"].reshape(1, -1, 1, 1)
    y = jax.nn.relu(bn(y, p["g3"], p["be3"]))
    return y


if __name__ == "__main__":
    in_channels, n_filters = 16, 8
    N, H, W = 2, 16, 16
    Cmid = in_channels // 4

    key = jax.random.PRNGKey(0)
    ks = jax.random.split(key, 14)
    norm = lambda k, shape, s=0.2: s * jax.random.normal(k, shape, dtype=jnp.float32)

    params = {
        "w1": norm(ks[0], (Cmid, in_channels)),
        "b1": norm(ks[1], (Cmid,), 0.1),
        "g1": 1.0 + norm(ks[2], (Cmid,), 0.1),
        "be1": norm(ks[3], (Cmid,), 0.1),
        "w2": norm(ks[4], (Cmid, Cmid, 3, 3)),   # ConvTranspose2d weight (in, out, kh, kw)
        "b2": norm(ks[5], (Cmid,), 0.1),
        "g2": 1.0 + norm(ks[6], (Cmid,), 0.1),
        "be2": norm(ks[7], (Cmid,), 0.1),
        "w3": norm(ks[8], (n_filters, Cmid)),
        "b3": norm(ks[9], (n_filters,), 0.1),
        "g3": 1.0 + norm(ks[10], (n_filters,), 0.1),
        "be3": norm(ks[11], (n_filters,), 0.1),
    }
    x = jax.random.normal(ks[12], (N, in_channels, H, W), dtype=jnp.float32)

    ref = decoder_block_reference(x, params)

    # Default path: bf16 HBM intermediates, single whole-batch tile (2 images/tile,
    # exercises the in-kernel multi-image relayout loop).  bf16 storage -> looser tol.
    out = jax.block_until_ready(decoder_block_pallas(x, params))
    assert out.shape == (N, n_filters, 2 * H, 2 * W), out.shape
    np.testing.assert_allclose(np.asarray(out), np.asarray(ref), rtol=3e-2, atol=3e-2)

    # Tiled path: max_tile_lanes=256 forces 2 grid tiles -> exercises the 2-way
    # TensorCore-split + resident-accumulator path at this small size.
    out2 = jax.block_until_ready(decoder_block_pallas(x, params, max_tile_lanes=256))
    np.testing.assert_allclose(np.asarray(out2), np.asarray(ref), rtol=3e-2, atol=3e-2)

    # f32-intermediate path at tight tolerance (verifies exact-path numerics).
    out3 = jax.block_until_ready(
        decoder_block_pallas(x, params, inter_dtype=jnp.float32, max_tile_lanes=256))
    np.testing.assert_allclose(np.asarray(out3), np.asarray(ref), rtol=2e-3, atol=2e-3)

    print("KERNEL_OK")
</pallas_src>

<mosaic_0001>
module attributes {stable_mosaic.version = 11 : i64} {
  func.func @conv1_stats_kernel(%arg0: i32, %arg1: i32, %arg2: memref<2x16x256xf32, #tpu.memory_space<vmem>>, %arg3: memref<8x16xf32, #tpu.memory_space<vmem>>, %arg4: memref<8x512xbf16, #tpu.memory_space<vmem>>, %arg5: memref<1x2x8x128xf32, #tpu.memory_space<vmem>>) attributes {dimension_semantics = [#tpu.dimension_semantics<parallel>, #tpu.dimension_semantics<arbitrary>], iteration_bounds = array<i64: 1, 1>, scalar_prefetch = 0 : i64, scratch_operands = 0 : i64, tpu.core_type = #tpu.core_type<tc>, window_params = [{transform_indices = @transform_0, window_bounds = array<i64: 2, 16, 256>}, {pipeline_mode = #tpu.pipeline_mode<synchronous>, transform_indices = @transform_1, window_bounds = array<i64: 8, 16>}, {transform_indices = @transform_2, window_bounds = array<i64: 8, 512>}, {transform_indices = @transform_3, window_bounds = array<i64: 1, 2, 8, 128>}]} {
    %c0_i32 = arith.constant 0 : i32
    %0 = arith.cmpi eq, %arg1, %c0_i32 : i32
    %1 = arith.extui %0 : i1 to i32
    %c0_i32_0 = arith.constant 0 : i32
    %2 = arith.cmpi ne, %1, %c0_i32_0 : i32
    scf.if %2 {
      %cst_47 = arith.constant 0.000000e+00 : f32
      %52 = vector.broadcast %cst_47 : f32 to vector<2x8x128xf32>
      %c0_48 = arith.constant 0 : index
      %c0_49 = arith.constant 0 : index
      %c0_50 = arith.constant 0 : index
      %c0_51 = arith.constant 0 : index
      %53 = vector.load %arg5[%c0_48, %c0_49, %c0_50, %c0_51] : memref<1x2x8x128xf32, #tpu.memory_space<vmem>>, vector<1x2x8x128xf32>
      %54 = vector.shape_cast %53 : vector<1x2x8x128xf32> to vector<2x8x128xf32>
      %55 = vector.shape_cast %52 : vector<2x8x128xf32> to vector<1x2x8x128xf32>
      tpu.vector_store %arg5[%c0_48, %c0_49, %c0_50, %c0_51], %55 {strides = array<i32>} : memref<1x2x8x128xf32, #tpu.memory_space<vmem>>, vector<1x2x8x128xf32>,
    } else {
    }
    %c0 = arith.constant 0 : index
    %c0_1 = arith.constant 0 : index
    %3 = vector.load %arg3[%c0, %c0_1] : memref<8x16xf32, #tpu.memory_space<vmem>>, vector<8x16xf32>
    %c0_2 = arith.constant 0 : index
    %c0_3 = arith.constant 0 : index
    %c0_4 = arith.constant 0 : index
    %4 = vector.load %arg2[%c0_2, %c0_3, %c0_4] : memref<2x16x256xf32, #tpu.memory_space<vmem>>, vector<1x16x256xf32>
    %5 = vector.shape_cast %4 : vector<1x16x256xf32> to vector<16x256xf32>
    %cst = arith.constant dense<0.000000e+00> : vector<8x256xf32>
    %6 = tpu.matmul %3, %5, %cst {dimension_numbers = #tpu.dot_dimension_numbers<[1], [0], [0], [1], [0, 0, 1, 1], [], []>} : vector<8x16xf32>, vector<16x256xf32>, vector<8x256xf32> -> vector<8x256xf32>
    %7 = arith.truncf %6 : vector<8x256xf32> to vector<8x256xbf16>
    %c0_5 = arith.constant 0 : index
    %c0_6 = arith.constant 0 : index
    %8 = vector.load %arg4[%c0_5, %c0_6] : memref<8x512xbf16, #tpu.memory_space<vmem>>, vector<8x256xbf16>
    tpu.vector_store %arg4[%c0_5, %c0_6], %7 {strides = array<i32>} : memref<8x512xbf16, #tpu.memory_space<vmem>>, vector<8x256xbf16>,
    %c0_7 = arith.constant 0 : index
    %c0_8 = arith.constant 0 : index
    %c0_9 = arith.constant 0 : index
    %c0_10 = arith.constant 0 : index
    %9 = vector.load %arg5[%c0_7, %c0_8, %c0_9, %c0_10] : memref<1x2x8x128xf32, #tpu.memory_space<vmem>>, vector<1x1x8x128xf32>
    %10 = vector.shape_cast %9 : vector<1x1x8x128xf32> to vector<8x128xf32>
    %cst_11 = arith.constant dense<0.000000e+00> : vector<8xf32>
    %11 = vector.multi_reduction <add>, %6, %cst_11 [1] : vector<8x256xf32> to vector<8xf32>
    %12 = vector.shape_cast %11 : vector<8xf32> to vector<8x1xf32>
    %13 = vector.broadcast %12 : vector<8x1xf32> to vector<8x128xf32>
    %14 = arith.addf %10, %13 : vector<8x128xf32>
    %c0_12 = arith.constant 0 : index
    %c0_13 = arith.constant 0 : index
    %c0_14 = arith.constant 0 : index
    %c0_15 = arith.constant 0 : index
    %15 = vector.load %arg5[%c0_12, %c0_13, %c0_14, %c0_15] : memref<1x2x8x128xf32, #tpu.memory_space<vmem>>, vector<1x1x8x128xf32>
    %16 = vector.shape_cast %15 : vector<1x1x8x128xf32> to vector<8x128xf32>
    %17 = vector.shape_cast %14 : vector<8x128xf32> to vector<1x1x8x128xf32>
    tpu.vector_store %arg5[%c0_12, %c0_13, %c0_14, %c0_15], %17 {strides = array<i32>} : memref<1x2x8x128xf32, #tpu.memory_space<vmem>>, vector<1x1x8x128xf32>,
    %c0_16 = arith.constant 0 : index
    %c1 = arith.constant 1 : index
    %c0_17 = arith.constant 0 : index
    %c0_18 = arith.constant 0 : index
    %18 = vector.load %arg5[%c0_16, %c1, %c0_17, %c0_18] : memref<1x2x8x128xf32, #tpu.memory_space<vmem>>, vector<1x1x8x128xf32>
    %19 = vector.shape_cast %18 : vector<1x1x8x128xf32> to vector<8x128xf32>
    %20 = arith.mulf %6, %6 : vector<8x256xf32>
    %cst_19 = arith.constant dense<0.000000e+00> : vector<8xf32>
    %21 = vector.multi_reduction <add>, %20, %cst_19 [1] : vector<8x256xf32> to vector<8xf32>
    %22 = vector.shape_cast %21 : vector<8xf32> to vector<8x1xf32>
    %23 = vector.broadcast %22 : vector<8x1xf32> to vector<8x128xf32>
    %24 = arith.addf %19, %23 : vector<8x128xf32>
    %c0_20 = arith.constant 0 : index
    %c1_21 = arith.constant 1 : index
    %c0_22 = arith.constant 0 : index
    %c0_23 = arith.constant 0 : index
    %25 = vector.load %arg5[%c0_20, %c1_21, %c0_22, %c0_23] : memref<1x2x8x128xf32, #tpu.memory_space<vmem>>, vector<1x1x8x128xf32>
    %26 = vector.shape_cast %25 : vector<1x1x8x128xf32> to vector<8x128xf32>
    %27 = vector.shape_cast %24 : vector<8x128xf32> to vector<1x1x8x128xf32>
    tpu.vector_store %arg5[%c0_20, %c1_21, %c0_22, %c0_23], %27 {strides = array<i32>} : memref<1x2x8x128xf32, #tpu.memory_space<vmem>>, vector<1x1x8x128xf32>,
    %c1_24 = arith.constant 1 : index
    %c0_25 = arith.constant 0 : index
    %c0_26 = arith.constant 0 : index
    %28 = vector.load %arg2[%c1_24, %c0_25, %c0_26] : memref<2x16x256xf32, #tpu.memory_space<vmem>>, vector<1x16x256xf32>
    %29 = vector.shape_cast %28 : vector<1x16x256xf32> to vector<16x256xf32>
    %cst_27 = arith.constant dense<0.000000e+00> : vector<8x256xf32>
    %30 = tpu.matmul %3, %29, %cst_27 {dimension_numbers = #tpu.dot_dimension_numbers<[1], [0], [0], [1], [0, 0, 1, 1], [], []>} : vector<8x16xf32>, vector<16x256xf32>, vector<8x256xf32> -> vector<8x256xf32>
    %31 = arith.truncf %30 : vector<8x256xf32> to vector<8x256xbf16>
    %c0_28 = arith.constant 0 : index
    %c256 = arith.constant 256 : index
    %32 = vector.load %arg4[%c0_28, %c256] : memref<8x512xbf16, #tpu.memory_space<vmem>>, vector<8x256xbf16>
    tpu.vector_store %arg4[%c0_28, %c256], %31 {strides = array<i32>} : memref<8x512xbf16, #tpu.memory_space<vmem>>, vector<8x256xbf16>,
    %c0_29 = arith.constant 0 : index
    %c0_30 = arith.constant 0 : index
    %c0_31 = arith.constant 0 : index
    %c0_32 = arith.constant 0 : index
    %33 = vector.load %arg5[%c0_29, %c0_30, %c0_31, %c0_32] : memref<1x2x8x128xf32, #tpu.memory_space<vmem>>, vector<1x1x8x128xf32>
    %34 = vector.shape_cast %33 : vector<1x1x8x128xf32> to vector<8x128xf32>
    %cst_33 = arith.constant dense<0.000000e+00> : vector<8xf32>
    %35 = vector.multi_reduction <add>, %30, %cst_33 [1] : vector<8x256xf32> to vector<8xf32>
    %36 = vector.shape_cast %35 : vector<8xf32> to vector<8x1xf32>
    %37 = vector.broadcast %36 : vector<8x1xf32> to vector<8x128xf32>
    %38 = arith.addf %34, %37 : vector<8x128xf32>
    %c0_34 = arith.constant 0 : index
    %c0_35 = arith.constant 0 : index
    %c0_36 = arith.constant 0 : index
    %c0_37 = arith.constant 0 : index
    %39 = vector.load %arg5[%c0_34, %c0_35, %c0_36, %c0_37] : memref<1x2x8x128xf32, #tpu.memory_space<vmem>>, vector<1x1x8x128xf32>
    %40 = vector.shape_cast %39 : vector<1x1x8x128xf32> to vector<8x128xf32>
    %41 = vector.shape_cast %38 : vector<8x128xf32> to vector<1x1x8x128xf32>
    tpu.vector_store %arg5[%c0_34, %c0_35, %c0_36, %c0_37], %41 {strides = array<i32>} : memref<1x2x8x128xf32, #tpu.memory_space<vmem>>, vector<1x1x8x128xf32>,
    %c0_38 = arith.constant 0 : index
    %c1_39 = arith.constant 1 : index
    %c0_40 = arith.constant 0 : index
    %c0_41 = arith.constant 0 : index
    %42 = vector.load %arg5[%c0_38, %c1_39, %c0_40, %c0_41] : memref<1x2x8x128xf32, #tpu.memory_space<vmem>>, vector<1x1x8x128xf32>
    %43 = vector.shape_cast %42 : vector<1x1x8x128xf32> to vector<8x128xf32>
    %44 = arith.mulf %30, %30 : vector<8x256xf32>
    %cst_42 = arith.constant dense<0.000000e+00> : vector<8xf32>
    %45 = vector.multi_reduction <add>, %44, %cst_42 [1] : vector<8x256xf32> to vector<8xf32>
    %46 = vector.shape_cast %45 : vector<8xf32> to vector<8x1xf32>
    %47 = vector.broadcast %46 : vector<8x1xf32> to vector<8x128xf32>
    %48 = arith.addf %43, %47 : vector<8x128xf32>
    %c0_43 = arith.constant 0 : index
    %c1_44 = arith.constant 1 : index
    %c0_45 = arith.constant 0 : index
    %c0_46 = arith.constant 0 : index
    %49 = vector.load %arg5[%c0_43, %c1_44, %c0_45, %c0_46] : memref<1x2x8x128xf32, #tpu.memory_space<vmem>>, vector<1x1x8x128xf32>
    %50 = vector.shape_cast %49 : vector<1x1x8x128xf32> to vector<8x128xf32>
    %51 = vector.shape_cast %48 : vector<8x128xf32> to vector<1x1x8x128xf32>
    tpu.vector_store %arg5[%c0_43, %c1_44, %c0_45, %c0_46], %51 {strides = array<i32>} : memref<1x2x8x128xf32, #tpu.memory_space<vmem>>, vector<1x1x8x128xf32>,
    return
  }
  func.func @transform_0(%arg0: i32, %arg1: i32) -> (i32, i32, i32) {
    %c1_i32 = arith.constant 1 : i32
    %0 = arith.muli %arg0, %c1_i32 : i32
    %1 = arith.addi %0, %arg1 : i32
    %c0_i32 = arith.constant 0 : i32
    %c0_i32_0 = arith.constant 0 : i32
    %c0_i32_1 = arith.constant 0 : i32
    return %1, %c0_i32, %c0_i32_0 : i32, i32, i32
  }
  func.func @transform_1(%arg0: i32, %arg1: i32) -> (i32, i32) {
    %c0_i32 = arith.constant 0 : i32
    %c0_i32_0 = arith.constant 0 : i32
    %c0_i32_1 = arith.constant 0 : i32
    return %c0_i32, %c0_i32_0 : i32, i32
  }
  func.func @transform_2(%arg0: i32, %arg1: i32) -> (i32, i32) {
    %c1_i32 = arith.constant 1 : i32
    %0 = arith.muli %arg0, %c1_i32 : i32
    %1 = arith.addi %0, %arg1 : i32
    %c0_i32 = arith.constant 0 : i32
    %c0_i32_0 = arith.constant 0 : i32
    return %c0_i32, %1 : i32, i32
  }
  func.func @transform_3(%arg0: i32, %arg1: i32) -> (i32, i32, i32, i32) {
    %c0_i32 = arith.constant 0 : i32
    %c0_i32_0 = arith.constant 0 : i32
    %c0_i32_1 = arith.constant 0 : i32
    %c0_i32_2 = arith.constant 0 : i32
    return %arg0, %c0_i32, %c0_i32_0, %c0_i32_1 : i32, i32, i32, i32
  }
}

module attributes {stable_mosaic.version = 11 : i64} {
  func.func @deconv_stats_kernel(%arg0: i32, %arg1: i32, %arg2: memref<8x512xbf16, #tpu.memory_space<vmem>>, %arg3: memref<8x1xf32, #tpu.memory_space<vmem>>, %arg4: memref<8x1xf32, #tpu.memory_space<vmem>>, %arg5: memref<1x512xf32, #tpu.memory_space<vmem>>, %arg6: memref<1x512xf32, #tpu.memory_space<vmem>>, %arg7: memref<4x32x8xf32, #tpu.memory_space<vmem>>, %arg8: memref<1x2x32x128xf32, #tpu.memory_space<vmem>>) attributes {dimension_semantics = [#tpu.dimension_semantics<parallel>, #tpu.dimension_semantics<arbitrary>], iteration_bounds = array<i64: 1, 1>, scalar_prefetch = 0 : i64, scratch_operands = 0 : i64, tpu.core_type = #tpu.core_type<tc>, window_params = [{transform_indices = @transform_0, window_bounds = array<i64: 8, 512>}, {pipeline_mode = #tpu.pipeline_mode<synchronous>, transform_indices = @transform_1, window_bounds = array<i64: 8, 1>}, {pipeline_mode = #tpu.pipeline_mode<synchronous>, transform_indices = @transform_2, window_bounds = array<i64: 8, 1>}, {pipeline_mode = #tpu.pipeline_mode<synchronous>, transform_indices = @transform_3, window_bounds = array<i64: 1, 512>}, {pipeline_mode = #tpu.pipeline_mode<synchronous>, transform_indices = @transform_4, window_bounds = array<i64: 1, 512>}, {pipeline_mode = #tpu.pipeline_mode<synchronous>, transform_indices = @transform_5, window_bounds = array<i64: 4, 32, 8>}, {transform_indices = @transform_6, window_bounds = array<i64: 1, 2, 32, 128>}]} {
    %c0 = arith.constant 0 : index
    %c0_0 = arith.constant 0 : index
    %0 = vector.load %arg2[%c0, %c0_0] : memref<8x512xbf16, #tpu.memory_space<vmem>>, vector<8x512xbf16>
    %c0_1 = arith.constant 0 : index
    %c0_2 = arith.constant 0 : index
    %1 = vector.load %arg3[%c0_1, %c0_2] : memref<8x1xf32, #tpu.memory_space<vmem>>, vector<8x1xf32>
    %c0_3 = arith.constant 0 : index
    %c0_4 = arith.constant 0 : index
    %2 = vector.load %arg4[%c0_3, %c0_4] : memref<8x1xf32, #tpu.memory_space<vmem>>, vector<8x1xf32>
    %3 = arith.extf %0 : vector<8x512xbf16> to vector<8x512xf32>
    %4 = vector.broadcast %1 : vector<8x1xf32> to vector<8x512xf32>
    %5 = arith.mulf %3, %4 : vector<8x512xf32>
    %6 = vector.broadcast %2 : vector<8x1xf32> to vector<8x512xf32>
    %7 = arith.addf %5, %6 : vector<8x512xf32>
    %cst = arith.constant 0.000000e+00 : f32
    %8 = vector.broadcast %cst : f32 to vector<8x512xf32>
    %9 = arith.maximumf %7, %8 : vector<8x512xf32>
    %c0_5 = arith.constant 0 : index
    %c0_6 = arith.constant 0 : index
    %10 = vector.load %arg5[%c0_5, %c0_6] : memref<1x512xf32, #tpu.memory_space<vmem>>, vector<1x512xf32>
    %c0_7 = arith.constant 0 : index
    %c0_8 = arith.constant 0 : index
    %11 = vector.load %arg6[%c0_7, %c0_8] : memref<1x512xf32, #tpu.memory_space<vmem>>, vector<1x512xf32>
    %c511_i32 = arith.constant 511 : i32
    %12 = tpu.dynamic_rotate %9 by %c511_i32 dim 1 : vector<8x512xf32>, i32 -> vector<8x512xf32>
    %13 = vector.broadcast %10 : vector<1x512xf32> to vector<8x512xf32>
    %14 = arith.mulf %12, %13 : vector<8x512xf32>
    %c496_i32 = arith.constant 496 : i32
    %15 = tpu.dynamic_rotate %9 by %c496_i32 dim 1 : vector<8x512xf32>, i32 -> vector<8x512xf32>
    %16 = vector.broadcast %11 : vector<1x512xf32> to vector<8x512xf32>
    %17 = arith.mulf %15, %16 : vector<8x512xf32>
    %c495_i32 = arith.constant 495 : i32
    %18 = tpu.dynamic_rotate %9 by %c495_i32 dim 1 : vector<8x512xf32>, i32 -> vector<8x512xf32>
    %19 = arith.mulf %10, %11 : vector<1x512xf32>
    %20 = vector.broadcast %19 : vector<1x512xf32> to vector<8x512xf32>
    %21 = arith.mulf %18, %20 : vector<8x512xf32>
    %c0_9 = arith.constant 0 : index
    %c0_10 = arith.constant 0 : index
    %c0_11 = arith.constant 0 : index
    %22 = vector.load %arg7[%c0_9, %c0_10, %c0_11] : memref<4x32x8xf32, #tpu.memory_space<vmem>>, vector<1x32x8xf32>
    %23 = vector.shape_cast %22 : vector<1x32x8xf32> to vector<32x8xf32>
    %cst_12 = arith.constant dense<0.000000e+00> : vector<32x512xf32>
    %24 = tpu.matmul %23, %9, %cst_12 {dimension_numbers = #tpu.dot_dimension_numbers<[1], [0], [0], [1], [0, 0, 1, 1], [], []>} : vector<32x8xf32>, vector<8x512xf32>, vector<32x512xf32> -> vector<32x512xf32>
    %c1 = arith.constant 1 : index
    %c0_13 = arith.constant 0 : index
    %c0_14 = arith.constant 0 : index
    %25 = vector.load %arg7[%c1, %c0_13, %c0_14] : memref<4x32x8xf32, #tpu.memory_space<vmem>>, vector<1x32x8xf32>
    %26 = vector.shape_cast %25 : vector<1x32x8xf32> to vector<32x8xf32>
    %cst_15 = arith.constant dense<0.000000e+00> : vector<32x512xf32>
    %27 = tpu.matmul %26, %17, %cst_15 {dimension_numbers = #tpu.dot_dimension_numbers<[1], [0], [0], [1], [0, 0, 1, 1], [], []>} : vector<32x8xf32>, vector<8x512xf32>, vector<32x512xf32> -> vector<32x512xf32>
    %28 = arith.addf %24, %27 : vector<32x512xf32>
    %c2 = arith.constant 2 : index
    %c0_16 = arith.constant 0 : index
    %c0_17 = arith.constant 0 : index
    %29 = vector.load %arg7[%c2, %c0_16, %c0_17] : memref<4x32x8xf32, #tpu.memory_space<vmem>>, vector<1x32x8xf32>
    %30 = vector.shape_cast %29 : vector<1x32x8xf32> to vector<32x8xf32>
    %cst_18 = arith.constant dense<0.000000e+00> : vector<32x512xf32>
    %31 = tpu.matmul %30, %14, %cst_18 {dimension_numbers = #tpu.dot_dimension_numbers<[1], [0], [0], [1], [0, 0, 1, 1], [], []>} : vector<32x8xf32>, vector<8x512xf32>, vector<32x512xf32> -> vector<32x512xf32>
    %32 = arith.addf %28, %31 : vector<32x512xf32>
    %c3 = arith.constant 3 : index
    %c0_19 = arith.constant 0 : index
    %c0_20 = arith.constant 0 : index
    %33 = vector.load %arg7[%c3, %c0_19, %c0_20] : memref<4x32x8xf32, #tpu.memory_space<vmem>>, vector<1x32x8xf32>
    %34 = vector.shape_cast %33 : vector<1x32x8xf32> to vector<32x8xf32>
    %cst_21 = arith.constant dense<0.000000e+00> : vector<32x512xf32>
    %35 = tpu.matmul %34, %21, %cst_21 {dimension_numbers = #tpu.dot_dimension_numbers<[1], [0], [0], [1], [0, 0, 1, 1], [], []>} : vector<32x8xf32>, vector<8x512xf32>, vector<32x512xf32> -> vector<32x512xf32>
    %36 = arith.addf %32, %35 : vector<32x512xf32>
    %c0_i32 = arith.constant 0 : i32
    %37 = arith.cmpi eq, %arg1, %c0_i32 : i32
    %38 = arith.extui %37 : i1 to i32
    %c0_i32_22 = arith.constant 0 : i32
    %39 = arith.cmpi ne, %38, %c0_i32_22 : i32
    scf.if %39 {
      %cst_41 = arith.constant 0.000000e+00 : f32
      %59 = vector.broadcast %cst_41 : f32 to vector<2x32x128xf32>
      %c0_42 = arith.constant 0 : index
      %c0_43 = arith.constant 0 : index
      %c0_44 = arith.constant 0 : index
      %c0_45 = arith.constant 0 : index
      %60 = vector.load %arg8[%c0_42, %c0_43, %c0_44, %c0_45] : memref<1x2x32x128xf32, #tpu.memory_space<vmem>>, vector<1x2x32x128xf32>
      %61 = vector.shape_cast %60 : vector<1x2x32x128xf32> to vector<2x32x128xf32>
      %62 = vector.shape_cast %59 : vector<2x32x128xf32> to vector<1x2x32x128xf32>
      tpu.vector_store %arg8[%c0_42, %c0_43, %c0_44, %c0_45], %62 {strides = array<i32>} : memref<1x2x32x128xf32, #tpu.memory_space<vmem>>, vector<1x2x32x128xf32>,
    } else {
    }
    %c0_23 = arith.constant 0 : index
    %c0_24 = arith.constant 0 : index
    %c0_25 = arith.constant 0 : index
    %c0_26 = arith.constant 0 : index
    %40 = vector.load %arg8[%c0_23, %c0_24, %c0_25, %c0_26] : memref<1x2x32x128xf32, #tpu.memory_space<vmem>>, vector<1x1x32x128xf32>
    %41 = vector.shape_cast %40 : vector<1x1x32x128xf32> to vector<32x128xf32>
    %cst_27 = arith.constant dense<0.000000e+00> : vector<32xf32>
    %42 = vector.multi_reduction <add>, %36, %cst_27 [1] : vector<32x512xf32> to vector<32xf32>
    %43 = vector.shape_cast %42 : vector<32xf32> to vector<32x1xf32>
    %44 = vector.broadcast %43 : vector<32x1xf32> to vector<32x128xf32>
    %45 = arith.addf %41, %44 : vector<32x128xf32>
    %c0_28 = arith.constant 0 : index
    %c0_29 = arith.constant 0 : index
    %c0_30 = arith.constant 0 : index
    %c0_31 = arith.constant 0 : index
    %46 = vector.load %arg8[%c0_28, %c0_29, %c0_30, %c0_31] : memref<1x2x32x128xf32, #tpu.memory_space<vmem>>, vector<1x1x32x128xf32>
    %47 = vector.shape_cast %46 : vector<1x1x32x128xf32> to vector<32x128xf32>
    %48 = vector.shape_cast %45 : vector<32x128xf32> to vector<1x1x32x128xf32>
    tpu.vector_store %arg8[%c0_28, %c0_29, %c0_30, %c0_31], %48 {strides = array<i32>} : memref<1x2x32x128xf32, #tpu.memory_space<vmem>>, vector<1x1x32x128xf32>,
    %c0_32 = arith.constant 0 : index
    %c1_33 = arith.constant 1 : index
    %c0_34 = arith.constant 0 : index
    %c0_35 = arith.constant 0 : index
    %49 = vector.load %arg8[%c0_32, %c1_33, %c0_34, %c0_35] : memref<1x2x32x128xf32, #tpu.memory_space<vmem>>, vector<1x1x32x128xf32>
    %50 = vector.shape_cast %49 : vector<1x1x32x128xf32> to vector<32x128xf32>
    %51 = arith.mulf %36, %36 : vector<32x512xf32>
    %cst_36 = arith.constant dense<0.000000e+00> : vector<32xf32>
    %52 = vector.multi_reduction <add>, %51, %cst_36 [1] : vector<32x512xf32> to vector<32xf32>
    %53 = vector.shape_cast %52 : vector<32xf32> to vector<32x1xf32>
    %54 = vector.broadcast %53 : vector<32x1xf32> to vector<32x128xf32>
    %55 = arith.addf %50, %54 : vector<32x128xf32>
    %c0_37 = arith.constant 0 : index
    %c1_38 = arith.constant 1 : index
    %c0_39 = arith.constant 0 : index
    %c0_40 = arith.constant 0 : index
    %56 = vector.load %arg8[%c0_37, %c1_38, %c0_39, %c0_40] : memref<1x2x32x128xf32, #tpu.memory_space<vmem>>, vector<1x1x32x128xf32>
    %57 = vector.shape_cast %56 : vector<1x1x32x128xf32> to vector<32x128xf32>
    %58 = vector.shape_cast %55 : vector<32x128xf32> to vector<1x1x32x128xf32>
    tpu.vector_store %arg8[%c0_37, %c1_38, %c0_39, %c0_40], %58 {strides = array<i32>} : memref<1x2x32x128xf32, #tpu.memory_space<vmem>>, vector<1x1x32x128xf32>,
    return
  }
  func.func @transform_0(%arg0: i32, %arg1: i32) -> (i32, i32) {
    %c1_i32 = arith.constant 1 : i32
    %0 = arith.muli %arg0, %c1_i32 : i32
    %1 = arith.addi %0, %arg1 : i32
    %c0_i32 = arith.constant 0 : i32
    %c0_i32_0 = arith.constant 0 : i32
    return %c0_i32, %1 : i32, i32
  }
  func.func @transform_1(%arg0: i32, %arg1: i32) -> (i32, i32) {
    %c0_i32 = arith.constant 0 : i32
    %c0_i32_0 = arith.constant 0 : i32
    %c0_i32_1 = arith.constant 0 : i32
    return %c0_i32, %c0_i32_0 : i32, i32
  }
  func.func @transform_2(%arg0: i32, %arg1: i32) -> (i32, i32) {
    %c0_i32 = arith.constant 0 : i32
    %c0_i32_0 = arith.constant 0 : i32
    %c0_i32_1 = arith.constant 0 : i32
    return %c0_i32, %c0_i32_0 : i32, i32
  }
  func.func @transform_3(%arg0: i32, %arg1: i32) -> (i32, i32) {
    %c0_i32 = arith.constant 0 : i32
    %c0_i32_0 = arith.constant 0 : i32
    %c0_i32_1 = arith.constant 0 : i32
    return %c0_i32, %c0_i32_0 : i32, i32
  }
  func.func @transform_4(%arg0: i32, %arg1: i32) -> (i32, i32) {
    %c0_i32 = arith.constant 0 : i32
    %c0_i32_0 = arith.constant 0 : i32
    %c0_i32_1 = arith.constant 0 : i32
    return %c0_i32, %c0_i32_0 : i32, i32
  }
  func.func @transform_5(%arg0: i32, %arg1: i32) -> (i32, i32, i32) {
    %c0_i32 = arith.constant 0 : i32
    %c0_i32_0 = arith.constant 0 : i32
    %c0_i32_1 = arith.constant 0 : i32
    %c0_i32_2 = arith.constant 0 : i32
    return %c0_i32, %c0_i32_0, %c0_i32_1 : i32, i32, i32
  }
  func.func @transform_6(%arg0: i32, %arg1: i32) -> (i32, i32, i32, i32) {
    %c0_i32 = arith.constant 0 : i32
    %c0_i32_0 = arith.constant 0 : i32
    %c0_i32_1 = arith.constant 0 : i32
    %c0_i32_2 = arith.constant 0 : i32
    return %arg0, %c0_i32, %c0_i32_0, %c0_i32_1 : i32, i32, i32, i32
  }
}

module attributes {stable_mosaic.version = 11 : i64} {
  func.func @conv3_stats_kernel(%arg0: i32, %arg1: i32, %arg2: memref<8x512xbf16, #tpu.memory_space<vmem>>, %arg3: memref<8x1xf32, #tpu.memory_space<vmem>>, %arg4: memref<8x1xf32, #tpu.memory_space<vmem>>, %arg5: memref<1x512xf32, #tpu.memory_space<vmem>>, %arg6: memref<1x512xf32, #tpu.memory_space<vmem>>, %arg7: memref<4x32x8xf32, #tpu.memory_space<vmem>>, %arg8: memref<32x1xf32, #tpu.memory_space<vmem>>, %arg9: memref<32x1xf32, #tpu.memory_space<vmem>>, %arg10: memref<32x32xf32, #tpu.memory_space<vmem>>, %arg11: memref<32x512xbf16, #tpu.memory_space<vmem>>, %arg12: memref<1x2x32x128xf32, #tpu.memory_space<vmem>>) attributes {dimension_semantics = [#tpu.dimension_semantics<parallel>, #tpu.dimension_semantics<arbitrary>], iteration_bounds = array<i64: 1, 1>, scalar_prefetch = 0 : i64, scratch_operands = 0 : i64, tpu.core_type = #tpu.core_type<tc>, window_params = [{transform_indices = @transform_0, window_bounds = array<i64: 8, 512>}, {pipeline_mode = #tpu.pipeline_mode<synchronous>, transform_indices = @transform_1, window_bounds = array<i64: 8, 1>}, {pipeline_mode = #tpu.pipeline_mode<synchronous>, transform_indices = @transform_2, window_bounds = array<i64: 8, 1>}, {pipeline_mode = #tpu.pipeline_mode<synchronous>, transform_indices = @transform_3, window_bounds = array<i64: 1, 512>}, {pipeline_mode = #tpu.pipeline_mode<synchronous>, transform_indices = @transform_4, window_bounds = array<i64: 1, 512>}, {pipeline_mode = #tpu.pipeline_mode<synchronous>, transform_indices = @transform_5, window_bounds = array<i64: 4, 32, 8>}, {pipeline_mode = #tpu.pipeline_mode<synchronous>, transform_indices = @transform_6, window_bounds = array<i64: 32, 1>}, {pipeline_mode = #tpu.pipeline_mode<synchronous>, transform_indices = @transform_7, window_bounds = array<i64: 32, 1>}, {pipeline_mode = #tpu.pipeline_mode<synchronous>, transform_indices = @transform_8, window_bounds = array<i64: 32, 32>}, {transform_indices = @transform_9, window_bounds = array<i64: 32, 512>}, {transform_indices = @transform_10, window_bounds = array<i64: 1, 2, 32, 128>}]} {
    %c0 = arith.constant 0 : index
    %c0_0 = arith.constant 0 : index
    %0 = vector.load %arg2[%c0, %c0_0] : memref<8x512xbf16, #tpu.memory_space<vmem>>, vector<8x512xbf16>
    %c0_1 = arith.constant 0 : index
    %c0_2 = arith.constant 0 : index
    %1 = vector.load %arg3[%c0_1, %c0_2] : memref<8x1xf32, #tpu.memory_space<vmem>>, vector<8x1xf32>
    %c0_3 = arith.constant 0 : index
    %c0_4 = arith.constant 0 : index
    %2 = vector.load %arg4[%c0_3, %c0_4] : memref<8x1xf32, #tpu.memory_space<vmem>>, vector<8x1xf32>
    %3 = arith.extf %0 : vector<8x512xbf16> to vector<8x512xf32>
    %4 = vector.broadcast %1 : vector<8x1xf32> to vector<8x512xf32>
    %5 = arith.mulf %3, %4 : vector<8x512xf32>
    %6 = vector.broadcast %2 : vector<8x1xf32> to vector<8x512xf32>
    %7 = arith.addf %5, %6 : vector<8x512xf32>
    %cst = arith.constant 0.000000e+00 : f32
    %8 = vector.broadcast %cst : f32 to vector<8x512xf32>
    %9 = arith.maximumf %7, %8 : vector<8x512xf32>
    %c0_5 = arith.constant 0 : index
    %c0_6 = arith.constant 0 : index
    %10 = vector.load %arg5[%c0_5, %c0_6] : memref<1x512xf32, #tpu.memory_space<vmem>>, vector<1x512xf32>
    %c0_7 = arith.constant 0 : index
    %c0_8 = arith.constant 0 : index
    %11 = vector.load %arg6[%c0_7, %c0_8] : memref<1x512xf32, #tpu.memory_space<vmem>>, vector<1x512xf32>
    %c511_i32 = arith.constant 511 : i32
    %12 = tpu.dynamic_rotate %9 by %c511_i32 dim 1 : vector<8x512xf32>, i32 -> vector<8x512xf32>
    %13 = vector.broadcast %10 : vector<1x512xf32> to vector<8x512xf32>
    %14 = arith.mulf %12, %13 : vector<8x512xf32>
    %c496_i32 = arith.constant 496 : i32
    %15 = tpu.dynamic_rotate %9 by %c496_i32 dim 1 : vector<8x512xf32>, i32 -> vector<8x512xf32>
    %16 = vector.broadcast %11 : vector<1x512xf32> to vector<8x512xf32>
    %17 = arith.mulf %15, %16 : vector<8x512xf32>
    %c495_i32 = arith.constant 495 : i32
    %18 = tpu.dynamic_rotate %9 by %c495_i32 dim 1 : vector<8x512xf32>, i32 -> vector<8x512xf32>
    %19 = arith.mulf %10, %11 : vector<1x512xf32>
    %20 = vector.broadcast %19 : vector<1x512xf32> to vector<8x512xf32>
    %21 = arith.mulf %18, %20 : vector<8x512xf32>
    %c0_9 = arith.constant 0 : index
    %c0_10 = arith.constant 0 : index
    %c0_11 = arith.constant 0 : index
    %22 = vector.load %arg7[%c0_9, %c0_10, %c0_11] : memref<4x32x8xf32, #tpu.memory_space<vmem>>, vector<1x32x8xf32>
    %23 = vector.shape_cast %22 : vector<1x32x8xf32> to vector<32x8xf32>
    %cst_12 = arith.constant dense<0.000000e+00> : vector<32x512xf32>
    %24 = tpu.matmul %23, %9, %cst_12 {dimension_numbers = #tpu.dot_dimension_numbers<[1], [0], [0], [1], [0, 0, 1, 1], [], []>} : vector<32x8xf32>, vector<8x512xf32>, vector<32x512xf32> -> vector<32x512xf32>
    %c1 = arith.constant 1 : index
    %c0_13 = arith.constant 0 : index
    %c0_14 = arith.constant 0 : index
    %25 = vector.load %arg7[%c1, %c0_13, %c0_14] : memref<4x32x8xf32, #tpu.memory_space<vmem>>, vector<1x32x8xf32>
    %26 = vector.shape_cast %25 : vector<1x32x8xf32> to vector<32x8xf32>
    %cst_15 = arith.constant dense<0.000000e+00> : vector<32x512xf32>
    %27 = tpu.matmul %26, %17, %cst_15 {dimension_numbers = #tpu.dot_dimension_numbers<[1], [0], [0], [1], [0, 0, 1, 1], [], []>} : vector<32x8xf32>, vector<8x512xf32>, vector<32x512xf32> -> vector<32x512xf32>
    %28 = arith.addf %24, %27 : vector<32x512xf32>
    %c2 = arith.constant 2 : index
    %c0_16 = arith.constant 0 : index
    %c0_17 = arith.constant 0 : index
    %29 = vector.load %arg7[%c2, %c0_16, %c0_17] : memref<4x32x8xf32, #tpu.memory_space<vmem>>, vector<1x32x8xf32>
    %30 = vector.shape_cast %29 : vector<1x32x8xf32> to vector<32x8xf32>
    %cst_18 = arith.constant dense<0.000000e+00> : vector<32x512xf32>
    %31 = tpu.matmul %30, %14, %cst_18 {dimension_numbers = #tpu.dot_dimension_numbers<[1], [0], [0], [1], [0, 0, 1, 1], [], []>} : vector<32x8xf32>, vector<8x512xf32>, vector<32x512xf32> -> vector<32x512xf32>
    %32 = arith.addf %28, %31 : vector<32x512xf32>
    %c3 = arith.constant 3 : index
    %c0_19 = arith.constant 0 : index
    %c0_20 = arith.constant 0 : index
    %33 = vector.load %arg7[%c3, %c0_19, %c0_20] : memref<4x32x8xf32, #tpu.memory_space<vmem>>, vector<1x32x8xf32>
    %34 = vector.shape_cast %33 : vector<1x32x8xf32> to vector<32x8xf32>
    %cst_21 = arith.constant dense<0.000000e+00> : vector<32x512xf32>
    %35 = tpu.matmul %34, %21, %cst_21 {dimension_numbers = #tpu.dot_dimension_numbers<[1], [0], [0], [1], [0, 0, 1, 1], [], []>} : vector<32x8xf32>, vector<8x512xf32>, vector<32x512xf32> -> vector<32x512xf32>
    %36 = arith.addf %32, %35 : vector<32x512xf32>
    %c0_22 = arith.constant 0 : index
    %c0_23 = arith.constant 0 : index
    %37 = vector.load %arg8[%c0_22, %c0_23] : memref<32x1xf32, #tpu.memory_space<vmem>>, vector<32x1xf32>
    %38 = vector.broadcast %37 : vector<32x1xf32> to vector<32x512xf32>
    %39 = arith.mulf %36, %38 : vector<32x512xf32>
    %c0_24 = arith.constant 0 : index
    %c0_25 = arith.constant 0 : index
    %40 = vector.load %arg9[%c0_24, %c0_25] : memref<32x1xf32, #tpu.memory_space<vmem>>, vector<32x1xf32>
    %41 = vector.broadcast %40 : vector<32x1xf32> to vector<32x512xf32>
    %42 = arith.addf %39, %41 : vector<32x512xf32>
    %cst_26 = arith.constant 0.000000e+00 : f32
    %43 = vector.broadcast %cst_26 : f32 to vector<32x512xf32>
    %44 = arith.maximumf %42, %43 : vector<32x512xf32>
    %c0_27 = arith.constant 0 : index
    %c0_28 = arith.constant 0 : index
    %45 = vector.load %arg10[%c0_27, %c0_28] : memref<32x32xf32, #tpu.memory_space<vmem>>, vector<32x32xf32>
    %cst_29 = arith.constant dense<0.000000e+00> : vector<32x512xf32>
    %46 = tpu.matmul %45, %44, %cst_29 {dimension_numbers = #tpu.dot_dimension_numbers<[1], [0], [0], [1], [0, 0, 1, 1], [], []>} : vector<32x32xf32>, vector<32x512xf32>, vector<32x512xf32> -> vector<32x512xf32>
    %47 = arith.truncf %46 : vector<32x512xf32> to vector<32x512xbf16>
    %c0_30 = arith.constant 0 : index
    %c0_31 = arith.constant 0 : index
    %48 = vector.load %arg11[%c0_30, %c0_31] : memref<32x512xbf16, #tpu.memory_space<vmem>>, vector<32x512xbf16>
    tpu.vector_store %arg11[%c0_30, %c0_31], %47 {strides = array<i32>} : memref<32x512xbf16, #tpu.memory_space<vmem>>, vector<32x512xbf16>,
    %c0_i32 = arith.constant 0 : i32
    %49 = arith.cmpi eq, %arg1, %c0_i32 : i32
    %50 = arith.extui %49 : i1 to i32
    %c0_i32_32 = arith.constant 0 : i32
    %51 = arith.cmpi ne, %50, %c0_i32_32 : i32
    scf.if %51 {
      %cst_51 = arith.constant 0.000000e+00 : f32
      %71 = vector.broadcast %cst_51 : f32 to vector<2x32x128xf32>
      %c0_52 = arith.constant 0 : index
      %c0_53 = arith.constant 0 : index
      %c0_54 = arith.constant 0 : index
      %c0_55 = arith.constant 0 : index
      %72 = vector.load %arg12[%c0_52, %c0_53, %c0_54, %c0_55] : memref<1x2x32x128xf32, #tpu.memory_space<vmem>>, vector<1x2x32x128xf32>
      %73 = vector.shape_cast %72 : vector<1x2x32x128xf32> to vector<2x32x128xf32>
      %74 = vector.shape_cast %71 : vector<2x32x128xf32> to vector<1x2x32x128xf32>
      tpu.vector_store %arg12[%c0_52, %c0_53, %c0_54, %c0_55], %74 {strides = array<i32>} : memref<1x2x32x128xf32, #tpu.memory_space<vmem>>, vector<1x2x32x128xf32>,
    } else {
    }
    %c0_33 = arith.constant 0 : index
    %c0_34 = arith.constant 0 : index
    %c0_35 = arith.constant 0 : index
    %c0_36 = arith.constant 0 : index
    %52 = vector.load %arg12[%c0_33, %c0_34, %c0_35, %c0_36] : memref<1x2x32x128xf32, #tpu.memory_space<vmem>>, vector<1x1x32x128xf32>
    %53 = vector.shape_cast %52 : vector<1x1x32x128xf32> to vector<32x128xf32>
    %cst_37 = arith.constant dense<0.000000e+00> : vector<32xf32>
    %54 = vector.multi_reduction <add>, %46, %cst_37 [1] : vector<32x512xf32> to vector<32xf32>
    %55 = vector.shape_cast %54 : vector<32xf32> to vector<32x1xf32>
    %56 = vector.broadcast %55 : vector<32x1xf32> to vector<32x128xf32>
    %57 = arith.addf %53, %56 : vector<32x128xf32>
    %c0_38 = arith.constant 0 : index
    %c0_39 = arith.constant 0 : index
    %c0_40 = arith.constant 0 : index
    %c0_41 = arith.constant 0 : index
    %58 = vector.load %arg12[%c0_38, %c0_39, %c0_40, %c0_41] : memref<1x2x32x128xf32, #tpu.memory_space<vmem>>, vector<1x1x32x128xf32>
    %59 = vector.shape_cast %58 : vector<1x1x32x128xf32> to vector<32x128xf32>
    %60 = vector.shape_cast %57 : vector<32x128xf32> to vector<1x1x32x128xf32>
    tpu.vector_store %arg12[%c0_38, %c0_39, %c0_40, %c0_41], %60 {strides = array<i32>} : memref<1x2x32x128xf32, #tpu.memory_space<vmem>>, vector<1x1x32x128xf32>,
    %c0_42 = arith.constant 0 : index
    %c1_43 = arith.constant 1 : index
    %c0_44 = arith.constant 0 : index
    %c0_45 = arith.constant 0 : index
    %61 = vector.load %arg12[%c0_42, %c1_43, %c0_44, %c0_45] : memref<1x2x32x128xf32, #tpu.memory_space<vmem>>, vector<1x1x32x128xf32>
    %62 = vector.shape_cast %61 : vector<1x1x32x128xf32> to vector<32x128xf32>
    %63 = arith.mulf %46, %46 : vector<32x512xf32>
    %cst_46 = arith.constant dense<0.000000e+00> : vector<32xf32>
    %64 = vector.multi_reduction <add>, %63, %cst_46 [1] : vector<32x512xf32> to vector<32xf32>
    %65 = vector.shape_cast %64 : vector<32xf32> to vector<32x1xf32>
    %66 = vector.broadcast %65 : vector<32x1xf32> to vector<32x128xf32>
    %67 = arith.addf %62, %66 : vector<32x128xf32>
    %c0_47 = arith.constant 0 : index
    %c1_48 = arith.constant 1 : index
    %c0_49 = arith.constant 0 : index
    %c0_50 = arith.constant 0 : index
    %68 = vector.load %arg12[%c0_47, %c1_48, %c0_49, %c0_50] : memref<1x2x32x128xf32, #tpu.memory_space<vmem>>, vector<1x1x32x128xf32>
    %69 = vector.shape_cast %68 : vector<1x1x32x128xf32> to vector<32x128xf32>
    %70 = vector.shape_cast %67 : vector<32x128xf32> to vector<1x1x32x128xf32>
    tpu.vector_store %arg12[%c0_47, %c1_48, %c0_49, %c0_50], %70 {strides = array<i32>} : memref<1x2x32x128xf32, #tpu.memory_space<vmem>>, vector<1x1x32x128xf32>,
    return
  }
  func.func @transform_0(%arg0: i32, %arg1: i32) -> (i32, i32) {
    %c1_i32 = arith.constant 1 : i32
    %0 = arith.muli %arg0, %c1_i32 : i32
    %1 = arith.addi %0, %arg1 : i32
    %c0_i32 = arith.constant 0 : i32
    %c0_i32_0 = arith.constant 0 : i32
    return %c0_i32, %1 : i32, i32
  }
  func.func @transform_1(%arg0: i32, %arg1: i32) -> (i32, i32) {
    %c0_i32 = arith.constant 0 : i32
    %c0_i32_0 = arith.constant 0 : i32
    %c0_i32_1 = arith.constant 0 : i32
    return %c0_i32, %c0_i32_0 : i32, i32
  }
  func.func @transform_2(%arg0: i32, %arg1: i32) -> (i32, i32) {
    %c0_i32 = arith.constant 0 : i32
    %c0_i32_0 = arith.constant 0 : i32
    %c0_i32_1 = arith.constant 0 : i32
    return %c0_i32, %c0_i32_0 : i32, i32
  }
  func.func @transform_3(%arg0: i32, %arg1: i32) -> (i32, i32) {
    %c0_i32 = arith.constant 0 : i32
    %c0_i32_0 = arith.constant 0 : i32
    %c0_i32_1 = arith.constant 0 : i32
    return %c0_i32, %c0_i32_0 : i32, i32
  }
  func.func @transform_4(%arg0: i32, %arg1: i32) -> (i32, i32) {
    %c0_i32 = arith.constant 0 : i32
    %c0_i32_0 = arith.constant 0 : i32
    %c0_i32_1 = arith.constant 0 : i32
    return %c0_i32, %c0_i32_0 : i32, i32
  }
  func.func @transform_5(%arg0: i32, %arg1: i32) -> (i32, i32, i32) {
    %c0_i32 = arith.constant 0 : i32
    %c0_i32_0 = arith.constant 0 : i32
    %c0_i32_1 = arith.constant 0 : i32
    %c0_i32_2 = arith.constant 0 : i32
    return %c0_i32, %c0_i32_0, %c0_i32_1 : i32, i32, i32
  }
  func.func @transform_6(%arg0: i32, %arg1: i32) -> (i32, i32) {
    %c0_i32 = arith.constant 0 : i32
    %c0_i32_0 = arith.constant 0 : i32
    %c0_i32_1 = arith.constant 0 : i32
    return %c0_i32, %c0_i32_0 : i32, i32
  }
  func.func @transform_7(%arg0: i32, %arg1: i32) -> (i32, i32) {
    %c0_i32 = arith.constant 0 : i32
    %c0_i32_0 = arith.constant 0 : i32
    %c0_i32_1 = arith.constant 0 : i32
    return %c0_i32, %c0_i32_0 : i32, i32
  }
  func.func @transform_8(%arg0: i32, %arg1: i32) -> (i32, i32) {
    %c0_i32 = arith.constant 0 : i32
    %c0_i32_0 = arith.constant 0 : i32
    %c0_i32_1 = arith.constant 0 : i32
    return %c0_i32, %c0_i32_0 : i32, i32
  }
  func.func @transform_9(%arg0: i32, %arg1: i32) -> (i32, i32) {
    %c1_i32 = arith.constant 1 : i32
    %0 = arith.muli %arg0, %c1_i32 : i32
    %1 = arith.addi %0, %arg1 : i32
    %c0_i32 = arith.constant 0 : i32
    %c0_i32_0 = arith.constant 0 : i32
    return %c0_i32, %1 : i32, i32
  }
  func.func @transform_10(%arg0: i32, %arg1: i32) -> (i32, i32, i32, i32) {
    %c0_i32 = arith.constant 0 : i32
    %c0_i32_0 = arith.constant 0 : i32
    %c0_i32_1 = arith.constant 0 : i32
    %c0_i32_2 = arith.constant 0 : i32
    return %arg0, %c0_i32, %c0_i32_0, %c0_i32_1 : i32, i32, i32, i32
  }
}

</mosaic_0001>

<llo_original>
// kernel: decoder_block_pallas.3
$region0: #{decoder_block_pallas.3}
  #allocation0 [shape = 'u32[]', space=smem, size = 0x4, offset = 0x4, fixed_abs, tag = 'smem constant byte address 0x4 - core index']
  #allocation1 [shape = 'u32[144,128]{1,0:T(1,128)}', space=vmem, size = 0x12000, scoped, tag = 'internal scratch']
  %s0 = inlined_call_operand.vmem [shape: f32[2,16,256], index: 0, kind: input, shape index: {}]
  %s1 = inlined_call_operand.vmem [shape: f32[8,16], index: 1, kind: input, shape index: {}]
  %s2 = inlined_call_operand.vmem [shape: bf16[8,512], index: 2, kind: output, shape index: {0}]
  %s3 = inlined_call_operand.vmem [shape: f32[1,2,8,128], index: 3, kind: output, shape index: {1}]
  %4 = xla_tuple %s2, %s3
  %s5 = sld [smem:[#allocation0]]
  $region30: #{decoder_block_pallas.3} parent=0
    _
  %s7 = ssub.s32 1, %s5
  %s8 = scalar_select 0, %s7, %s5
  // Predicated region
  $region2: #{decoder_block_pallas.3} parent=0 // pred_check
    _
  $region3: #{decoder_block_pallas.3} parent=0 // pred_check_branch
    %10 = sbr.rel (0) target = $region5
  $region4: #{decoder_block_pallas.3} parent=0 // pred_region
    %s11 = sadd.s32 0, 0
    %s12 = smul.u32 2, %s11
    %p13 = scmp.lt.s32.totalorder %s12, 1
    %s14 = scalar_select %p13, %s12, 1
    %s15 = smul.addr %s14, 4
    %s16 = smul.addr %s15, 8
    %s17 = scalar_lea.vmem %s0, %s16
    %s18 = sadd.s32 0, 0
    %s19 = smul.u32 2, %s18
  $region5: #{decoder_block_pallas.3} parent=0 // pred_fallthru
    _
  // Predicated region
  $region6: #{decoder_block_pallas.3} parent=0 // pred_check
    _
  $region7: #{decoder_block_pallas.3} parent=0 // pred_check_branch
    %21 = sbr.rel (0) target = $region9
  $region8: #{decoder_block_pallas.3} parent=0 // pred_region
    _
  $region9: #{decoder_block_pallas.3} parent=0 // pred_fallthru
    _
  %s22 = sadd.s32 0, 0
  %s23 = smul.u32 2, %s22
  %p24 = scmp.lt.s32.totalorder %s23, 1
  %s25 = scalar_select %p24, %s23, 1
  %s26 = smul.addr %s25, 4
  %s27 = smul.addr %s26, 8
  %s28 = scalar_lea.vmem %s0, %s27
  %s29 = sadd.s32 0, 0
  %s30 = smul.u32 4, %s29
  %p31 = scmp.lt.s32.totalorder %s30, 3
  %s32 = scalar_select %p31, %s30, 3
  %s33 = smul.addr %s32, 4
  %s34 = scalar_lea.vmem %s2, %s33
  %s35 = sadd.s32 0, 0
  %s36 = smul.u32 2, %s35
  %p37 = scmp.lt.s32.totalorder %s36, 1
  %s38 = scalar_select %p37, %s36, 1
  %s39 = smul.addr %s38, 4
  %s40 = smul.addr %s39, 8
  %s41 = scalar_lea.vmem %s0, %s40
  %s42 = sadd.s32 0, 0
  %s43 = smul.u32 2, %s42
  %s44 = sadd.s32 0, 0
  %s45 = smul.u32 4, %s44
  %p46 = scmp.lt.s32.totalorder %s45, 3
  %s47 = scalar_select %p46, %s45, 3
  %s48 = smul.addr %s47, 4
  %s49 = scalar_lea.vmem %s2, %s48
  %s50 = sadd.s32 0, 0
  %s51 = smul.u32 4, %s50
  %p52 = scmp.eq.s32.totalorder 0, 0
  // Predicated region
  $region10: #{decoder_block_pallas.3} parent=0 // pred_check
    %p53 = pneg %p52
  $region11: #{decoder_block_pallas.3} parent=0 // pred_check_branch
    %55 = sbr.rel (%p53) target = $region13
  $region12: #{decoder_block_pallas.3} parent=0 // pred_region
    %56 = vst [vmem:[%s3] sm:$0xff] 0.0
    %57 = vst [vmem:[%s3 + $0x8] sm:$0xff] 0.0
  $region13: #{decoder_block_pallas.3} parent=0 // pred_fallthru
    _
  %v58 = vld [vmem:[%s1] sm:$0xff]
  %v59 = vld [vmem:[%s41] sm:$0xff]
  %v60 = vld [vmem:[%s41 + $0x8] sm:$0xff]
  %v61 = vld [vmem:[%s41 + $0x10] sm:$0xff]
  %v62 = vld [vmem:[%s41 + $0x18] sm:$0xff]
  %vm63 = vcmask 130048
  %v65 = vsel %vm63, %v58, 0
  %67 = vmatprep.subr.mxu0 %v60
  %68 = vmatpush1.msra.mxu0 %v59
  %69 = vmatprep.subr.mxu0 %v62
  %70 = vmatpush1.msra.mxu0 %v61
  %71 = vmatprep.subr.mxu0 0.0
  %72 = vmatpush1.msra.mxu0 0.0
  %73 = vmatprep.subr.mxu0 0.0
  %74 = vmatpush1.msra.mxu0 0.0
  %75 = vmatprep.subr.mxu0 0.0
  %76 = vmatpush1.msra.mxu0 0.0
  %77 = vmatprep.subr.mxu0 0.0
  %78 = vmatpush1.msra.mxu0 0.0
  %79 = vmatprep.subr.mxu0 0.0
  %80 = vmatpush1.msra.mxu0 0.0
  %81 = vmatprep.subr.mxu0 0.0
  %82 = vmatpush1.msra.mxu0 0.0
  %83 = vmatprep.subr.mxu0 0.0
  %84 = vmatpush1.msra.mxu0 0.0
  %85 = vmatprep.subr.mxu0 0.0
  %86 = vmatpush1.msra.mxu0 0.0
  %87 = vmatprep.subr.mxu0 0.0
  %88 = vmatpush1.msra.mxu0 0.0
  %89 = vmatprep.subr.mxu0 0.0
  %90 = vmatpush1.msra.mxu0 0.0
  %91 = vmatprep.subr.mxu0 0.0
  %92 = vmatpush1.msra.mxu0 0.0
  %93 = vmatprep.subr.mxu0 0.0
  %94 = vmatpush1.msra.mxu0 0.0
  %95 = vmatprep.subr.mxu0 0.0
  %96 = vmatpush1.msra.mxu0 0.0
  %97 = vmatprep.subr.mxu0 0.0
  %98 = vmatpush1.msra.mxu0 0.0
  %99 = vmatprep.subr.mxu0 0.0
  %100 = vmatpush1.msra.mxu0 0.0
  %101 = vmatprep.subr.mxu0 0.0
  %102 = vmatpush1.msra.mxu0 0.0
  %103 = vmatprep.subr.mxu0 0.0
  %104 = vmatpush1.msra.mxu0 0.0
  %105 = vmatprep.subr.mxu0 0.0
  %106 = vmatpush1.msra.mxu0 0.0
  %107 = vmatprep.subr.mxu0 0.0
  %108 = vmatpush1.msra.mxu0 0.0
  %109 = vmatprep.subr.mxu0 0.0
  %110 = vmatpush1.msra.mxu0 0.0
  %111 = vmatprep.subr.mxu0 0.0
  %112 = vmatpush1.msra.mxu0 0.0
  %113 = vmatprep.subr.mxu0 0.0
  %114 = vmatpush1.msra.mxu0 0.0
  %115 = vmatprep.subr.mxu0 0.0
  %116 = vmatpush1.msra.mxu0 0.0
  %117 = vmatprep.subr.mxu0 0.0
  %118 = vmatpush1.msra.mxu0 0.0
  %119 = vmatprep.subr.mxu0 0.0
  %120 = vmatpush1.msra.mxu0 0.0
  %121 = vmatprep.subr.mxu0 0.0
  %122 = vmatpush1.msra.mxu0 0.0
  %123 = vmatprep.subr.mxu0 0.0
  %124 = vmatpush1.msra.mxu0 0.0
  %125 = vmatprep.subr.mxu0 0.0
  %126 = vmatpush1.msra.mxu0 0.0
  %127 = vmatprep.subr.mxu0 0.0
  %128 = vmatpush1.msra.mxu0 0.0
  %129 = vmatprep.subr.mxu0 0.0
  %130 = vmatpush1.msra.mxu0 0.0
  %131 = vmatprep.mubr.f32.mxu0 0.0
  %132 = vmatmul.mubr.f32.gmra.mrb[0].mxu0 %v65
  %v133 = vpop.f32.mrb[0].mxu0
  %v134 = vadd.f32 0.0, %v133
  %v135 = vpop.f32.mrb[0].mxu0
  %v136 = vadd.f32 0.0, %v135
  %137 = vdwg.mxu0
  %v138 = vpack.c.bf16 %v134, %v134
  %v139 = vpack.c.bf16 %v136, %v136
  %v142 = vunpack.c.l.b16 %v138
  %v143 = vunpack.c.l.b16 %v139
  %v144 = vpack.c.b16 %v143, %v142
  %146 = vst [vmem:[%s49] sm:$0xff] %v144
  %v147 = vld [vmem:[%s3] sm:$0xff]
  %v148 = vadd.f32 %v134, %v136
  %149 = vadd.xlane.f32.xlu0 %v148
  %v150 = vpop.xlane.xlu0 %149
  %v151 = vadd.f32 %v147, %v150
  %152 = vst [vmem:[%s3] sm:$0xff] %v151
  %s153 = scalar_lea.vmem %s3, 8
  %v154 = vld [vmem:[%s153] sm:$0xff]
  %v155 = vmul.f32 %v134, %v134
  %v156 = vmul.f32 %v136, %v136
  %v157 = vadd.f32 %v155, %v156
  %158 = vadd.xlane.f32.xlu0 %v157
  %v159 = vpop.xlane.xlu0 %158
  %v160 = vadd.f32 %v154, %v159
  %161 = vst [vmem:[%s153] sm:$0xff] %v160
  %s162 = scalar_lea.vmem %s41, 32
  %v163 = vld [vmem:[%s162] sm:$0xff]
  %v164 = vld [vmem:[%s162 + $0x8] sm:$0xff]
  %v165 = vld [vmem:[%s162 + $0x10] sm:$0xff]
  %v166 = vld [vmem:[%s162 + $0x18] sm:$0xff]
  %167 = vmatprep.subr.mxu0 %v164
  %168 = vmatpush1.msra.mxu0 %v163
  %169 = vmatprep.subr.mxu0 %v166
  %170 = vmatpush1.msra.mxu0 %v165
  %171 = vmatprep.subr.mxu0 0.0
  %172 = vmatpush1.msra.mxu0 0.0
  %173 = vmatprep.subr.mxu0 0.0
  %174 = vmatpush1.msra.mxu0 0.0
  %175 = vmatprep.subr.mxu0 0.0
  %176 = vmatpush1.msra.mxu0 0.0
  %177 = vmatprep.subr.mxu0 0.0
  %178 = vmatpush1.msra.mxu0 0.0
  %179 = vmatprep.subr.mxu0 0.0
  %180 = vmatpush1.msra.mxu0 0.0
  %181 = vmatprep.subr.mxu0 0.0
  %182 = vmatpush1.msra.mxu0 0.0
  %183 = vmatprep.subr.mxu0 0.0
  %184 = vmatpush1.msra.mxu0 0.0
  %185 = vmatprep.subr.mxu0 0.0
  %186 = vmatpush1.msra.mxu0 0.0
  %187 = vmatprep.subr.mxu0 0.0
  %188 = vmatpush1.msra.mxu0 0.0
  %189 = vmatprep.subr.mxu0 0.0
  %190 = vmatpush1.msra.mxu0 0.0
  %191 = vmatprep.subr.mxu0 0.0
  %192 = vmatpush1.msra.mxu0 0.0
  %193 = vmatprep.subr.mxu0 0.0
  %194 = vmatpush1.msra.mxu0 0.0
  %195 = vmatprep.subr.mxu0 0.0
  %196 = vmatpush1.msra.mxu0 0.0
  %197 = vmatprep.subr.mxu0 0.0
  %198 = vmatpush1.msra.mxu0 0.0
  %199 = vmatprep.subr.mxu0 0.0
  %200 = vmatpush1.msra.mxu0 0.0
  %201 = vmatprep.subr.mxu0 0.0
  %202 = vmatpush1.msra.mxu0 0.0
  %203 = vmatprep.subr.mxu0 0.0
  %204 = vmatpush1.msra.mxu0 0.0
  %205 = vmatprep.subr.mxu0 0.0
  %206 = vmatpush1.msra.mxu0 0.0
  %207 = vmatprep.subr.mxu0 0.0
  %208 = vmatpush1.msra.mxu0 0.0
  %209 = vmatprep.subr.mxu0 0.0
  %210 = vmatpush1.msra.mxu0 0.0
  %211 = vmatprep.subr.mxu0 0.0
  %212 = vmatpush1.msra.mxu0 0.0
  %213 = vmatprep.subr.mxu0 0.0
  %214 = vmatpush1.msra.mxu0 0.0
  %215 = vmatprep.subr.mxu0 0.0
  %216 = vmatpush1.msra.mxu0 0.0
  %217 = vmatprep.subr.mxu0 0.0
  %218 = vmatpush1.msra.mxu0 0.0
  %219 = vmatprep.subr.mxu0 0.0
  %220 = vmatpush1.msra.mxu0 0.0
  %221 = vmatprep.subr.mxu0 0.0
  %222 = vmatpush1.msra.mxu0 0.0
  %223 = vmatprep.subr.mxu0 0.0
  %224 = vmatpush1.msra.mxu0 0.0
  %225 = vmatprep.subr.mxu0 0.0
  %226 = vmatpush1.msra.mxu0 0.0
  %227 = vmatprep.subr.mxu0 0.0
  %228 = vmatpush1.msra.mxu0 0.0
  %229 = vmatprep.subr.mxu0 0.0
  %230 = vmatpush1.msra.mxu0 0.0
  %231 = vmatprep.mubr.f32.mxu0 0.0
  %232 = vmatmul.mubr.f32.gmra.mrb[0].mxu0 %v65
  %v233 = vpop.f32.mrb[0].mxu0
  %v234 = vadd.f32 0.0, %v233
  %v235 = vpop.f32.mrb[0].mxu0
  %v236 = vadd.f32 0.0, %v235
  %237 = vdwg.mxu0
  %v238 = vpack.c.bf16 %v234, %v234
  %v239 = vpack.c.bf16 %v236, %v236
  %v242 = vunpack.c.l.b16 %v238
  %v243 = vunpack.c.l.b16 %v239
  %v244 = vpack.c.b16 %v243, %v242
  %246 = vst [vmem:[%s49 + $0x8] sm:$0xff] %v244
  %v247 = vld [vmem:[%s3] sm:$0xff]
  %v248 = vadd.f32 %v234, %v236
  %249 = vadd.xlane.f32.xlu0 %v248
  %v250 = vpop.xlane.xlu0 %249
  %v251 = vadd.f32 %v247, %v250
  %252 = vst [vmem:[%s3] sm:$0xff] %v251
  %v253 = vld [vmem:[%s153] sm:$0xff]
  %v254 = vmul.f32 %v234, %v234
  %v255 = vmul.f32 %v236, %v236
  %v256 = vadd.f32 %v254, %v255
  %257 = vadd.xlane.f32.xlu0 %v256
  %v258 = vpop.xlane.xlu0 %257
  %v259 = vadd.f32 %v253, %v258
  %260 = vst [vmem:[%s153] sm:$0xff] %v259
  %s261 = sadd.s32 0, 0
  %s262 = smul.u32 4, %s261
  %p263 = scmp.lt.s32.totalorder %s262, 3
  %s264 = scalar_select %p263, %s262, 3
  %s265 = smul.addr %s264, 4
  %s266 = scalar_lea.vmem %s2, %s265
  // Predicated region
  $region14: #{decoder_block_pallas.3} parent=0 // pred_check
    _
  $region15: #{decoder_block_pallas.3} parent=0 // pred_check_branch
    %268 = sbr.rel (0) target = $region17
  $region16: #{decoder_block_pallas.3} parent=0 // pred_region
    %s269 = sadd.s32 0, 0
    %s270 = smul.u32 4, %s269
  $region17: #{decoder_block_pallas.3} parent=0 // pred_fallthru
    _
  // Predicated region
  $region18: #{decoder_block_pallas.3} parent=0 // pred_check
    _
  $region19: #{decoder_block_pallas.3} parent=0 // pred_check_branch
    %272 = sbr.rel (0) target = $region21
  $region20: #{decoder_block_pallas.3} parent=0 // pred_region
    _
  $region21: #{decoder_block_pallas.3} parent=0 // pred_fallthru
    _
  // Predicated region
  $region22: #{decoder_block_pallas.3} parent=0 // pred_check
    _
  $region23: #{decoder_block_pallas.3} parent=0 // pred_check_branch
    %274 = sbr.rel (0) target = $region25
  $region24: #{decoder_block_pallas.3} parent=0 // pred_region
    %s275 = sadd.s32 0, 0
    %s276 = smul.u32 4, %s275
    %p277 = scmp.lt.s32.totalorder %s276, 3
    %s278 = scalar_select %p277, %s276, 3
    %s279 = smul.addr %s278, 4
    %s280 = scalar_lea.vmem %s2, %s279
  $region25: #{decoder_block_pallas.3} parent=0 // pred_fallthru
    _
  // Predicated region
  $region26: #{decoder_block_pallas.3} parent=0 // pred_check
    _
  $region27: #{decoder_block_pallas.3} parent=0 // pred_check_branch
    %282 = sbr.rel (0) target = $region29
  $region28: #{decoder_block_pallas.3} parent=0 // pred_region
    _
  $region29: #{decoder_block_pallas.3} parent=0 // pred_fallthru
    _

// kernel: decoder_block_pallas.4
$region0: #{decoder_block_pallas.4}
  #allocation0 [shape = 'u32[]', space=smem, size = 0x4, offset = 0x4, fixed_abs, tag = 'smem constant byte address 0x4 - core index']
  #allocation1 [shape = 'u32[144,128]{1,0:T(1,128)}', space=vmem, size = 0x12000, scoped, tag = 'internal scratch']
  %s0 = inlined_call_operand.vmem [shape: bf16[8,512], index: 0, kind: input, shape index: {}]
  %s1 = inlined_call_operand.vmem [shape: f32[8,1], index: 1, kind: input, shape index: {}]
  %s2 = inlined_call_operand.vmem [shape: f32[8,1], index: 2, kind: input, shape index: {}]
  %s3 = inlined_call_operand.vmem [shape: f32[1,512], index: 3, kind: input, shape index: {}]
  %s4 = inlined_call_operand.vmem [shape: f32[1,512], index: 4, kind: input, shape index: {}]
  %s5 = inlined_call_operand.vmem [shape: f32[4,32,8], index: 5, kind: input, shape index: {}]
  %s6 = inlined_call_operand.vmem [shape: f32[1,2,32,128], index: 6, kind: output, shape index: {}]
  %s7 = sld [smem:[#allocation0]]
  $region38: #{decoder_block_pallas.4} parent=0
    _
  %s9 = ssub.s32 1, %s7
  %s10 = scalar_select 0, %s9, %s7
  // Predicated region
  $region2: #{decoder_block_pallas.4} parent=0 // pred_check
    _
  $region3: #{decoder_block_pallas.4} parent=0 // pred_check_branch
    %12 = sbr.rel (0) target = $region5
  $region4: #{decoder_block_pallas.4} parent=0 // pred_region
    %s13 = sadd.s32 0, 0
    %s14 = smul.u32 4, %s13
    %p15 = scmp.lt.s32.totalorder %s14, 3
    %s16 = scalar_select %p15, %s14, 3
    %s17 = smul.addr %s16, 4
    %s18 = scalar_lea.vmem %s0, %s17
    %s19 = sadd.s32 0, 0
    %s20 = smul.u32 4, %s19
  $region5: #{decoder_block_pallas.4} parent=0 // pred_fallthru
    _
  // Predicated region
  $region6: #{decoder_block_pallas.4} parent=0 // pred_check
    _
  $region7: #{decoder_block_pallas.4} parent=0 // pred_check_branch
    %22 = sbr.rel (0) target = $region9
  $region8: #{decoder_block_pallas.4} parent=0 // pred_region
    _
  $region9: #{decoder_block_pallas.4} parent=0 // pred_fallthru
    _
  // Predicated region
  $region10: #{decoder_block_pallas.4} parent=0 // pred_check
    _
  $region11: #{decoder_block_pallas.4} parent=0 // pred_check_branch
    %24 = sbr.rel (0) target = $region13
  $region12: #{decoder_block_pallas.4} parent=0 // pred_region
    _
  $region13: #{decoder_block_pallas.4} parent=0 // pred_fallthru
    _
  // Predicated region
  $region14: #{decoder_block_pallas.4} parent=0 // pred_check
    _
  $region15: #{decoder_block_pallas.4} parent=0 // pred_check_branch
    %26 = sbr.rel (0) target = $region17
  $region16: #{decoder_block_pallas.4} parent=0 // pred_region
    _
  $region17: #{decoder_block_pallas.4} parent=0 // pred_fallthru
    _
  // Predicated region
  $region18: #{decoder_block_pallas.4} parent=0 // pred_check
    _
  $region19: #{decoder_block_pallas.4} parent=0 // pred_check_branch
    %28 = sbr.rel (0) target = $region21
  $region20: #{decoder_block_pallas.4} parent=0 // pred_region
    _
  $region21: #{decoder_block_pallas.4} parent=0 // pred_fallthru
    _
  // Predicated region
  $region22: #{decoder_block_pallas.4} parent=0 // pred_check
    _
  $region23: #{decoder_block_pallas.4} parent=0 // pred_check_branch
    %30 = sbr.rel (0) target = $region25
  $region24: #{decoder_block_pallas.4} parent=0 // pred_region
    _
  $region25: #{decoder_block_pallas.4} parent=0 // pred_fallthru
    _
  %s31 = sadd.s32 0, 0
  %s32 = smul.u32 4, %s31
  %p33 = scmp.lt.s32.totalorder %s32, 3
  %s34 = scalar_select %p33, %s32, 3
  %s35 = smul.addr %s34, 4
  %s36 = scalar_lea.vmem %s0, %s35
  %s37 = sadd.s32 0, 0
  %s38 = smul.u32 4, %s37
  %p39 = scmp.lt.s32.totalorder %s38, 3
  %s40 = scalar_select %p39, %s38, 3
  %s41 = smul.addr %s40, 4
  %s42 = scalar_lea.vmem %s0, %s41
  %s43 = sadd.s32 0, 0
  %s44 = smul.u32 4, %s43
  %v45 = vld [vmem:[%s42] sm:$0xff]
  %v46 = vld [vmem:[%s42 + $0x8] sm:$0xff]
  %v47 = vld [vmem:[%s1] sm:$0xff]
  %v48 = vld [vmem:[%s2] sm:$0xff]
  %v49 = vunpack.c.l.bf16 %v45
  %v50 = vunpack.c.h.bf16 %v45
  %v51 = vunpack.c.l.bf16 %v46
  %v52 = vunpack.c.h.bf16 %v46
  %54 = vset.pattern.permute.xlu0 0
  %55 = vperm.xlu0 %54, %v47
  %v56 = vpop.permute.xlu0 %55
  %v58 = vmul.f32 %v49, %v56
  %v59 = vmul.f32 %v50, %v56
  %v60 = vmul.f32 %v51, %v56
  %v61 = vmul.f32 %v52, %v56
  %63 = vset.pattern.permute.xlu0 0
  %64 = vperm.xlu0 %63, %v48
  %v65 = vpop.permute.xlu0 %64
  %v67 = vadd.f32 %v58, %v65
  %v68 = vadd.f32 %v59, %v65
  %v69 = vadd.f32 %v60, %v65
  %v70 = vadd.f32 %v61, %v65
  %v71 = vmax.f32 %v67, 0.0
  %v72 = vmax.f32 %v68, 0.0
  %v73 = vmax.f32 %v69, 0.0
  %v74 = vmax.f32 %v70, 0.0
  %v75 = vld [vmem:[%s3] sm:$0xf]
  %v76 = vld [vmem:[%s4] sm:$0xf]
  %77 = vrot.lane.b32.xlu0 %v71, 127
  %v78 = vpop.permute.xlu0 %77
  %79 = vrot.lane.b32.xlu0 %v72, 127
  %v80 = vpop.permute.xlu0 %79
  %81 = vrot.lane.b32.xlu0 %v73, 127
  %v82 = vpop.permute.xlu0 %81
  %83 = vrot.lane.b32.xlu0 %v74, 127
  %v84 = vpop.permute.xlu0 %83
  %v85 = vlaneseq
  %v86 = vand.u32 %v85, 127
  %vm87 = vcmp.lt.s32.totalorder %v86, 127
  %v88 = vsel %vm87, %v82, %v84
  %v89 = vsel %vm87, %v80, %v82
  %v90 = vsel %vm87, %v78, %v80
  %v91 = vsel %vm87, %v84, %v78
  %v93 = vlaneseq
  %v94 = vshrl.u32 %v93, 7
  %v95 = vsub.s32 0, %v94
  %v96 = vrot.slane %v75, %v95
  %v97 = vlaneseq
  %v98 = vshrl.u32 %v97, 7
  %v99 = vsub.s32 1, %v98
  %v100 = vrot.slane %v75, %v99
  %v101 = vlaneseq
  %v102 = vshrl.u32 %v101, 7
  %v103 = vsub.s32 2, %v102
  %v104 = vrot.slane %v75, %v103
  %v105 = vlaneseq
  %v106 = vshrl.u32 %v105, 7
  %v107 = vsub.s32 3, %v106
  %v108 = vrot.slane %v75, %v107
  %v113 = vmul.f32 %v90, %v96
  %v114 = vmul.f32 %v89, %v100
  %v115 = vmul.f32 %v88, %v104
  %v116 = vmul.f32 %v91, %v108
  %117 = vrot.lane.b32.xlu0 %v71, 112
  %v118 = vpop.permute.xlu0 %117
  %119 = vrot.lane.b32.xlu0 %v72, 112
  %v120 = vpop.permute.xlu0 %119
  %121 = vrot.lane.b32.xlu0 %v73, 112
  %v122 = vpop.permute.xlu0 %121
  %123 = vrot.lane.b32.xlu0 %v74, 112
  %v124 = vpop.permute.xlu0 %123
  %vm125 = vcmp.lt.s32.totalorder %v86, 112
  %v126 = vsel %vm125, %v122, %v124
  %v127 = vsel %vm125, %v120, %v122
  %v128 = vsel %vm125, %v118, %v120
  %v129 = vsel %vm125, %v124, %v118
  %v131 = vlaneseq
  %v132 = vshrl.u32 %v131, 7
  %v133 = vsub.s32 0, %v132
  %v134 = vrot.slane %v76, %v133
  %v135 = vlaneseq
  %v136 = vshrl.u32 %v135, 7
  %v137 = vsub.s32 1, %v136
  %v138 = vrot.slane %v76, %v137
  %v139 = vlaneseq
  %v140 = vshrl.u32 %v139, 7
  %v141 = vsub.s32 2, %v140
  %v142 = vrot.slane %v76, %v141
  %v143 = vlaneseq
  %v144 = vshrl.u32 %v143, 7
  %v145 = vsub.s32 3, %v144
  %v146 = vrot.slane %v76, %v145
  %v151 = vmul.f32 %v128, %v134
  %v152 = vmul.f32 %v127, %v138
  %v153 = vmul.f32 %v126, %v142
  %v154 = vmul.f32 %v129, %v146
  %155 = vrot.lane.b32.xlu0 %v71, 111
  %v156 = vpop.permute.xlu0 %155
  %157 = vrot.lane.b32.xlu0 %v72, 111
  %v158 = vpop.permute.xlu0 %157
  %159 = vrot.lane.b32.xlu0 %v73, 111
  %v160 = vpop.permute.xlu0 %159
  %161 = vrot.lane.b32.xlu0 %v74, 111
  %v162 = vpop.permute.xlu0 %161
  %vm163 = vcmp.lt.s32.totalorder %v86, 111
  %v164 = vsel %vm163, %v160, %v162
  %v165 = vsel %vm163, %v158, %v160
  %v166 = vsel %vm163, %v156, %v158
  %v167 = vsel %vm163, %v162, %v156
  %v168 = vmul.f32 %v75, %v76
  %v170 = vlaneseq
  %v171 = vshrl.u32 %v170, 7
  %v172 = vsub.s32 0, %v171
  %v173 = vrot.slane %v168, %v172
  %v174 = vlaneseq
  %v175 = vshrl.u32 %v174, 7
  %v176 = vsub.s32 1, %v175
  %v177 = vrot.slane %v168, %v176
  %v178 = vlaneseq
  %v179 = vshrl.u32 %v178, 7
  %v180 = vsub.s32 2, %v179
  %v181 = vrot.slane %v168, %v180
  %v182 = vlaneseq
  %v183 = vshrl.u32 %v182, 7
  %v184 = vsub.s32 3, %v183
  %v185 = vrot.slane %v168, %v184
  %v190 = vmul.f32 %v166, %v173
  %v191 = vmul.f32 %v165, %v177
  %v192 = vmul.f32 %v164, %v181
  %v193 = vmul.f32 %v167, %v185
  %v194 = vld [vmem:[%s5] sm:$0xff]
  %v195 = vld [vmem:[%s5 + $0x8] sm:$0xff]
  %v196 = vld [vmem:[%s5 + $0x10] sm:$0xff]
  %v197 = vld [vmem:[%s5 + $0x18] sm:$0xff]
  %s198 = scalar_lea.vmem %s5, 32
  %v199 = vld [vmem:[%s198] sm:$0xff]
  %v200 = vld [vmem:[%s198 + $0x8] sm:$0xff]
  %v201 = vld [vmem:[%s198 + $0x10] sm:$0xff]
  %v202 = vld [vmem:[%s198 + $0x18] sm:$0xff]
  %vm203 = vcmask 64512
  %v205 = vsel %vm203, %v199, 0
  %v208 = vsel %vm203, %v200, 0
  %v211 = vsel %vm203, %v201, 0
  %v214 = vsel %vm203, %v202, 0
  %216 = vmatprep.subr.mxu0 %v152
  %217 = vmatpush1.msra.mxu0 %v151
  %218 = vmatprep.subr.mxu0 0.0
  %219 = vmatpush1.msra.mxu0 0.0
  %220 = vmatprep.subr.mxu0 0.0
  %221 = vmatpush1.msra.mxu0 0.0
  %222 = vmatprep.subr.mxu0 0.0
  %223 = vmatpush1.msra.mxu0 0.0
  %224 = vmatprep.subr.mxu0 0.0
  %225 = vmatpush1.msra.mxu0 0.0
  %226 = vmatprep.subr.mxu0 0.0
  %227 = vmatpush1.msra.mxu0 0.0
  %228 = vmatprep.subr.mxu0 0.0
  %229 = vmatpush1.msra.mxu0 0.0
  %230 = vmatprep.subr.mxu0 0.0
  %231 = vmatpush1.msra.mxu0 0.0
  %232 = vmatprep.subr.mxu0 0.0
  %233 = vmatpush1.msra.mxu0 0.0
  %234 = vmatprep.subr.mxu0 0.0
  %235 = vmatpush1.msra.mxu0 0.0
  %236 = vmatprep.subr.mxu0 0.0
  %237 = vmatpush1.msra.mxu0 0.0
  %238 = vmatprep.subr.mxu0 0.0
  %239 = vmatpush1.msra.mxu0 0.0
  %240 = vmatprep.subr.mxu0 0.0
  %241 = vmatpush1.msra.mxu0 0.0
  %242 = vmatprep.subr.mxu0 0.0
  %243 = vmatpush1.msra.mxu0 0.0
  %244 = vmatprep.subr.mxu0 0.0
  %245 = vmatpush1.msra.mxu0 0.0
  %246 = vmatprep.subr.mxu0 0.0
  %247 = vmatpush1.msra.mxu0 0.0
  %248 = vmatprep.subr.mxu0 0.0
  %249 = vmatpush1.msra.mxu0 0.0
  %250 = vmatprep.subr.mxu0 0.0
  %251 = vmatpush1.msra.mxu0 0.0
  %252 = vmatprep.subr.mxu0 0.0
  %253 = vmatpush1.msra.mxu0 0.0
  %254 = vmatprep.subr.mxu0 0.0
  %255 = vmatpush1.msra.mxu0 0.0
  %256 = vmatprep.subr.mxu0 0.0
  %257 = vmatpush1.msra.mxu0 0.0
  %258 = vmatprep.subr.mxu0 0.0
  %259 = vmatpush1.msra.mxu0 0.0
  %260 = vmatprep.subr.mxu0 0.0
  %261 = vmatpush1.msra.mxu0 0.0
  %262 = vmatprep.subr.mxu0 0.0
  %263 = vmatpush1.msra.mxu0 0.0
  %264 = vmatprep.subr.mxu0 0.0
  %265 = vmatpush1.msra.mxu0 0.0
  %266 = vmatprep.subr.mxu0 0.0
  %267 = vmatpush1.msra.mxu0 0.0
  %268 = vmatprep.subr.mxu0 0.0
  %269 = vmatpush1.msra.mxu0 0.0
  %270 = vmatprep.subr.mxu0 0.0
  %271 = vmatpush1.msra.mxu0 0.0
  %272 = vmatprep.subr.mxu0 0.0
  %273 = vmatpush1.msra.mxu0 0.0
  %274 = vmatprep.subr.mxu0 0.0
  %275 = vmatpush1.msra.mxu0 0.0
  %276 = vmatprep.subr.mxu0 0.0
  %277 = vmatpush1.msra.mxu0 0.0
  %278 = vmatprep.subr.mxu0 0.0
  %279 = vmatpush1.msra.mxu0 0.0
  %280 = vmatprep.mubr.f32.mxu0 0.0
  %281 = vmatmul.mubr.f32.gmra.mrb[0].mxu0 %v205
  %v282 = vpop.f32.mrb[0].mxu0
  %v283 = vadd.f32 0.0, %v282
  %v284 = vpop.f32.mrb[0].mxu0
  %v285 = vadd.f32 0.0, %v284
  %286 = vmatprep.mubr.f32.mxu0 0.0
  %287 = vmatmul.mubr.f32.gmra.mrb[0].mxu0 %v208
  %v288 = vpop.f32.mrb[0].mxu0
  %v289 = vadd.f32 0.0, %v288
  %v290 = vpop.f32.mrb[0].mxu0
  %v291 = vadd.f32 0.0, %v290
  %292 = vmatprep.mubr.f32.mxu0 0.0
  %293 = vmatmul.mubr.f32.gmra.mrb[0].mxu0 %v211
  %v294 = vpop.f32.mrb[0].mxu0
  %v295 = vadd.f32 0.0, %v294
  %v296 = vpop.f32.mrb[0].mxu0
  %v297 = vadd.f32 0.0, %v296
  %298 = vmatprep.mubr.f32.mxu0 0.0
  %299 = vmatmul.mubr.f32.gmra.mrb[0].mxu0 %v214
  %v300 = vpop.f32.mrb[0].mxu0
  %v301 = vadd.f32 0.0, %v300
  %v302 = vpop.f32.mrb[0].mxu0
  %v303 = vadd.f32 0.0, %v302
  %304 = vdwg.mxu0
  %305 = vmatprep.subr.mxu0 %v154
  %306 = vmatpush1.msra.mxu0 %v153
  %307 = vmatprep.subr.mxu0 0.0
  %308 = vmatpush1.msra.mxu0 0.0
  %309 = vmatprep.subr.mxu0 0.0
  %310 = vmatpush1.msra.mxu0 0.0
  %311 = vmatprep.subr.mxu0 0.0
  %312 = vmatpush1.msra.mxu0 0.0
  %313 = vmatprep.subr.mxu0 0.0
  %314 = vmatpush1.msra.mxu0 0.0
  %315 = vmatprep.subr.mxu0 0.0
  %316 = vmatpush1.msra.mxu0 0.0
  %317 = vmatprep.subr.mxu0 0.0
  %318 = vmatpush1.msra.mxu0 0.0
  %319 = vmatprep.subr.mxu0 0.0
  %320 = vmatpush1.msra.mxu0 0.0
  %321 = vmatprep.subr.mxu0 0.0
  %322 = vmatpush1.msra.mxu0 0.0
  %323 = vmatprep.subr.mxu0 0.0
  %324 = vmatpush1.msra.mxu0 0.0
  %325 = vmatprep.subr.mxu0 0.0
  %326 = vmatpush1.msra.mxu0 0.0
  %327 = vmatprep.subr.mxu0 0.0
  %328 = vmatpush1.msra.mxu0 0.0
  %329 = vmatprep.subr.mxu0 0.0
  %330 = vmatpush1.msra.mxu0 0.0
  %331 = vmatprep.subr.mxu0 0.0
  %332 = vmatpush1.msra.mxu0 0.0
  %333 = vmatprep.subr.mxu0 0.0
  %334 = vmatpush1.msra.mxu0 0.0
  %335 = vmatprep.subr.mxu0 0.0
  %336 = vmatpush1.msra.mxu0 0.0
  %337 = vmatprep.subr.mxu0 0.0
  %338 = vmatpush1.msra.mxu0 0.0
  %339 = vmatprep.subr.mxu0 0.0
  %340 = vmatpush1.msra.mxu0 0.0
  %341 = vmatprep.subr.mxu0 0.0
  %342 = vmatpush1.msra.mxu0 0.0
  %343 = vmatprep.subr.mxu0 0.0
  %344 = vmatpush1.msra.mxu0 0.0
  %345 = vmatprep.subr.mxu0 0.0
  %346 = vmatpush1.msra.mxu0 0.0
  %347 = vmatprep.subr.mxu0 0.0
  %348 = vmatpush1.msra.mxu0 0.0
  %349 = vmatprep.subr.mxu0 0.0
  %350 = vmatpush1.msra.mxu0 0.0
  %351 = vmatprep.subr.mxu0 0.0
  %352 = vmatpush1.msra.mxu0 0.0
  %353 = vmatprep.subr.mxu0 0.0
  %354 = vmatpush1.msra.mxu0 0.0
  %355 = vmatprep.subr.mxu0 0.0
  %356 = vmatpush1.msra.mxu0 0.0
  %357 = vmatprep.subr.mxu0 0.0
  %358 = vmatpush1.msra.mxu0 0.0
  %359 = vmatprep.subr.mxu0 0.0
  %360 = vmatpush1.msra.mxu0 0.0
  %361 = vmatprep.subr.mxu0 0.0
  %362 = vmatpush1.msra.mxu0 0.0
  %363 = vmatprep.subr.mxu0 0.0
  %364 = vmatpush1.msra.mxu0 0.0
  %365 = vmatprep.subr.mxu0 0.0
  %366 = vmatpush1.msra.mxu0 0.0
  %367 = vmatprep.subr.mxu0 0.0
  %368 = vmatpush1.msra.mxu0 0.0
  %369 = vmatprep.mubr.f32.mxu0 0.0
  %370 = vmatmul.mubr.f32.gmra.mrb[0].mxu0 %v205
  %v371 = vpop.f32.mrb[0].mxu0
  %v372 = vadd.f32 0.0, %v371
  %v373 = vpop.f32.mrb[0].mxu0
  %v374 = vadd.f32 0.0, %v373
  %375 = vmatprep.mubr.f32.mxu0 0.0
  %376 = vmatmul.mubr.f32.gmra.mrb[0].mxu0 %v208
  %v377 = vpop.f32.mrb[0].mxu0
  %v378 = vadd.f32 0.0, %v377
  %v379 = vpop.f32.mrb[0].mxu0
  %v380 = vadd.f32 0.0, %v379
  %381 = vmatprep.mubr.f32.mxu0 0.0
  %382 = vmatmul.mubr.f32.gmra.mrb[0].mxu0 %v211
  %v383 = vpop.f32.mrb[0].mxu0
  %v384 = vadd.f32 0.0, %v383
  %v385 = vpop.f32.mrb[0].mxu0
  %v386 = vadd.f32 0.0, %v385
  %387 = vmatprep.mubr.f32.mxu0 0.0
  %388 = vmatmul.mubr.f32.gmra.mrb[0].mxu0 %v214
  %v389 = vpop.f32.mrb[0].mxu0
  %v390 = vadd.f32 0.0, %v389
  %v391 = vpop.f32.mrb[0].mxu0
  %v392 = vadd.f32 0.0, %v391
  %393 = vdwg.mxu0
  %v395 = vsel %vm203, %v194, 0
  %v398 = vsel %vm203, %v195, 0
  %v401 = vsel %vm203, %v196, 0
  %v404 = vsel %vm203, %v197, 0
  %406 = vmatprep.subr.mxu0 %v72
  %407 = vmatpush1.msra.mxu0 %v71
  %408 = vmatprep.subr.mxu0 0.0
  %409 = vmatpush1.msra.mxu0 0.0
  %410 = vmatprep.subr.mxu0 0.0
  %411 = vmatpush1.msra.mxu0 0.0
  %412 = vmatprep.subr.mxu0 0.0
  %413 = vmatpush1.msra.mxu0 0.0
  %414 = vmatprep.subr.mxu0 0.0
  %415 = vmatpush1.msra.mxu0 0.0
  %416 = vmatprep.subr.mxu0 0.0
  %417 = vmatpush1.msra.mxu0 0.0
  %418 = vmatprep.subr.mxu0 0.0
  %419 = vmatpush1.msra.mxu0 0.0
  %420 = vmatprep.subr.mxu0 0.0
  %421 = vmatpush1.msra.mxu0 0.0
  %422 = vmatprep.subr.mxu0 0.0
  %423 = vmatpush1.msra.mxu0 0.0
  %424 = vmatprep.subr.mxu0 0.0
  %425 = vmatpush1.msra.mxu0 0.0
  %426 = vmatprep.subr.mxu0 0.0
  %427 = vmatpush1.msra.mxu0 0.0
  %428 = vmatprep.subr.mxu0 0.0
  %429 = vmatpush1.msra.mxu0 0.0
  %430 = vmatprep.subr.mxu0 0.0
  %431 = vmatpush1.msra.mxu0 0.0
  %432 = vmatprep.subr.mxu0 0.0
  %433 = vmatpush1.msra.mxu0 0.0
  %434 = vmatprep.subr.mxu0 0.0
  %435 = vmatpush1.msra.mxu0 0.0
  %436 = vmatprep.subr.mxu0 0.0
  %437 = vmatpush1.msra.mxu0 0.0
  %438 = vmatprep.subr.mxu0 0.0
  %439 = vmatpush1.msra.mxu0 0.0
  %440 = vmatprep.subr.mxu0 0.0
  %441 = vmatpush1.msra.mxu0 0.0
  %442 = vmatprep.subr.mxu0 0.0
  %443 = vmatpush1.msra.mxu0 0.0
  %444 = vmatprep.subr.mxu0 0.0
  %445 = vmatpush1.msra.mxu0 0.0
  %446 = vmatprep.subr.mxu0 0.0
  %447 = vmatpush1.msra.mxu0 0.0
  %448 = vmatprep.subr.mxu0 0.0
  %449 = vmatpush1.msra.mxu0 0.0
  %450 = vmatprep.subr.mxu0 0.0
  %451 = vmatpush1.msra.mxu0 0.0
  %452 = vmatprep.subr.mxu0 0.0
  %453 = vmatpush1.msra.mxu0 0.0
  %454 = vmatprep.subr.mxu0 0.0
  %455 = vmatpush1.msra.mxu0 0.0
  %456 = vmatprep.subr.mxu0 0.0
  %457 = vmatpush1.msra.mxu0 0.0
  %458 = vmatprep.subr.mxu0 0.0
  %459 = vmatpush1.msra.mxu0 0.0
  %460 = vmatprep.subr.mxu0 0.0
  %461 = vmatpush1.msra.mxu0 0.0
  %462 = vmatprep.subr.mxu0 0.0
  %463 = vmatpush1.msra.mxu0 0.0
  %464 = vmatprep.subr.mxu0 0.0
  %465 = vmatpush1.msra.mxu0 0.0
  %466 = vmatprep.subr.mxu0 0.0
  %467 = vmatpush1.msra.mxu0 0.0
  %468 = vmatprep.subr.mxu0 0.0
  %469 = vmatpush1.msra.mxu0 0.0
  %470 = vmatprep.mubr.f32.mxu0 0.0
  %471 = vmatmul.mubr.f32.gmra.mrb[0].mxu0 %v395
  %v472 = vpop.f32.mrb[0].mxu0
  %v473 = vadd.f32 %v283, %v472
  %v474 = vpop.f32.mrb[0].mxu0
  %v475 = vadd.f32 %v285, %v474
  %476 = vmatprep.mubr.f32.mxu0 0.0
  %477 = vmatmul.mubr.f32.gmra.mrb[0].mxu0 %v398
  %v478 = vpop.f32.mrb[0].mxu0
  %v479 = vadd.f32 %v289, %v478
  %v480 = vpop.f32.mrb[0].mxu0
  %v481 = vadd.f32 %v291, %v480
  %482 = vmatprep.mubr.f32.mxu0 0.0
  %483 = vmatmul.mubr.f32.gmra.mrb[0].mxu0 %v401
  %v484 = vpop.f32.mrb[0].mxu0
  %v485 = vadd.f32 %v295, %v484
  %v486 = vpop.f32.mrb[0].mxu0
  %v487 = vadd.f32 %v297, %v486
  %488 = vmatprep.mubr.f32.mxu0 0.0
  %489 = vmatmul.mubr.f32.gmra.mrb[0].mxu0 %v404
  %v490 = vpop.f32.mrb[0].mxu0
  %v491 = vadd.f32 %v301, %v490
  %v492 = vpop.f32.mrb[0].mxu0
  %v493 = vadd.f32 %v303, %v492
  %494 = vdwg.mxu0
  %495 = vmatprep.subr.mxu0 %v74
  %496 = vmatpush1.msra.mxu0 %v73
  %497 = vmatprep.subr.mxu0 0.0
  %498 = vmatpush1.msra.mxu0 0.0
  %499 = vmatprep.subr.mxu0 0.0
  %500 = vmatpush1.msra.mxu0 0.0
  %501 = vmatprep.subr.mxu0 0.0
  %502 = vmatpush1.msra.mxu0 0.0
  %503 = vmatprep.subr.mxu0 0.0
  %504 = vmatpush1.msra.mxu0 0.0
  %505 = vmatprep.subr.mxu0 0.0
  %506 = vmatpush1.msra.mxu0 0.0
  %507 = vmatprep.subr.mxu0 0.0
  %508 = vmatpush1.msra.mxu0 0.0
  %509 = vmatprep.subr.mxu0 0.0
  %510 = vmatpush1.msra.mxu0 0.0
  %511 = vmatprep.subr.mxu0 0.0
  %512 = vmatpush1.msra.mxu0 0.0
  %513 = vmatprep.subr.mxu0 0.0
  %514 = vmatpush1.msra.mxu0 0.0
  %515 = vmatprep.subr.mxu0 0.0
  %516 = vmatpush1.msra.mxu0 0.0
  %517 = vmatprep.subr.mxu0 0.0
  %518 = vmatpush1.msra.mxu0 0.0
  %519 = vmatprep.subr.mxu0 0.0
  %520 = vmatpush1.msra.mxu0 0.0
  %521 = vmatprep.subr.mxu0 0.0
  %522 = vmatpush1.msra.mxu0 0.0
  %523 = vmatprep.subr.mxu0 0.0
  %524 = vmatpush1.msra.mxu0 0.0
  %525 = vmatprep.subr.mxu0 0.0
  %526 = vmatpush1.msra.mxu0 0.0
  %527 = vmatprep.subr.mxu0 0.0
  %528 = vmatpush1.msra.mxu0 0.0
  %529 = vmatprep.subr.mxu0 0.0
  %530 = vmatpush1.msra.mxu0 0.0
  %531 = vmatprep.subr.mxu0 0.0
  %532 = vmatpush1.msra.mxu0 0.0
  %533 = vmatprep.subr.mxu0 0.0
  %534 = vmatpush1.msra.mxu0 0.0
  %535 = vmatprep.subr.mxu0 0.0
  %536 = vmatpush1.msra.mxu0 0.0
  %537 = vmatprep.subr.mxu0 0.0
  %538 = vmatpush1.msra.mxu0 0.0
  %539 = vmatprep.subr.mxu0 0.0
  %540 = vmatpush1.msra.mxu0 0.0
  %541 = vmatprep.subr.mxu0 0.0
  %542 = vmatpush1.msra.mxu0 0.0
  %543 = vmatprep.subr.mxu0 0.0
  %544 = vmatpush1.msra.mxu0 0.0
  %545 = vmatprep.subr.mxu0 0.0
  %546 = vmatpush1.msra.mxu0 0.0
  %547 = vmatprep.subr.mxu0 0.0
  %548 = vmatpush1.msra.mxu0 0.0
  %549 = vmatprep.subr.mxu0 0.0
  %550 = vmatpush1.msra.mxu0 0.0
  %551 = vmatprep.subr.mxu0 0.0
  %552 = vmatpush1.msra.mxu0 0.0
  %553 = vmatprep.subr.mxu0 0.0
  %554 = vmatpush1.msra.mxu0 0.0
  %555 = vmatprep.subr.mxu0 0.0
  %556 = vmatpush1.msra.mxu0 0.0
  %557 = vmatprep.subr.mxu0 0.0
  %558 = vmatpush1.msra.mxu0 0.0
  %559 = vmatprep.mubr.f32.mxu0 0.0
  %560 = vmatmul.mubr.f32.gmra.mrb[0].mxu0 %v395
  %v561 = vpop.f32.mrb[0].mxu0
  %v562 = vadd.f32 %v372, %v561
  %v563 = vpop.f32.mrb[0].mxu0
  %v564 = vadd.f32 %v374, %v563
  %565 = vmatprep.mubr.f32.mxu0 0.0
  %566 = vmatmul.mubr.f32.gmra.mrb[0].mxu0 %v398
  %v567 = vpop.f32.mrb[0].mxu0
  %v568 = vadd.f32 %v378, %v567
  %v569 = vpop.f32.mrb[0].mxu0
  %v570 = vadd.f32 %v380, %v569
  %571 = vmatprep.mubr.f32.mxu0 0.0
  %572 = vmatmul.mubr.f32.gmra.mrb[0].mxu0 %v401
  %v573 = vpop.f32.mrb[0].mxu0
  %v574 = vadd.f32 %v384, %v573
  %v575 = vpop.f32.mrb[0].mxu0
  %v576 = vadd.f32 %v386, %v575
  %577 = vmatprep.mubr.f32.mxu0 0.0
  %578 = vmatmul.mubr.f32.gmra.mrb[0].mxu0 %v404
  %v579 = vpop.f32.mrb[0].mxu0
  %v580 = vadd.f32 %v390, %v579
  %v581 = vpop.f32.mrb[0].mxu0
  %v582 = vadd.f32 %v392, %v581
  %583 = vdwg.mxu0
  %s584 = scalar_lea.vmem %s5, 64
  %v585 = vld [vmem:[%s584] sm:$0xff]
  %v586 = vld [vmem:[%s584 + $0x8] sm:$0xff]
  %v587 = vld [vmem:[%s584 + $0x10] sm:$0xff]
  %v588 = vld [vmem:[%s584 + $0x18] sm:$0xff]
  %v590 = vsel %vm203, %v585, 0
  %v593 = vsel %vm203, %v586, 0
  %v596 = vsel %vm203, %v587, 0
  %v599 = vsel %vm203, %v588, 0
  %601 = vmatprep.subr.mxu0 %v114
  %602 = vmatpush1.msra.mxu0 %v113
  %603 = vmatprep.subr.mxu0 0.0
  %604 = vmatpush1.msra.mxu0 0.0
  %605 = vmatprep.subr.mxu0 0.0
  %606 = vmatpush1.msra.mxu0 0.0
  %607 = vmatprep.subr.mxu0 0.0
  %608 = vmatpush1.msra.mxu0 0.0
  %609 = vmatprep.subr.mxu0 0.0
  %610 = vmatpush1.msra.mxu0 0.0
  %611 = vmatprep.subr.mxu0 0.0
  %612 = vmatpush1.msra.mxu0 0.0
  %613 = vmatprep.subr.mxu0 0.0
  %614 = vmatpush1.msra.mxu0 0.0
  %615 = vmatprep.subr.mxu0 0.0
  %616 = vmatpush1.msra.mxu0 0.0
  %617 = vmatprep.subr.mxu0 0.0
  %618 = vmatpush1.msra.mxu0 0.0
  %619 = vmatprep.subr.mxu0 0.0
  %620 = vmatpush1.msra.mxu0 0.0
  %621 = vmatprep.subr.mxu0 0.0
  %622 = vmatpush1.msra.mxu0 0.0
  %623 = vmatprep.subr.mxu0 0.0
  %624 = vmatpush1.msra.mxu0 0.0
  %625 = vmatprep.subr.mxu0 0.0
  %626 = vmatpush1.msra.mxu0 0.0
  %627 = vmatprep.subr.mxu0 0.0
  %628 = vmatpush1.msra.mxu0 0.0
  %629 = vmatprep.subr.mxu0 0.0
  %630 = vmatpush1.msra.mxu0 0.0
  %631 = vmatprep.subr.mxu0 0.0
  %632 = vmatpush1.msra.mxu0 0.0
  %633 = vmatprep.subr.mxu0 0.0
  %634 = vmatpush1.msra.mxu0 0.0
  %635 = vmatprep.subr.mxu0 0.0
  %636 = vmatpush1.msra.mxu0 0.0
  %637 = vmatprep.subr.mxu0 0.0
  %638 = vmatpush1.msra.mxu0 0.0
  %639 = vmatprep.subr.mxu0 0.0
  %640 = vmatpush1.msra.mxu0 0.0
  %641 = vmatprep.subr.mxu0 0.0
  %642 = vmatpush1.msra.mxu0 0.0
  %643 = vmatprep.subr.mxu0 0.0
  %644 = vmatpush1.msra.mxu0 0.0
  %645 = vmatprep.subr.mxu0 0.0
  %646 = vmatpush1.msra.mxu0 0.0
  %647 = vmatprep.subr.mxu0 0.0
  %648 = vmatpush1.msra.mxu0 0.0
  %649 = vmatprep.subr.mxu0 0.0
  %650 = vmatpush1.msra.mxu0 0.0
  %651 = vmatprep.subr.mxu0 0.0
  %652 = vmatpush1.msra.mxu0 0.0
  %653 = vmatprep.subr.mxu0 0.0
  %654 = vmatpush1.msra.mxu0 0.0
  %655 = vmatprep.subr.mxu0 0.0
  %656 = vmatpush1.msra.mxu0 0.0
  %657 = vmatprep.subr.mxu0 0.0
  %658 = vmatpush1.msra.mxu0 0.0
  %659 = vmatprep.subr.mxu0 0.0
  %660 = vmatpush1.msra.mxu0 0.0
  %661 = vmatprep.subr.mxu0 0.0
  %662 = vmatpush1.msra.mxu0 0.0
  %663 = vmatprep.subr.mxu0 0.0
  %664 = vmatpush1.msra.mxu0 0.0
  %665 = vmatprep.mubr.f32.mxu0 0.0
  %666 = vmatmul.mubr.f32.gmra.mrb[0].mxu0 %v590
  %v667 = vpop.f32.mrb[0].mxu0
  %v668 = vadd.f32 0.0, %v667
  %v669 = vpop.f32.mrb[0].mxu0
  %v670 = vadd.f32 0.0, %v669
  %671 = vmatprep.mubr.f32.mxu0 0.0
  %672 = vmatmul.mubr.f32.gmra.mrb[0].mxu0 %v593
  %v673 = vpop.f32.mrb[0].mxu0
  %v674 = vadd.f32 0.0, %v673
  %v675 = vpop.f32.mrb[0].mxu0
  %v676 = vadd.f32 0.0, %v675
  %677 = vmatprep.mubr.f32.mxu0 0.0
  %678 = vmatmul.mubr.f32.gmra.mrb[0].mxu0 %v596
  %v679 = vpop.f32.mrb[0].mxu0
  %v680 = vadd.f32 0.0, %v679
  %v681 = vpop.f32.mrb[0].mxu0
  %v682 = vadd.f32 0.0, %v681
  %683 = vmatprep.mubr.f32.mxu0 0.0
  %684 = vmatmul.mubr.f32.gmra.mrb[0].mxu0 %v599
  %v685 = vpop.f32.mrb[0].mxu0
  %v686 = vadd.f32 0.0, %v685
  %v687 = vpop.f32.mrb[0].mxu0
  %v688 = vadd.f32 0.0, %v687
  %689 = vdwg.mxu0
  %690 = vmatprep.subr.mxu0 %v116
  %691 = vmatpush1.msra.mxu0 %v115
  %692 = vmatprep.subr.mxu0 0.0
  %693 = vmatpush1.msra.mxu0 0.0
  %694 = vmatprep.subr.mxu0 0.0
  %695 = vmatpush1.msra.mxu0 0.0
  %696 = vmatprep.subr.mxu0 0.0
  %697 = vmatpush1.msra.mxu0 0.0
  %698 = vmatprep.subr.mxu0 0.0
  %699 = vmatpush1.msra.mxu0 0.0
  %700 = vmatprep.subr.mxu0 0.0
  %701 = vmatpush1.msra.mxu0 0.0
  %702 = vmatprep.subr.mxu0 0.0
  %703 = vmatpush1.msra.mxu0 0.0
  %704 = vmatprep.subr.mxu0 0.0
  %705 = vmatpush1.msra.mxu0 0.0
  %706 = vmatprep.subr.mxu0 0.0
  %707 = vmatpush1.msra.mxu0 0.0
  %708 = vmatprep.subr.mxu0 0.0
  %709 = vmatpush1.msra.mxu0 0.0
  %710 = vmatprep.subr.mxu0 0.0
  %711 = vmatpush1.msra.mxu0 0.0
  %712 = vmatprep.subr.mxu0 0.0
  %713 = vmatpush1.msra.mxu0 0.0
  %714 = vmatprep.subr.mxu0 0.0
  %715 = vmatpush1.msra.mxu0 0.0
  %716 = vmatprep.subr.mxu0 0.0
  %717 = vmatpush1.msra.mxu0 0.0
  %718 = vmatprep.subr.mxu0 0.0
  %719 = vmatpush1.msra.mxu0 0.0
  %720 = vmatprep.subr.mxu0 0.0
  %721 = vmatpush1.msra.mxu0 0.0
  %722 = vmatprep.subr.mxu0 0.0
  %723 = vmatpush1.msra.mxu0 0.0
  %724 = vmatprep.subr.mxu0 0.0
  %725 = vmatpush1.msra.mxu0 0.0
  %726 = vmatprep.subr.mxu0 0.0
  %727 = vmatpush1.msra.mxu0 0.0
  %728 = vmatprep.subr.mxu0 0.0
  %729 = vmatpush1.msra.mxu0 0.0
  %730 = vmatprep.subr.mxu0 0.0
  %731 = vmatpush1.msra.mxu0 0.0
  %732 = vmatprep.subr.mxu0 0.0
  %733 = vmatpush1.msra.mxu0 0.0
  %734 = vmatprep.subr.mxu0 0.0
  %735 = vmatpush1.msra.mxu0 0.0
  %736 = vmatprep.subr.mxu0 0.0
  %737 = vmatpush1.msra.mxu0 0.0
  %738 = vmatprep.subr.mxu0 0.0
  %739 = vmatpush1.msra.mxu0 0.0
  %740 = vmatprep.subr.mxu0 0.0
  %741 = vmatpush1.msra.mxu0 0.0
  %742 = vmatprep.subr.mxu0 0.0
  %743 = vmatpush1.msra.mxu0 0.0
  %744 = vmatprep.subr.mxu0 0.0
  %745 = vmatpush1.msra.mxu0 0.0
  %746 = vmatprep.subr.mxu0 0.0
  %747 = vmatpush1.msra.mxu0 0.0
  %748 = vmatprep.subr.mxu0 0.0
  %749 = vmatpush1.msra.mxu0 0.0
  %750 = vmatprep.subr.mxu0 0.0
  %751 = vmatpush1.msra.mxu0 0.0
  %752 = vmatprep.subr.mxu0 0.0
  %753 = vmatpush1.msra.mxu0 0.0
  %754 = vmatprep.mubr.f32.mxu0 0.0
  %755 = vmatmul.mubr.f32.gmra.mrb[0].mxu0 %v590
  %v756 = vpop.f32.mrb[0].mxu0
  %v757 = vadd.f32 0.0, %v756
  %v758 = vpop.f32.mrb[0].mxu0
  %v759 = vadd.f32 0.0, %v758
  %760 = vmatprep.mubr.f32.mxu0 0.0
  %761 = vmatmul.mubr.f32.gmra.mrb[0].mxu0 %v593
  %v762 = vpop.f32.mrb[0].mxu0
  %v763 = vadd.f32 0.0, %v762
  %v764 = vpop.f32.mrb[0].mxu0
  %v765 = vadd.f32 0.0, %v764
  %766 = vmatprep.mubr.f32.mxu0 0.0
  %767 = vmatmul.mubr.f32.gmra.mrb[0].mxu0 %v596
  %v768 = vpop.f32.mrb[0].mxu0
  %v769 = vadd.f32 0.0, %v768
  %v770 = vpop.f32.mrb[0].mxu0
  %v771 = vadd.f32 0.0, %v770
  %772 = vmatprep.mubr.f32.mxu0 0.0
  %773 = vmatmul.mubr.f32.gmra.mrb[0].mxu0 %v599
  %v774 = vpop.f32.mrb[0].mxu0
  %v775 = vadd.f32 0.0, %v774
  %v776 = vpop.f32.mrb[0].mxu0
  %v777 = vadd.f32 0.0, %v776
  %778 = vdwg.mxu0
  %v779 = vadd.f32 %v473, %v668
  %v780 = vadd.f32 %v475, %v670
  %v781 = vadd.f32 %v562, %v757
  %v782 = vadd.f32 %v564, %v759
  %v783 = vadd.f32 %v479, %v674
  %v784 = vadd.f32 %v481, %v676
  %v785 = vadd.f32 %v568, %v763
  %v786 = vadd.f32 %v570, %v765
  %v787 = vadd.f32 %v485, %v680
  %v788 = vadd.f32 %v487, %v682
  %v789 = vadd.f32 %v574, %v769
  %v790 = vadd.f32 %v576, %v771
  %v791 = vadd.f32 %v491, %v686
  %v792 = vadd.f32 %v493, %v688
  %v793 = vadd.f32 %v580, %v775
  %v794 = vadd.f32 %v582, %v777
  %s795 = scalar_lea.vmem %s5, 96
  %v796 = vld [vmem:[%s795] sm:$0xff]
  %v797 = vld [vmem:[%s795 + $0x8] sm:$0xff]
  %v798 = vld [vmem:[%s795 + $0x10] sm:$0xff]
  %v799 = vld [vmem:[%s795 + $0x18] sm:$0xff]
  %v801 = vsel %vm203, %v796, 0
  %v804 = vsel %vm203, %v797, 0
  %v807 = vsel %vm203, %v798, 0
  %v810 = vsel %vm203, %v799, 0
  %812 = vmatprep.subr.mxu0 %v191
  %813 = vmatpush1.msra.mxu0 %v190
  %814 = vmatprep.subr.mxu0 0.0
  %815 = vmatpush1.msra.mxu0 0.0
  %816 = vmatprep.subr.mxu0 0.0
  %817 = vmatpush1.msra.mxu0 0.0
  %818 = vmatprep.subr.mxu0 0.0
  %819 = vmatpush1.msra.mxu0 0.0
  %820 = vmatprep.subr.mxu0 0.0
  %821 = vmatpush1.msra.mxu0 0.0
  %822 = vmatprep.subr.mxu0 0.0
  %823 = vmatpush1.msra.mxu0 0.0
  %824 = vmatprep.subr.mxu0 0.0
  %825 = vmatpush1.msra.mxu0 0.0
  %826 = vmatprep.subr.mxu0 0.0
  %827 = vmatpush1.msra.mxu0 0.0
  %828 = vmatprep.subr.mxu0 0.0
  %829 = vmatpush1.msra.mxu0 0.0
  %830 = vmatprep.subr.mxu0 0.0
  %831 = vmatpush1.msra.mxu0 0.0
  %832 = vmatprep.subr.mxu0 0.0
  %833 = vmatpush1.msra.mxu0 0.0
  %834 = vmatprep.subr.mxu0 0.0
  %835 = vmatpush1.msra.mxu0 0.0
  %836 = vmatprep.subr.mxu0 0.0
  %837 = vmatpush1.msra.mxu0 0.0
  %838 = vmatprep.subr.mxu0 0.0
  %839 = vmatpush1.msra.mxu0 0.0
  %840 = vmatprep.subr.mxu0 0.0
  %841 = vmatpush1.msra.mxu0 0.0
  %842 = vmatprep.subr.mxu0 0.0
  %843 = vmatpush1.msra.mxu0 0.0
  %844 = vmatprep.subr.mxu0 0.0
  %845 = vmatpush1.msra.mxu0 0.0
  %846 = vmatprep.subr.mxu0 0.0
  %847 = vmatpush1.msra.mxu0 0.0
  %848 = vmatprep.subr.mxu0 0.0
  %849 = vmatpush1.msra.mxu0 0.0
  %850 = vmatprep.subr.mxu0 0.0
  %851 = vmatpush1.msra.mxu0 0.0
  %852 = vmatprep.subr.mxu0 0.0
  %853 = vmatpush1.msra.mxu0 0.0
  %854 = vmatprep.subr.mxu0 0.0
  %855 = vmatpush1.msra.mxu0 0.0
  %856 = vmatprep.subr.mxu0 0.0
  %857 = vmatpush1.msra.mxu0 0.0
  %858 = vmatprep.subr.mxu0 0.0
  %859 = vmatpush1.msra.mxu0 0.0
  %860 = vmatprep.subr.mxu0 0.0
  %861 = vmatpush1.msra.mxu0 0.0
  %862 = vmatprep.subr.mxu0 0.0
  %863 = vmatpush1.msra.mxu0 0.0
  %864 = vmatprep.subr.mxu0 0.0
  %865 = vmatpush1.msra.mxu0 0.0
  %866 = vmatprep.subr.mxu0 0.0
  %867 = vmatpush1.msra.mxu0 0.0
  %868 = vmatprep.subr.mxu0 0.0
  %869 = vmatpush1.msra.mxu0 0.0
  %870 = vmatprep.subr.mxu0 0.0
  %871 = vmatpush1.msra.mxu0 0.0
  %872 = vmatprep.subr.mxu0 0.0
  %873 = vmatpush1.msra.mxu0 0.0
  %874 = vmatprep.subr.mxu0 0.0
  %875 = vmatpush1.msra.mxu0 0.0
  %876 = vmatprep.mubr.f32.mxu0 0.0
  %877 = vmatmul.mubr.f32.gmra.mrb[0].mxu0 %v801
  %v878 = vpop.f32.mrb[0].mxu0
  %v879 = vadd.f32 0.0, %v878
  %v880 = vpop.f32.mrb[0].mxu0
  %v881 = vadd.f32 0.0, %v880
  %882 = vmatprep.mubr.f32.mxu0 0.0
  %883 = vmatmul.mubr.f32.gmra.mrb[0].mxu0 %v804
  %v884 = vpop.f32.mrb[0].mxu0
  %v885 = vadd.f32 0.0, %v884
  %v886 = vpop.f32.mrb[0].mxu0
  %v887 = vadd.f32 0.0, %v886
  %888 = vmatprep.mubr.f32.mxu0 0.0
  %889 = vmatmul.mubr.f32.gmra.mrb[0].mxu0 %v807
  %v890 = vpop.f32.mrb[0].mxu0
  %v891 = vadd.f32 0.0, %v890
  %v892 = vpop.f32.mrb[0].mxu0
  %v893 = vadd.f32 0.0, %v892
  %894 = vmatprep.mubr.f32.mxu0 0.0
  %895 = vmatmul.mubr.f32.gmra.mrb[0].mxu0 %v810
  %v896 = vpop.f32.mrb[0].mxu0
  %v897 = vadd.f32 0.0, %v896
  %v898 = vpop.f32.mrb[0].mxu0
  %v899 = vadd.f32 0.0, %v898
  %900 = vdwg.mxu0
  %901 = vmatprep.subr.mxu0 %v193
  %902 = vmatpush1.msra.mxu0 %v192
  %903 = vmatprep.subr.mxu0 0.0
  %904 = vmatpush1.msra.mxu0 0.0
  %905 = vmatprep.subr.mxu0 0.0
  %906 = vmatpush1.msra.mxu0 0.0
  %907 = vmatprep.subr.mxu0 0.0
  %908 = vmatpush1.msra.mxu0 0.0
  %909 = vmatprep.subr.mxu0 0.0
  %910 = vmatpush1.msra.mxu0 0.0
  %911 = vmatprep.subr.mxu0 0.0
  %912 = vmatpush1.msra.mxu0 0.0
  %913 = vmatprep.subr.mxu0 0.0
  %914 = vmatpush1.msra.mxu0 0.0
  %915 = vmatprep.subr.mxu0 0.0
  %916 = vmatpush1.msra.mxu0 0.0
  %917 = vmatprep.subr.mxu0 0.0
  %918 = vmatpush1.msra.mxu0 0.0
  %919 = vmatprep.subr.mxu0 0.0
  %920 = vmatpush1.msra.mxu0 0.0
  %921 = vmatprep.subr.mxu0 0.0
  %922 = vmatpush1.msra.mxu0 0.0
  %923 = vmatprep.subr.mxu0 0.0
  %924 = vmatpush1.msra.mxu0 0.0
  %925 = vmatprep.subr.mxu0 0.0
  %926 = vmatpush1.msra.mxu0 0.0
  %927 = vmatprep.subr.mxu0 0.0
  %928 = vmatpush1.msra.mxu0 0.0
  %929 = vmatprep.subr.mxu0 0.0
  %930 = vmatpush1.msra.mxu0 0.0
  %931 = vmatprep.subr.mxu0 0.0
  %932 = vmatpush1.msra.mxu0 0.0
  %933 = vmatprep.subr.mxu0 0.0
  %934 = vmatpush1.msra.mxu0 0.0
  %935 = vmatprep.subr.mxu0 0.0
  %936 = vmatpush1.msra.mxu0 0.0
  %937 = vmatprep.subr.mxu0 0.0
  %938 = vmatpush1.msra.mxu0 0.0
  %939 = vmatprep.subr.mxu0 0.0
  %940 = vmatpush1.msra.mxu0 0.0
  %941 = vmatprep.subr.mxu0 0.0
  %942 = vmatpush1.msra.mxu0 0.0
  %943 = vmatprep.subr.mxu0 0.0
  %944 = vmatpush1.msra.mxu0 0.0
  %945 = vmatprep.subr.mxu0 0.0
  %946 = vmatpush1.msra.mxu0 0.0
  %947 = vmatprep.subr.mxu0 0.0
  %948 = vmatpush1.msra.mxu0 0.0
  %949 = vmatprep.subr.mxu0 0.0
  %950 = vmatpush1.msra.mxu0 0.0
  %951 = vmatprep.subr.mxu0 0.0
  %952 = vmatpush1.msra.mxu0 0.0
  %953 = vmatprep.subr.mxu0 0.0
  %954 = vmatpush1.msra.mxu0 0.0
  %955 = vmatprep.subr.mxu0 0.0
  %956 = vmatpush1.msra.mxu0 0.0
  %957 = vmatprep.subr.mxu0 0.0
  %958 = vmatpush1.msra.mxu0 0.0
  %959 = vmatprep.subr.mxu0 0.0
  %960 = vmatpush1.msra.mxu0 0.0
  %961 = vmatprep.subr.mxu0 0.0
  %962 = vmatpush1.msra.mxu0 0.0
  %963 = vmatprep.subr.mxu0 0.0
  %964 = vmatpush1.msra.mxu0 0.0
  %965 = vmatprep.mubr.f32.mxu0 0.0
  %966 = vmatmul.mubr.f32.gmra.mrb[0].mxu0 %v801
  %v967 = vpop.f32.mrb[0].mxu0
  %v968 = vadd.f32 0.0, %v967
  %v969 = vpop.f32.mrb[0].mxu0
  %v970 = vadd.f32 0.0, %v969
  %971 = vmatprep.mubr.f32.mxu0 0.0
  %972 = vmatmul.mubr.f32.gmra.mrb[0].mxu0 %v804
  %v973 = vpop.f32.mrb[0].mxu0
  %v974 = vadd.f32 0.0, %v973
  %v975 = vpop.f32.mrb[0].mxu0
  %v976 = vadd.f32 0.0, %v975
  %977 = vmatprep.mubr.f32.mxu0 0.0
  %978 = vmatmul.mubr.f32.gmra.mrb[0].mxu0 %v807
  %v979 = vpop.f32.mrb[0].mxu0
  %v980 = vadd.f32 0.0, %v979
  %v981 = vpop.f32.mrb[0].mxu0
  %v982 = vadd.f32 0.0, %v981
  %983 = vmatprep.mubr.f32.mxu0 0.0
  %984 = vmatmul.mubr.f32.gmra.mrb[0].mxu0 %v810
  %v985 = vpop.f32.mrb[0].mxu0
  %v986 = vadd.f32 0.0, %v985
  %v987 = vpop.f32.mrb[0].mxu0
  %v988 = vadd.f32 0.0, %v987
  %989 = vdwg.mxu0
  %v990 = vadd.f32 %v779, %v879
  %v991 = vadd.f32 %v780, %v881
  %v992 = vadd.f32 %v781, %v968
  %v993 = vadd.f32 %v782, %v970
  %v994 = vadd.f32 %v783, %v885
  %v995 = vadd.f32 %v784, %v887
  %v996 = vadd.f32 %v785, %v974
  %v997 = vadd.f32 %v786, %v976
  %v998 = vadd.f32 %v787, %v891
  %v999 = vadd.f32 %v788, %v893
  %v1000 = vadd.f32 %v789, %v980
  %v1001 = vadd.f32 %v790, %v982
  %v1002 = vadd.f32 %v791, %v897
  %v1003 = vadd.f32 %v792, %v899
  %v1004 = vadd.f32 %v793, %v986
  %v1005 = vadd.f32 %v794, %v988
  %p1006 = scmp.eq.s32.totalorder 0, 0
  // Predicated region
  $region26: #{decoder_block_pallas.4} parent=0 // pred_check
    %p1007 = pneg %p1006
  $region27: #{decoder_block_pallas.4} parent=0 // pred_check_branch
    %1009 = sbr.rel (%p1007) target = $region29
  $region28: #{decoder_block_pallas.4} parent=0 // pred_region
    %1010 = vst [vmem:[%s6] sm:$0xff] 0.0
    %1011 = vst [vmem:[%s6 + $0x8] sm:$0xff] 0.0
    %1012 = vst [vmem:[%s6 + $0x10] sm:$0xff] 0.0
    %1013 = vst [vmem:[%s6 + $0x18] sm:$0xff] 0.0
    %1014 = vst [vmem:[%s6 + $0x20] sm:$0xff] 0.0
    %1015 = vst [vmem:[%s6 + $0x28] sm:$0xff] 0.0
    %1016 = vst [vmem:[%s6 + $0x30] sm:$0xff] 0.0
    %1017 = vst [vmem:[%s6 + $0x38] sm:$0xff] 0.0
  $region29: #{decoder_block_pallas.4} parent=0 // pred_fallthru
    _
  %v1018 = vld [vmem:[%s6] sm:$0xff]
  %v1019 = vld [vmem:[%s6 + $0x8] sm:$0xff]
  %v1020 = vld [vmem:[%s6 + $0x10] sm:$0xff]
  %v1021 = vld [vmem:[%s6 + $0x18] sm:$0xff]
  %v1022 = vadd.f32 %v990, %v991
  %v1023 = vadd.f32 %v1022, %v992
  %v1024 = vadd.f32 %v1023, %v993
  %1025 = vadd.xlane.f32.xlu0 %v1024
  %v1026 = vpop.xlane.xlu0 %1025
  %v1027 = vadd.f32 %v994, %v995
  %v1028 = vadd.f32 %v1027, %v996
  %v1029 = vadd.f32 %v1028, %v997
  %1030 = vadd.xlane.f32.xlu0 %v1029
  %v1031 = vpop.xlane.xlu0 %1030
  %v1032 = vadd.f32 %v998, %v999
  %v1033 = vadd.f32 %v1032, %v1000
  %v1034 = vadd.f32 %v1033, %v1001
  %1035 = vadd.xlane.f32.xlu0 %v1034
  %v1036 = vpop.xlane.xlu0 %1035
  %v1037 = vadd.f32 %v1002, %v1003
  %v1038 = vadd.f32 %v1037, %v1004
  %v1039 = vadd.f32 %v1038, %v1005
  %1040 = vadd.xlane.f32.xlu0 %v1039
  %v1041 = vpop.xlane.xlu0 %1040
  %v1042 = vadd.f32 %v1018, %v1026
  %v1043 = vadd.f32 %v1019, %v1031
  %v1044 = vadd.f32 %v1020, %v1036
  %v1045 = vadd.f32 %v1021, %v1041
  %1046 = vst [vmem:[%s6] sm:$0xff] %v1042
  %1047 = vst [vmem:[%s6 + $0x8] sm:$0xff] %v1043
  %1048 = vst [vmem:[%s6 + $0x10] sm:$0xff] %v1044
  %1049 = vst [vmem:[%s6 + $0x18] sm:$0xff] %v1045
  %s1050 = scalar_lea.vmem %s6, 32
  %v1051 = vld [vmem:[%s1050] sm:$0xff]
  %v1052 = vld [vmem:[%s1050 + $0x8] sm:$0xff]
  %v1053 = vld [vmem:[%s1050 + $0x10] sm:$0xff]
  %v1054 = vld [vmem:[%s1050 + $0x18] sm:$0xff]
  %v1055 = vmul.f32 %v990, %v990
  %v1056 = vmul.f32 %v991, %v991
  %v1057 = vmul.f32 %v992, %v992
  %v1058 = vmul.f32 %v993, %v993
  %v1059 = vmul.f32 %v994, %v994
  %v1060 = vmul.f32 %v995, %v995
  %v1061 = vmul.f32 %v996, %v996
  %v1062 = vmul.f32 %v997, %v997
  %v1063 = vmul.f32 %v998, %v998
  %v1064 = vmul.f32 %v999, %v999
  %v1065 = vmul.f32 %v1000, %v1000
  %v1066 = vmul.f32 %v1001, %v1001
  %v1067 = vmul.f32 %v1002, %v1002
  %v1068 = vmul.f32 %v1003, %v1003
  %v1069 = vmul.f32 %v1004, %v1004
  %v1070 = vmul.f32 %v1005, %v1005
  %v1071 = vadd.f32 %v1055, %v1056
  %v1072 = vadd.f32 %v1071, %v1057
  %v1073 = vadd.f32 %v1072, %v1058
  %1074 = vadd.xlane.f32.xlu0 %v1073
  %v1075 = vpop.xlane.xlu0 %1074
  %v1076 = vadd.f32 %v1059, %v1060
  %v1077 = vadd.f32 %v1076, %v1061
  %v1078 = vadd.f32 %v1077, %v1062
  %1079 = vadd.xlane.f32.xlu0 %v1078
  %v1080 = vpop.xlane.xlu0 %1079
  %v1081 = vadd.f32 %v1063, %v1064
  %v1082 = vadd.f32 %v1081, %v1065
  %v1083 = vadd.f32 %v1082, %v1066
  %1084 = vadd.xlane.f32.xlu0 %v1083
  %v1085 = vpop.xlane.xlu0 %1084
  %v1086 = vadd.f32 %v1067, %v1068
  %v1087 = vadd.f32 %v1086, %v1069
  %v1088 = vadd.f32 %v1087, %v1070
  %1089 = vadd.xlane.f32.xlu0 %v1088
  %v1090 = vpop.xlane.xlu0 %1089
  %v1091 = vadd.f32 %v1051, %v1075
  %v1092 = vadd.f32 %v1052, %v1080
  %v1093 = vadd.f32 %v1053, %v1085
  %v1094 = vadd.f32 %v1054, %v1090
  %1095 = vst [vmem:[%s1050] sm:$0xff] %v1091
  %1096 = vst [vmem:[%s1050 + $0x8] sm:$0xff] %v1092
  %1097 = vst [vmem:[%s1050 + $0x10] sm:$0xff] %v1093
  %1098 = vst [vmem:[%s1050 + $0x18] sm:$0xff] %v1094
  // Predicated region
  $region30: #{decoder_block_pallas.4} parent=0 // pred_check
    _
  $region31: #{decoder_block_pallas.4} parent=0 // pred_check_branch
    %1100 = sbr.rel (0) target = $region33
  $region32: #{decoder_block_pallas.4} parent=0 // pred_region
    _
  $region33: #{decoder_block_pallas.4} parent=0 // pred_fallthru
    _
  // Predicated region
  $region34: #{decoder_block_pallas.4} parent=0 // pred_check
    _
  $region35: #{decoder_block_pallas.4} parent=0 // pred_check_branch
    %1102 = sbr.rel (0) target = $region37
  $region36: #{decoder_block_pallas.4} parent=0 // pred_region
    _
  $region37: #{decoder_block_pallas.4} parent=0 // pred_fallthru
    _

// kernel: decoder_block_pallas.5
$region0: #{decoder_block_pallas.5}
  #allocation0 [shape = 'u32[]', space=smem, size = 0x4, offset = 0x4, fixed_abs, tag = 'smem constant byte address 0x4 - core index']
  #allocation1 [shape = 'u32[144,128]{1,0:T(1,128)}', space=vmem, size = 0x12000, scoped, tag = 'internal scratch']
  %s0 = inlined_call_operand.vmem [shape: bf16[8,512], index: 0, kind: input, shape index: {}]
  %s1 = inlined_call_operand.vmem [shape: f32[8,1], index: 1, kind: input, shape index: {}]
  %s2 = inlined_call_operand.vmem [shape: f32[8,1], index: 2, kind: input, shape index: {}]
  %s3 = inlined_call_operand.vmem [shape: f32[1,512], index: 3, kind: input, shape index: {}]
  %s4 = inlined_call_operand.vmem [shape: f32[1,512], index: 4, kind: input, shape index: {}]
  %s5 = inlined_call_operand.vmem [shape: f32[4,32,8], index: 5, kind: input, shape index: {}]
  %s6 = inlined_call_operand.vmem [shape: f32[32,1], index: 6, kind: input, shape index: {}]
  %s7 = inlined_call_operand.vmem [shape: f32[32,1], index: 7, kind: input, shape index: {}]
  %s8 = inlined_call_operand.vmem [shape: f32[32,32], index: 8, kind: input, shape index: {}]
  %s9 = inlined_call_operand.vmem [shape: bf16[32,512], index: 9, kind: output, shape index: {0}]
  %s10 = inlined_call_operand.vmem [shape: f32[1,2,32,128], index: 10, kind: output, shape index: {1}]
  %11 = xla_tuple %s9, %s10
  %s12 = sld [smem:[#allocation0]]
  $region58: #{decoder_block_pallas.5} parent=0
    _
  %s14 = ssub.s32 1, %s12
  %s15 = scalar_select 0, %s14, %s12
  // Predicated region
  $region2: #{decoder_block_pallas.5} parent=0 // pred_check
    _
  $region3: #{decoder_block_pallas.5} parent=0 // pred_check_branch
    %17 = sbr.rel (0) target = $region5
  $region4: #{decoder_block_pallas.5} parent=0 // pred_region
    %s18 = sadd.s32 0, 0
    %s19 = smul.u32 4, %s18
    %p20 = scmp.lt.s32.totalorder %s19, 3
    %s21 = scalar_select %p20, %s19, 3
    %s22 = smul.addr %s21, 4
    %s23 = scalar_lea.vmem %s0, %s22
    %s24 = sadd.s32 0, 0
    %s25 = smul.u32 4, %s24
  $region5: #{decoder_block_pallas.5} parent=0 // pred_fallthru
    _
  // Predicated region
  $region6: #{decoder_block_pallas.5} parent=0 // pred_check
    _
  $region7: #{decoder_block_pallas.5} parent=0 // pred_check_branch
    %27 = sbr.rel (0) target = $region9
  $region8: #{decoder_block_pallas.5} parent=0 // pred_region
    _
  $region9: #{decoder_block_pallas.5} parent=0 // pred_fallthru
    _
  // Predicated region
  $region10: #{decoder_block_pallas.5} parent=0 // pred_check
    _
  $region11: #{decoder_block_pallas.5} parent=0 // pred_check_branch
    %29 = sbr.rel (0) target = $region13
  $region12: #{decoder_block_pallas.5} parent=0 // pred_region
    _
  $region13: #{decoder_block_pallas.5} parent=0 // pred_fallthru
    _
  // Predicated region
  $region14: #{decoder_block_pallas.5} parent=0 // pred_check
    _
  $region15: #{decoder_block_pallas.5} parent=0 // pred_check_branch
    %31 = sbr.rel (0) target = $region17
  $region16: #{decoder_block_pallas.5} parent=0 // pred_region
    _
  $region17: #{decoder_block_pallas.5} parent=0 // pred_fallthru
    _
  // Predicated region
  $region18: #{decoder_block_pallas.5} parent=0 // pred_check
    _
  $region19: #{decoder_block_pallas.5} parent=0 // pred_check_branch
    %33 = sbr.rel (0) target = $region21
  $region20: #{decoder_block_pallas.5} parent=0 // pred_region
    _
  $region21: #{decoder_block_pallas.5} parent=0 // pred_fallthru
    _
  // Predicated region
  $region22: #{decoder_block_pallas.5} parent=0 // pred_check
    _
  $region23: #{decoder_block_pallas.5} parent=0 // pred_check_branch
    %35 = sbr.rel (0) target = $region25
  $region24: #{decoder_block_pallas.5} parent=0 // pred_region
    _
  $region25: #{decoder_block_pallas.5} parent=0 // pred_fallthru
    _
  // Predicated region
  $region26: #{decoder_block_pallas.5} parent=0 // pred_check
    _
  $region27: #{decoder_block_pallas.5} parent=0 // pred_check_branch
    %37 = sbr.rel (0) target = $region29
  $region28: #{decoder_block_pallas.5} parent=0 // pred_region
    _
  $region29: #{decoder_block_pallas.5} parent=0 // pred_fallthru
    _
  // Predicated region
  $region30: #{decoder_block_pallas.5} parent=0 // pred_check
    _
  $region31: #{decoder_block_pallas.5} parent=0 // pred_check_branch
    %39 = sbr.rel (0) target = $region33
  $region32: #{decoder_block_pallas.5} parent=0 // pred_region
    _
  $region33: #{decoder_block_pallas.5} parent=0 // pred_fallthru
    _
  // Predicated region
  $region34: #{decoder_block_pallas.5} parent=0 // pred_check
    _
  $region35: #{decoder_block_pallas.5} parent=0 // pred_check_branch
    %41 = sbr.rel (0) target = $region37
  $region36: #{decoder_block_pallas.5} parent=0 // pred_region
    _
  $region37: #{decoder_block_pallas.5} parent=0 // pred_fallthru
    _
  %s42 = sadd.s32 0, 0
  %s43 = smul.u32 4, %s42
  %p44 = scmp.lt.s32.totalorder %s43, 3
  %s45 = scalar_select %p44, %s43, 3
  %s46 = smul.addr %s45, 4
  %s47 = scalar_lea.vmem %s0, %s46
  %s48 = sadd.s32 0, 0
  %s49 = smul.u32 4, %s48
  %p50 = scmp.lt.s32.totalorder %s49, 3
  %s51 = scalar_select %p50, %s49, 3
  %s52 = smul.addr %s51, 4
  %s53 = scalar_lea.vmem %s9, %s52
  %s54 = sadd.s32 0, 0
  %s55 = smul.u32 4, %s54
  %p56 = scmp.lt.s32.totalorder %s55, 3
  %s57 = scalar_select %p56, %s55, 3
  %s58 = smul.addr %s57, 4
  %s59 = scalar_lea.vmem %s0, %s58
  %s60 = sadd.s32 0, 0
  %s61 = smul.u32 4, %s60
  %s62 = sadd.s32 0, 0
  %s63 = smul.u32 4, %s62
  %p64 = scmp.lt.s32.totalorder %s63, 3
  %s65 = scalar_select %p64, %s63, 3
  %s66 = smul.addr %s65, 4
  %s67 = scalar_lea.vmem %s9, %s66
  %s68 = sadd.s32 0, 0
  %s69 = smul.u32 4, %s68
  %v70 = vld [vmem:[%s59] sm:$0xff]
  %v71 = vld [vmem:[%s59 + $0x8] sm:$0xff]
  %v72 = vld [vmem:[%s1] sm:$0xff]
  %v73 = vld [vmem:[%s2] sm:$0xff]
  %v74 = vunpack.c.l.bf16 %v70
  %v75 = vunpack.c.h.bf16 %v70
  %v76 = vunpack.c.l.bf16 %v71
  %v77 = vunpack.c.h.bf16 %v71
  %79 = vset.pattern.permute.xlu0 0
  %80 = vperm.xlu0 %79, %v72
  %v81 = vpop.permute.xlu0 %80
  %v83 = vmul.f32 %v74, %v81
  %v84 = vmul.f32 %v75, %v81
  %v85 = vmul.f32 %v76, %v81
  %v86 = vmul.f32 %v77, %v81
  %88 = vset.pattern.permute.xlu0 0
  %89 = vperm.xlu0 %88, %v73
  %v90 = vpop.permute.xlu0 %89
  %v92 = vadd.f32 %v83, %v90
  %v93 = vadd.f32 %v84, %v90
  %v94 = vadd.f32 %v85, %v90
  %v95 = vadd.f32 %v86, %v90
  %v96 = vmax.f32 %v92, 0.0
  %v97 = vmax.f32 %v93, 0.0
  %v98 = vmax.f32 %v94, 0.0
  %v99 = vmax.f32 %v95, 0.0
  %v100 = vld [vmem:[%s3] sm:$0xf]
  %v101 = vld [vmem:[%s4] sm:$0xf]
  %102 = vrot.lane.b32.xlu0 %v96, 127
  %v103 = vpop.permute.xlu0 %102
  %104 = vrot.lane.b32.xlu0 %v97, 127
  %v105 = vpop.permute.xlu0 %104
  %106 = vrot.lane.b32.xlu0 %v98, 127
  %v107 = vpop.permute.xlu0 %106
  %108 = vrot.lane.b32.xlu0 %v99, 127
  %v109 = vpop.permute.xlu0 %108
  %v110 = vlaneseq
  %v111 = vand.u32 %v110, 127
  %vm112 = vcmp.lt.s32.totalorder %v111, 127
  %v113 = vsel %vm112, %v107, %v109
  %v114 = vsel %vm112, %v105, %v107
  %v115 = vsel %vm112, %v103, %v105
  %v116 = vsel %vm112, %v109, %v103
  %v118 = vlaneseq
  %v119 = vshrl.u32 %v118, 7
  %v120 = vsub.s32 0, %v119
  %v121 = vrot.slane %v100, %v120
  %v122 = vlaneseq
  %v123 = vshrl.u32 %v122, 7
  %v124 = vsub.s32 1, %v123
  %v125 = vrot.slane %v100, %v124
  %v126 = vlaneseq
  %v127 = vshrl.u32 %v126, 7
  %v128 = vsub.s32 2, %v127
  %v129 = vrot.slane %v100, %v128
  %v130 = vlaneseq
  %v131 = vshrl.u32 %v130, 7
  %v132 = vsub.s32 3, %v131
  %v133 = vrot.slane %v100, %v132
  %v138 = vmul.f32 %v115, %v121
  %v139 = vmul.f32 %v114, %v125
  %v140 = vmul.f32 %v113, %v129
  %v141 = vmul.f32 %v116, %v133
  %142 = vrot.lane.b32.xlu0 %v96, 112
  %v143 = vpop.permute.xlu0 %142
  %144 = vrot.lane.b32.xlu0 %v97, 112
  %v145 = vpop.permute.xlu0 %144
  %146 = vrot.lane.b32.xlu0 %v98, 112
  %v147 = vpop.permute.xlu0 %146
  %148 = vrot.lane.b32.xlu0 %v99, 112
  %v149 = vpop.permute.xlu0 %148
  %vm150 = vcmp.lt.s32.totalorder %v111, 112
  %v151 = vsel %vm150, %v147, %v149
  %v152 = vsel %vm150, %v145, %v147
  %v153 = vsel %vm150, %v143, %v145
  %v154 = vsel %vm150, %v149, %v143
  %v156 = vlaneseq
  %v157 = vshrl.u32 %v156, 7
  %v158 = vsub.s32 0, %v157
  %v159 = vrot.slane %v101, %v158
  %v160 = vlaneseq
  %v161 = vshrl.u32 %v160, 7
  %v162 = vsub.s32 1, %v161
  %v163 = vrot.slane %v101, %v162
  %v164 = vlaneseq
  %v165 = vshrl.u32 %v164, 7
  %v166 = vsub.s32 2, %v165
  %v167 = vrot.slane %v101, %v166
  %v168 = vlaneseq
  %v169 = vshrl.u32 %v168, 7
  %v170 = vsub.s32 3, %v169
  %v171 = vrot.slane %v101, %v170
  %v176 = vmul.f32 %v153, %v159
  %v177 = vmul.f32 %v152, %v163
  %v178 = vmul.f32 %v151, %v167
  %v179 = vmul.f32 %v154, %v171
  %180 = vrot.lane.b32.xlu0 %v96, 111
  %v181 = vpop.permute.xlu0 %180
  %182 = vrot.lane.b32.xlu0 %v97, 111
  %v183 = vpop.permute.xlu0 %182
  %184 = vrot.lane.b32.xlu0 %v98, 111
  %v185 = vpop.permute.xlu0 %184
  %186 = vrot.lane.b32.xlu0 %v99, 111
  %v187 = vpop.permute.xlu0 %186
  %vm188 = vcmp.lt.s32.totalorder %v111, 111
  %v189 = vsel %vm188, %v185, %v187
  %v190 = vsel %vm188, %v183, %v185
  %v191 = vsel %vm188, %v181, %v183
  %v192 = vsel %vm188, %v187, %v181
  %v193 = vmul.f32 %v100, %v101
  %v195 = vlaneseq
  %v196 = vshrl.u32 %v195, 7
  %v197 = vsub.s32 0, %v196
  %v198 = vrot.slane %v193, %v197
  %v199 = vlaneseq
  %v200 = vshrl.u32 %v199, 7
  %v201 = vsub.s32 1, %v200
  %v202 = vrot.slane %v193, %v201
  %v203 = vlaneseq
  %v204 = vshrl.u32 %v203, 7
  %v205 = vsub.s32 2, %v204
  %v206 = vrot.slane %v193, %v205
  %v207 = vlaneseq
  %v208 = vshrl.u32 %v207, 7
  %v209 = vsub.s32 3, %v208
  %v210 = vrot.slane %v193, %v209
  %v215 = vmul.f32 %v191, %v198
  %v216 = vmul.f32 %v190, %v202
  %v217 = vmul.f32 %v189, %v206
  %v218 = vmul.f32 %v192, %v210
  %v219 = vld [vmem:[%s5] sm:$0xff]
  %v220 = vld [vmem:[%s5 + $0x8] sm:$0xff]
  %v221 = vld [vmem:[%s5 + $0x10] sm:$0xff]
  %v222 = vld [vmem:[%s5 + $0x18] sm:$0xff]
  %s223 = scalar_lea.vmem %s5, 32
  %v224 = vld [vmem:[%s223] sm:$0xff]
  %v225 = vld [vmem:[%s223 + $0x8] sm:$0xff]
  %v226 = vld [vmem:[%s223 + $0x10] sm:$0xff]
  %v227 = vld [vmem:[%s223 + $0x18] sm:$0xff]
  %vm228 = vcmask 64512
  %v230 = vsel %vm228, %v224, 0
  %v233 = vsel %vm228, %v225, 0
  %v236 = vsel %vm228, %v226, 0
  %v239 = vsel %vm228, %v227, 0
  %241 = vmatprep.subr.mxu0 %v177
  %242 = vmatpush1.msra.mxu0 %v176
  %243 = vmatprep.subr.mxu0 0.0
  %244 = vmatpush1.msra.mxu0 0.0
  %245 = vmatprep.subr.mxu0 0.0
  %246 = vmatpush1.msra.mxu0 0.0
  %247 = vmatprep.subr.mxu0 0.0
  %248 = vmatpush1.msra.mxu0 0.0
  %249 = vmatprep.subr.mxu0 0.0
  %250 = vmatpush1.msra.mxu0 0.0
  %251 = vmatprep.subr.mxu0 0.0
  %252 = vmatpush1.msra.mxu0 0.0
  %253 = vmatprep.subr.mxu0 0.0
  %254 = vmatpush1.msra.mxu0 0.0
  %255 = vmatprep.subr.mxu0 0.0
  %256 = vmatpush1.msra.mxu0 0.0
  %257 = vmatprep.subr.mxu0 0.0
  %258 = vmatpush1.msra.mxu0 0.0
  %259 = vmatprep.subr.mxu0 0.0
  %260 = vmatpush1.msra.mxu0 0.0
  %261 = vmatprep.subr.mxu0 0.0
  %262 = vmatpush1.msra.mxu0 0.0
  %263 = vmatprep.subr.mxu0 0.0
  %264 = vmatpush1.msra.mxu0 0.0
  %265 = vmatprep.subr.mxu0 0.0
  %266 = vmatpush1.msra.mxu0 0.0
  %267 = vmatprep.subr.mxu0 0.0
  %268 = vmatpush1.msra.mxu0 0.0
  %269 = vmatprep.subr.mxu0 0.0
  %270 = vmatpush1.msra.mxu0 0.0
  %271 = vmatprep.subr.mxu0 0.0
  %272 = vmatpush1.msra.mxu0 0.0
  %273 = vmatprep.subr.mxu0 0.0
  %274 = vmatpush1.msra.mxu0 0.0
  %275 = vmatprep.subr.mxu0 0.0
  %276 = vmatpush1.msra.mxu0 0.0
  %277 = vmatprep.subr.mxu0 0.0
  %278 = vmatpush1.msra.mxu0 0.0
  %279 = vmatprep.subr.mxu0 0.0
  %280 = vmatpush1.msra.mxu0 0.0
  %281 = vmatprep.subr.mxu0 0.0
  %282 = vmatpush1.msra.mxu0 0.0
  %283 = vmatprep.subr.mxu0 0.0
  %284 = vmatpush1.msra.mxu0 0.0
  %285 = vmatprep.subr.mxu0 0.0
  %286 = vmatpush1.msra.mxu0 0.0
  %287 = vmatprep.subr.mxu0 0.0
  %288 = vmatpush1.msra.mxu0 0.0
  %289 = vmatprep.subr.mxu0 0.0
  %290 = vmatpush1.msra.mxu0 0.0
  %291 = vmatprep.subr.mxu0 0.0
  %292 = vmatpush1.msra.mxu0 0.0
  %293 = vmatprep.subr.mxu0 0.0
  %294 = vmatpush1.msra.mxu0 0.0
  %295 = vmatprep.subr.mxu0 0.0
  %296 = vmatpush1.msra.mxu0 0.0
  %297 = vmatprep.subr.mxu0 0.0
  %298 = vmatpush1.msra.mxu0 0.0
  %299 = vmatprep.subr.mxu0 0.0
  %300 = vmatpush1.msra.mxu0 0.0
  %301 = vmatprep.subr.mxu0 0.0
  %302 = vmatpush1.msra.mxu0 0.0
  %303 = vmatprep.subr.mxu0 0.0
  %304 = vmatpush1.msra.mxu0 0.0
  %305 = vmatprep.mubr.f32.mxu0 0.0
  %306 = vmatmul.mubr.f32.gmra.mrb[0].mxu0 %v230
  %v307 = vpop.f32.mrb[0].mxu0
  %v308 = vadd.f32 0.0, %v307
  %v309 = vpop.f32.mrb[0].mxu0
  %v310 = vadd.f32 0.0, %v309
  %311 = vmatprep.mubr.f32.mxu0 0.0
  %312 = vmatmul.mubr.f32.gmra.mrb[0].mxu0 %v233
  %v313 = vpop.f32.mrb[0].mxu0
  %v314 = vadd.f32 0.0, %v313
  %v315 = vpop.f32.mrb[0].mxu0
  %v316 = vadd.f32 0.0, %v315
  %317 = vmatprep.mubr.f32.mxu0 0.0
  %318 = vmatmul.mubr.f32.gmra.mrb[0].mxu0 %v236
  %v319 = vpop.f32.mrb[0].mxu0
  %v320 = vadd.f32 0.0, %v319
  %v321 = vpop.f32.mrb[0].mxu0
  %v322 = vadd.f32 0.0, %v321
  %323 = vmatprep.mubr.f32.mxu0 0.0
  %324 = vmatmul.mubr.f32.gmra.mrb[0].mxu0 %v239
  %v325 = vpop.f32.mrb[0].mxu0
  %v326 = vadd.f32 0.0, %v325
  %v327 = vpop.f32.mrb[0].mxu0
  %v328 = vadd.f32 0.0, %v327
  %329 = vdwg.mxu0
  %330 = vmatprep.subr.mxu0 %v179
  %331 = vmatpush1.msra.mxu0 %v178
  %332 = vmatprep.subr.mxu0 0.0
  %333 = vmatpush1.msra.mxu0 0.0
  %334 = vmatprep.subr.mxu0 0.0
  %335 = vmatpush1.msra.mxu0 0.0
  %336 = vmatprep.subr.mxu0 0.0
  %337 = vmatpush1.msra.mxu0 0.0
  %338 = vmatprep.subr.mxu0 0.0
  %339 = vmatpush1.msra.mxu0 0.0
  %340 = vmatprep.subr.mxu0 0.0
  %341 = vmatpush1.msra.mxu0 0.0
  %342 = vmatprep.subr.mxu0 0.0
  %343 = vmatpush1.msra.mxu0 0.0
  %344 = vmatprep.subr.mxu0 0.0
  %345 = vmatpush1.msra.mxu0 0.0
  %346 = vmatprep.subr.mxu0 0.0
  %347 = vmatpush1.msra.mxu0 0.0
  %348 = vmatprep.subr.mxu0 0.0
  %349 = vmatpush1.msra.mxu0 0.0
  %350 = vmatprep.subr.mxu0 0.0
  %351 = vmatpush1.msra.mxu0 0.0
  %352 = vmatprep.subr.mxu0 0.0
  %353 = vmatpush1.msra.mxu0 0.0
  %354 = vmatprep.subr.mxu0 0.0
  %355 = vmatpush1.msra.mxu0 0.0
  %356 = vmatprep.subr.mxu0 0.0
  %357 = vmatpush1.msra.mxu0 0.0
  %358 = vmatprep.subr.mxu0 0.0
  %359 = vmatpush1.msra.mxu0 0.0
  %360 = vmatprep.subr.mxu0 0.0
  %361 = vmatpush1.msra.mxu0 0.0
  %362 = vmatprep.subr.mxu0 0.0
  %363 = vmatpush1.msra.mxu0 0.0
  %364 = vmatprep.subr.mxu0 0.0
  %365 = vmatpush1.msra.mxu0 0.0
  %366 = vmatprep.subr.mxu0 0.0
  %367 = vmatpush1.msra.mxu0 0.0
  %368 = vmatprep.subr.mxu0 0.0
  %369 = vmatpush1.msra.mxu0 0.0
  %370 = vmatprep.subr.mxu0 0.0
  %371 = vmatpush1.msra.mxu0 0.0
  %372 = vmatprep.subr.mxu0 0.0
  %373 = vmatpush1.msra.mxu0 0.0
  %374 = vmatprep.subr.mxu0 0.0
  %375 = vmatpush1.msra.mxu0 0.0
  %376 = vmatprep.subr.mxu0 0.0
  %377 = vmatpush1.msra.mxu0 0.0
  %378 = vmatprep.subr.mxu0 0.0
  %379 = vmatpush1.msra.mxu0 0.0
  %380 = vmatprep.subr.mxu0 0.0
  %381 = vmatpush1.msra.mxu0 0.0
  %382 = vmatprep.subr.mxu0 0.0
  %383 = vmatpush1.msra.mxu0 0.0
  %384 = vmatprep.subr.mxu0 0.0
  %385 = vmatpush1.msra.mxu0 0.0
  %386 = vmatprep.subr.mxu0 0.0
  %387 = vmatpush1.msra.mxu0 0.0
  %388 = vmatprep.subr.mxu0 0.0
  %389 = vmatpush1.msra.mxu0 0.0
  %390 = vmatprep.subr.mxu0 0.0
  %391 = vmatpush1.msra.mxu0 0.0
  %392 = vmatprep.subr.mxu0 0.0
  %393 = vmatpush1.msra.mxu0 0.0
  %394 = vmatprep.mubr.f32.mxu0 0.0
  %395 = vmatmul.mubr.f32.gmra.mrb[0].mxu0 %v230
  %v396 = vpop.f32.mrb[0].mxu0
  %v397 = vadd.f32 0.0, %v396
  %v398 = vpop.f32.mrb[0].mxu0
  %v399 = vadd.f32 0.0, %v398
  %400 = vmatprep.mubr.f32.mxu0 0.0
  %401 = vmatmul.mubr.f32.gmra.mrb[0].mxu0 %v233
  %v402 = vpop.f32.mrb[0].mxu0
  %v403 = vadd.f32 0.0, %v402
  %v404 = vpop.f32.mrb[0].mxu0
  %v405 = vadd.f32 0.0, %v404
  %406 = vmatprep.mubr.f32.mxu0 0.0
  %407 = vmatmul.mubr.f32.gmra.mrb[0].mxu0 %v236
  %v408 = vpop.f32.mrb[0].mxu0
  %v409 = vadd.f32 0.0, %v408
  %v410 = vpop.f32.mrb[0].mxu0
  %v411 = vadd.f32 0.0, %v410
  %412 = vmatprep.mubr.f32.mxu0 0.0
  %413 = vmatmul.mubr.f32.gmra.mrb[0].mxu0 %v239
  %v414 = vpop.f32.mrb[0].mxu0
  %v415 = vadd.f32 0.0, %v414
  %v416 = vpop.f32.mrb[0].mxu0
  %v417 = vadd.f32 0.0, %v416
  %418 = vdwg.mxu0
  %v420 = vsel %vm228, %v219, 0
  %v423 = vsel %vm228, %v220, 0
  %v426 = vsel %vm228, %v221, 0
  %v429 = vsel %vm228, %v222, 0
  %431 = vmatprep.subr.mxu0 %v97
  %432 = vmatpush1.msra.mxu0 %v96
  %433 = vmatprep.subr.mxu0 0.0
  %434 = vmatpush1.msra.mxu0 0.0
  %435 = vmatprep.subr.mxu0 0.0
  %436 = vmatpush1.msra.mxu0 0.0
  %437 = vmatprep.subr.mxu0 0.0
  %438 = vmatpush1.msra.mxu0 0.0
  %439 = vmatprep.subr.mxu0 0.0
  %440 = vmatpush1.msra.mxu0 0.0
  %441 = vmatprep.subr.mxu0 0.0
  %442 = vmatpush1.msra.mxu0 0.0
  %443 = vmatprep.subr.mxu0 0.0
  %444 = vmatpush1.msra.mxu0 0.0
  %445 = vmatprep.subr.mxu0 0.0
  %446 = vmatpush1.msra.mxu0 0.0
  %447 = vmatprep.subr.mxu0 0.0
  %448 = vmatpush1.msra.mxu0 0.0
  %449 = vmatprep.subr.mxu0 0.0
  %450 = vmatpush1.msra.mxu0 0.0
  %451 = vmatprep.subr.mxu0 0.0
  %452 = vmatpush1.msra.mxu0 0.0
  %453 = vmatprep.subr.mxu0 0.0
  %454 = vmatpush1.msra.mxu0 0.0
  %455 = vmatprep.subr.mxu0 0.0
  %456 = vmatpush1.msra.mxu0 0.0
  %457 = vmatprep.subr.mxu0 0.0
  %458 = vmatpush1.msra.mxu0 0.0
  %459 = vmatprep.subr.mxu0 0.0
  %460 = vmatpush1.msra.mxu0 0.0
  %461 = vmatprep.subr.mxu0 0.0
  %462 = vmatpush1.msra.mxu0 0.0
  %463 = vmatprep.subr.mxu0 0.0
  %464 = vmatpush1.msra.mxu0 0.0
  %465 = vmatprep.subr.mxu0 0.0
  %466 = vmatpush1.msra.mxu0 0.0
  %467 = vmatprep.subr.mxu0 0.0
  %468 = vmatpush1.msra.mxu0 0.0
  %469 = vmatprep.subr.mxu0 0.0
  %470 = vmatpush1.msra.mxu0 0.0
  %471 = vmatprep.subr.mxu0 0.0
  %472 = vmatpush1.msra.mxu0 0.0
  %473 = vmatprep.subr.mxu0 0.0
  %474 = vmatpush1.msra.mxu0 0.0
  %475 = vmatprep.subr.mxu0 0.0
  %476 = vmatpush1.msra.mxu0 0.0
  %477 = vmatprep.subr.mxu0 0.0
  %478 = vmatpush1.msra.mxu0 0.0
  %479 = vmatprep.subr.mxu0 0.0
  %480 = vmatpush1.msra.mxu0 0.0
  %481 = vmatprep.subr.mxu0 0.0
  %482 = vmatpush1.msra.mxu0 0.0
  %483 = vmatprep.subr.mxu0 0.0
  %484 = vmatpush1.msra.mxu0 0.0
  %485 = vmatprep.subr.mxu0 0.0
  %486 = vmatpush1.msra.mxu0 0.0
  %487 = vmatprep.subr.mxu0 0.0
  %488 = vmatpush1.msra.mxu0 0.0
  %489 = vmatprep.subr.mxu0 0.0
  %490 = vmatpush1.msra.mxu0 0.0
  %491 = vmatprep.subr.mxu0 0.0
  %492 = vmatpush1.msra.mxu0 0.0
  %493 = vmatprep.subr.mxu0 0.0
  %494 = vmatpush1.msra.mxu0 0.0
  %495 = vmatprep.mubr.f32.mxu0 0.0
  %496 = vmatmul.mubr.f32.gmra.mrb[0].mxu0 %v420
  %v497 = vpop.f32.mrb[0].mxu0
  %v498 = vadd.f32 %v308, %v497
  %v499 = vpop.f32.mrb[0].mxu0
  %v500 = vadd.f32 %v310, %v499
  %501 = vmatprep.mubr.f32.mxu0 0.0
  %502 = vmatmul.mubr.f32.gmra.mrb[0].mxu0 %v423
  %v503 = vpop.f32.mrb[0].mxu0
  %v504 = vadd.f32 %v314, %v503
  %v505 = vpop.f32.mrb[0].mxu0
  %v506 = vadd.f32 %v316, %v505
  %507 = vmatprep.mubr.f32.mxu0 0.0
  %508 = vmatmul.mubr.f32.gmra.mrb[0].mxu0 %v426
  %v509 = vpop.f32.mrb[0].mxu0
  %v510 = vadd.f32 %v320, %v509
  %v511 = vpop.f32.mrb[0].mxu0
  %v512 = vadd.f32 %v322, %v511
  %513 = vmatprep.mubr.f32.mxu0 0.0
  %514 = vmatmul.mubr.f32.gmra.mrb[0].mxu0 %v429
  %v515 = vpop.f32.mrb[0].mxu0
  %v516 = vadd.f32 %v326, %v515
  %v517 = vpop.f32.mrb[0].mxu0
  %v518 = vadd.f32 %v328, %v517
  %519 = vdwg.mxu0
  %520 = vmatprep.subr.mxu0 %v99
  %521 = vmatpush1.msra.mxu0 %v98
  %522 = vmatprep.subr.mxu0 0.0
  %523 = vmatpush1.msra.mxu0 0.0
  %524 = vmatprep.subr.mxu0 0.0
  %525 = vmatpush1.msra.mxu0 0.0
  %526 = vmatprep.subr.mxu0 0.0
  %527 = vmatpush1.msra.mxu0 0.0
  %528 = vmatprep.subr.mxu0 0.0
  %529 = vmatpush1.msra.mxu0 0.0
  %530 = vmatprep.subr.mxu0 0.0
  %531 = vmatpush1.msra.mxu0 0.0
  %532 = vmatprep.subr.mxu0 0.0
  %533 = vmatpush1.msra.mxu0 0.0
  %534 = vmatprep.subr.mxu0 0.0
  %535 = vmatpush1.msra.mxu0 0.0
  %536 = vmatprep.subr.mxu0 0.0
  %537 = vmatpush1.msra.mxu0 0.0
  %538 = vmatprep.subr.mxu0 0.0
  %539 = vmatpush1.msra.mxu0 0.0
  %540 = vmatprep.subr.mxu0 0.0
  %541 = vmatpush1.msra.mxu0 0.0
  %542 = vmatprep.subr.mxu0 0.0
  %543 = vmatpush1.msra.mxu0 0.0
  %544 = vmatprep.subr.mxu0 0.0
  %545 = vmatpush1.msra.mxu0 0.0
  %546 = vmatprep.subr.mxu0 0.0
  %547 = vmatpush1.msra.mxu0 0.0
  %548 = vmatprep.subr.mxu0 0.0
  %549 = vmatpush1.msra.mxu0 0.0
  %550 = vmatprep.subr.mxu0 0.0
  %551 = vmatpush1.msra.mxu0 0.0
  %552 = vmatprep.subr.mxu0 0.0
  %553 = vmatpush1.msra.mxu0 0.0
  %554 = vmatprep.subr.mxu0 0.0
  %555 = vmatpush1.msra.mxu0 0.0
  %556 = vmatprep.subr.mxu0 0.0
  %557 = vmatpush1.msra.mxu0 0.0
  %558 = vmatprep.subr.mxu0 0.0
  %559 = vmatpush1.msra.mxu0 0.0
  %560 = vmatprep.subr.mxu0 0.0
  %561 = vmatpush1.msra.mxu0 0.0
  %562 = vmatprep.subr.mxu0 0.0
  %563 = vmatpush1.msra.mxu0 0.0
  %564 = vmatprep.subr.mxu0 0.0
  %565 = vmatpush1.msra.mxu0 0.0
  %566 = vmatprep.subr.mxu0 0.0
  %567 = vmatpush1.msra.mxu0 0.0
  %568 = vmatprep.subr.mxu0 0.0
  %569 = vmatpush1.msra.mxu0 0.0
  %570 = vmatprep.subr.mxu0 0.0
  %571 = vmatpush1.msra.mxu0 0.0
  %572 = vmatprep.subr.mxu0 0.0
  %573 = vmatpush1.msra.mxu0 0.0
  %574 = vmatprep.subr.mxu0 0.0
  %575 = vmatpush1.msra.mxu0 0.0
  %576 = vmatprep.subr.mxu0 0.0
  %577 = vmatpush1.msra.mxu0 0.0
  %578 = vmatprep.subr.mxu0 0.0
  %579 = vmatpush1.msra.mxu0 0.0
  %580 = vmatprep.subr.mxu0 0.0
  %581 = vmatpush1.msra.mxu0 0.0
  %582 = vmatprep.subr.mxu0 0.0
  %583 = vmatpush1.msra.mxu0 0.0
  %584 = vmatprep.mubr.f32.mxu0 0.0
  %585 = vmatmul.mubr.f32.gmra.mrb[0].mxu0 %v420
  %v586 = vpop.f32.mrb[0].mxu0
  %v587 = vadd.f32 %v397, %v586
  %v588 = vpop.f32.mrb[0].mxu0
  %v589 = vadd.f32 %v399, %v588
  %590 = vmatprep.mubr.f32.mxu0 0.0
  %591 = vmatmul.mubr.f32.gmra.mrb[0].mxu0 %v423
  %v592 = vpop.f32.mrb[0].mxu0
  %v593 = vadd.f32 %v403, %v592
  %v594 = vpop.f32.mrb[0].mxu0
  %v595 = vadd.f32 %v405, %v594
  %596 = vmatprep.mubr.f32.mxu0 0.0
  %597 = vmatmul.mubr.f32.gmra.mrb[0].mxu0 %v426
  %v598 = vpop.f32.mrb[0].mxu0
  %v599 = vadd.f32 %v409, %v598
  %v600 = vpop.f32.mrb[0].mxu0
  %v601 = vadd.f32 %v411, %v600
  %602 = vmatprep.mubr.f32.mxu0 0.0
  %603 = vmatmul.mubr.f32.gmra.mrb[0].mxu0 %v429
  %v604 = vpop.f32.mrb[0].mxu0
  %v605 = vadd.f32 %v415, %v604
  %v606 = vpop.f32.mrb[0].mxu0
  %v607 = vadd.f32 %v417, %v606
  %608 = vdwg.mxu0
  %s609 = scalar_lea.vmem %s5, 64
  %v610 = vld [vmem:[%s609] sm:$0xff]
  %v611 = vld [vmem:[%s609 + $0x8] sm:$0xff]
  %v612 = vld [vmem:[%s609 + $0x10] sm:$0xff]
  %v613 = vld [vmem:[%s609 + $0x18] sm:$0xff]
  %v615 = vsel %vm228, %v610, 0
  %v618 = vsel %vm228, %v611, 0
  %v621 = vsel %vm228, %v612, 0
  %v624 = vsel %vm228, %v613, 0
  %626 = vmatprep.subr.mxu0 %v139
  %627 = vmatpush1.msra.mxu0 %v138
  %628 = vmatprep.subr.mxu0 0.0
  %629 = vmatpush1.msra.mxu0 0.0
  %630 = vmatprep.subr.mxu0 0.0
  %631 = vmatpush1.msra.mxu0 0.0
  %632 = vmatprep.subr.mxu0 0.0
  %633 = vmatpush1.msra.mxu0 0.0
  %634 = vmatprep.subr.mxu0 0.0
  %635 = vmatpush1.msra.mxu0 0.0
  %636 = vmatprep.subr.mxu0 0.0
  %637 = vmatpush1.msra.mxu0 0.0
  %638 = vmatprep.subr.mxu0 0.0
  %639 = vmatpush1.msra.mxu0 0.0
  %640 = vmatprep.subr.mxu0 0.0
  %641 = vmatpush1.msra.mxu0 0.0
  %642 = vmatprep.subr.mxu0 0.0
  %643 = vmatpush1.msra.mxu0 0.0
  %644 = vmatprep.subr.mxu0 0.0
  %645 = vmatpush1.msra.mxu0 0.0
  %646 = vmatprep.subr.mxu0 0.0
  %647 = vmatpush1.msra.mxu0 0.0
  %648 = vmatprep.subr.mxu0 0.0
  %649 = vmatpush1.msra.mxu0 0.0
  %650 = vmatprep.subr.mxu0 0.0
  %651 = vmatpush1.msra.mxu0 0.0
  %652 = vmatprep.subr.mxu0 0.0
  %653 = vmatpush1.msra.mxu0 0.0
  %654 = vmatprep.subr.mxu0 0.0
  %655 = vmatpush1.msra.mxu0 0.0
  %656 = vmatprep.subr.mxu0 0.0
  %657 = vmatpush1.msra.mxu0 0.0
  %658 = vmatprep.subr.mxu0 0.0
  %659 = vmatpush1.msra.mxu0 0.0
  %660 = vmatprep.subr.mxu0 0.0
  %661 = vmatpush1.msra.mxu0 0.0
  %662 = vmatprep.subr.mxu0 0.0
  %663 = vmatpush1.msra.mxu0 0.0
  %664 = vmatprep.subr.mxu0 0.0
  %665 = vmatpush1.msra.mxu0 0.0
  %666 = vmatprep.subr.mxu0 0.0
  %667 = vmatpush1.msra.mxu0 0.0
  %668 = vmatprep.subr.mxu0 0.0
  %669 = vmatpush1.msra.mxu0 0.0
  %670 = vmatprep.subr.mxu0 0.0
  %671 = vmatpush1.msra.mxu0 0.0
  %672 = vmatprep.subr.mxu0 0.0
  %673 = vmatpush1.msra.mxu0 0.0
  %674 = vmatprep.subr.mxu0 0.0
  %675 = vmatpush1.msra.mxu0 0.0
  %676 = vmatprep.subr.mxu0 0.0
  %677 = vmatpush1.msra.mxu0 0.0
  %678 = vmatprep.subr.mxu0 0.0
  %679 = vmatpush1.msra.mxu0 0.0
  %680 = vmatprep.subr.mxu0 0.0
  %681 = vmatpush1.msra.mxu0 0.0
  %682 = vmatprep.subr.mxu0 0.0
  %683 = vmatpush1.msra.mxu0 0.0
  %684 = vmatprep.subr.mxu0 0.0
  %685 = vmatpush1.msra.mxu0 0.0
  %686 = vmatprep.subr.mxu0 0.0
  %687 = vmatpush1.msra.mxu0 0.0
  %688 = vmatprep.subr.mxu0 0.0
  %689 = vmatpush1.msra.mxu0 0.0
  %690 = vmatprep.mubr.f32.mxu0 0.0
  %691 = vmatmul.mubr.f32.gmra.mrb[0].mxu0 %v615
  %v692 = vpop.f32.mrb[0].mxu0
  %v693 = vadd.f32 0.0, %v692
  %v694 = vpop.f32.mrb[0].mxu0
  %v695 = vadd.f32 0.0, %v694
  %696 = vmatprep.mubr.f32.mxu0 0.0
  %697 = vmatmul.mubr.f32.gmra.mrb[0].mxu0 %v618
  %v698 = vpop.f32.mrb[0].mxu0
  %v699 = vadd.f32 0.0, %v698
  %v700 = vpop.f32.mrb[0].mxu0
  %v701 = vadd.f32 0.0, %v700
  %702 = vmatprep.mubr.f32.mxu0 0.0
  %703 = vmatmul.mubr.f32.gmra.mrb[0].mxu0 %v621
  %v704 = vpop.f32.mrb[0].mxu0
  %v705 = vadd.f32 0.0, %v704
  %v706 = vpop.f32.mrb[0].mxu0
  %v707 = vadd.f32 0.0, %v706
  %708 = vmatprep.mubr.f32.mxu0 0.0
  %709 = vmatmul.mubr.f32.gmra.mrb[0].mxu0 %v624
  %v710 = vpop.f32.mrb[0].mxu0
  %v711 = vadd.f32 0.0, %v710
  %v712 = vpop.f32.mrb[0].mxu0
  %v713 = vadd.f32 0.0, %v712
  %714 = vdwg.mxu0
  %715 = vmatprep.subr.mxu0 %v141
  %716 = vmatpush1.msra.mxu0 %v140
  %717 = vmatprep.subr.mxu0 0.0
  %718 = vmatpush1.msra.mxu0 0.0
  %719 = vmatprep.subr.mxu0 0.0
  %720 = vmatpush1.msra.mxu0 0.0
  %721 = vmatprep.subr.mxu0 0.0
  %722 = vmatpush1.msra.mxu0 0.0
  %723 = vmatprep.subr.mxu0 0.0
  %724 = vmatpush1.msra.mxu0 0.0
  %725 = vmatprep.subr.mxu0 0.0
  %726 = vmatpush1.msra.mxu0 0.0
  %727 = vmatprep.subr.mxu0 0.0
  %728 = vmatpush1.msra.mxu0 0.0
  %729 = vmatprep.subr.mxu0 0.0
  %730 = vmatpush1.msra.mxu0 0.0
  %731 = vmatprep.subr.mxu0 0.0
  %732 = vmatpush1.msra.mxu0 0.0
  %733 = vmatprep.subr.mxu0 0.0
  %734 = vmatpush1.msra.mxu0 0.0
  %735 = vmatprep.subr.mxu0 0.0
  %736 = vmatpush1.msra.mxu0 0.0
  %737 = vmatprep.subr.mxu0 0.0
  %738 = vmatpush1.msra.mxu0 0.0
  %739 = vmatprep.subr.mxu0 0.0
  %740 = vmatpush1.msra.mxu0 0.0
  %741 = vmatprep.subr.mxu0 0.0
  %742 = vmatpush1.msra.mxu0 0.0
  %743 = vmatprep.subr.mxu0 0.0
  %744 = vmatpush1.msra.mxu0 0.0
  %745 = vmatprep.subr.mxu0 0.0
  %746 = vmatpush1.msra.mxu0 0.0
  %747 = vmatprep.subr.mxu0 0.0
  %748 = vmatpush1.msra.mxu0 0.0
  %749 = vmatprep.subr.mxu0 0.0
  %750 = vmatpush1.msra.mxu0 0.0
  %751 = vmatprep.subr.mxu0 0.0
  %752 = vmatpush1.msra.mxu0 0.0
  %753 = vmatprep.subr.mxu0 0.0
  %754 = vmatpush1.msra.mxu0 0.0
  %755 = vmatprep.subr.mxu0 0.0
  %756 = vmatpush1.msra.mxu0 0.0
  %757 = vmatprep.subr.mxu0 0.0
  %758 = vmatpush1.msra.mxu0 0.0
  %759 = vmatprep.subr.mxu0 0.0
  %760 = vmatpush1.msra.mxu0 0.0
  %761 = vmatprep.subr.mxu0 0.0
  %762 = vmatpush1.msra.mxu0 0.0
  %763 = vmatprep.subr.mxu0 0.0
  %764 = vmatpush1.msra.mxu0 0.0
  %765 = vmatprep.subr.mxu0 0.0
  %766 = vmatpush1.msra.mxu0 0.0
  %767 = vmatprep.subr.mxu0 0.0
  %768 = vmatpush1.msra.mxu0 0.0
  %769 = vmatprep.subr.mxu0 0.0
  %770 = vmatpush1.msra.mxu0 0.0
  %771 = vmatprep.subr.mxu0 0.0
  %772 = vmatpush1.msra.mxu0 0.0
  %773 = vmatprep.subr.mxu0 0.0
  %774 = vmatpush1.msra.mxu0 0.0
  %775 = vmatprep.subr.mxu0 0.0
  %776 = vmatpush1.msra.mxu0 0.0
  %777 = vmatprep.subr.mxu0 0.0
  %778 = vmatpush1.msra.mxu0 0.0
  %779 = vmatprep.mubr.f32.mxu0 0.0
  %780 = vmatmul.mubr.f32.gmra.mrb[0].mxu0 %v615
  %v781 = vpop.f32.mrb[0].mxu0
  %v782 = vadd.f32 0.0, %v781
  %v783 = vpop.f32.mrb[0].mxu0
  %v784 = vadd.f32 0.0, %v783
  %785 = vmatprep.mubr.f32.mxu0 0.0
  %786 = vmatmul.mubr.f32.gmra.mrb[0].mxu0 %v618
  %v787 = vpop.f32.mrb[0].mxu0
  %v788 = vadd.f32 0.0, %v787
  %v789 = vpop.f32.mrb[0].mxu0
  %v790 = vadd.f32 0.0, %v789
  %791 = vmatprep.mubr.f32.mxu0 0.0
  %792 = vmatmul.mubr.f32.gmra.mrb[0].mxu0 %v621
  %v793 = vpop.f32.mrb[0].mxu0
  %v794 = vadd.f32 0.0, %v793
  %v795 = vpop.f32.mrb[0].mxu0
  %v796 = vadd.f32 0.0, %v795
  %797 = vmatprep.mubr.f32.mxu0 0.0
  %798 = vmatmul.mubr.f32.gmra.mrb[0].mxu0 %v624
  %v799 = vpop.f32.mrb[0].mxu0
  %v800 = vadd.f32 0.0, %v799
  %v801 = vpop.f32.mrb[0].mxu0
  %v802 = vadd.f32 0.0, %v801
  %803 = vdwg.mxu0
  %v804 = vadd.f32 %v498, %v693
  %v805 = vadd.f32 %v500, %v695
  %v806 = vadd.f32 %v587, %v782
  %v807 = vadd.f32 %v589, %v784
  %v808 = vadd.f32 %v504, %v699
  %v809 = vadd.f32 %v506, %v701
  %v810 = vadd.f32 %v593, %v788
  %v811 = vadd.f32 %v595, %v790
  %v812 = vadd.f32 %v510, %v705
  %v813 = vadd.f32 %v512, %v707
  %v814 = vadd.f32 %v599, %v794
  %v815 = vadd.f32 %v601, %v796
  %v816 = vadd.f32 %v516, %v711
  %v817 = vadd.f32 %v518, %v713
  %v818 = vadd.f32 %v605, %v800
  %v819 = vadd.f32 %v607, %v802
  %s820 = scalar_lea.vmem %s5, 96
  %v821 = vld [vmem:[%s820] sm:$0xff]
  %v822 = vld [vmem:[%s820 + $0x8] sm:$0xff]
  %v823 = vld [vmem:[%s820 + $0x10] sm:$0xff]
  %v824 = vld [vmem:[%s820 + $0x18] sm:$0xff]
  %v826 = vsel %vm228, %v821, 0
  %v829 = vsel %vm228, %v822, 0
  %v832 = vsel %vm228, %v823, 0
  %v835 = vsel %vm228, %v824, 0
  %837 = vmatprep.subr.mxu0 %v216
  %838 = vmatpush1.msra.mxu0 %v215
  %839 = vmatprep.subr.mxu0 0.0
  %840 = vmatpush1.msra.mxu0 0.0
  %841 = vmatprep.subr.mxu0 0.0
  %842 = vmatpush1.msra.mxu0 0.0
  %843 = vmatprep.subr.mxu0 0.0
  %844 = vmatpush1.msra.mxu0 0.0
  %845 = vmatprep.subr.mxu0 0.0
  %846 = vmatpush1.msra.mxu0 0.0
  %847 = vmatprep.subr.mxu0 0.0
  %848 = vmatpush1.msra.mxu0 0.0
  %849 = vmatprep.subr.mxu0 0.0
  %850 = vmatpush1.msra.mxu0 0.0
  %851 = vmatprep.subr.mxu0 0.0
  %852 = vmatpush1.msra.mxu0 0.0
  %853 = vmatprep.subr.mxu0 0.0
  %854 = vmatpush1.msra.mxu0 0.0
  %855 = vmatprep.subr.mxu0 0.0
  %856 = vmatpush1.msra.mxu0 0.0
  %857 = vmatprep.subr.mxu0 0.0
  %858 = vmatpush1.msra.mxu0 0.0
  %859 = vmatprep.subr.mxu0 0.0
  %860 = vmatpush1.msra.mxu0 0.0
  %861 = vmatprep.subr.mxu0 0.0
  %862 = vmatpush1.msra.mxu0 0.0
  %863 = vmatprep.subr.mxu0 0.0
  %864 = vmatpush1.msra.mxu0 0.0
  %865 = vmatprep.subr.mxu0 0.0
  %866 = vmatpush1.msra.mxu0 0.0
  %867 = vmatprep.subr.mxu0 0.0
  %868 = vmatpush1.msra.mxu0 0.0
  %869 = vmatprep.subr.mxu0 0.0
  %870 = vmatpush1.msra.mxu0 0.0
  %871 = vmatprep.subr.mxu0 0.0
  %872 = vmatpush1.msra.mxu0 0.0
  %873 = vmatprep.subr.mxu0 0.0
  %874 = vmatpush1.msra.mxu0 0.0
  %875 = vmatprep.subr.mxu0 0.0
  %876 = vmatpush1.msra.mxu0 0.0
  %877 = vmatprep.subr.mxu0 0.0
  %878 = vmatpush1.msra.mxu0 0.0
  %879 = vmatprep.subr.mxu0 0.0
  %880 = vmatpush1.msra.mxu0 0.0
  %881 = vmatprep.subr.mxu0 0.0
  %882 = vmatpush1.msra.mxu0 0.0
  %883 = vmatprep.subr.mxu0 0.0
  %884 = vmatpush1.msra.mxu0 0.0
  %885 = vmatprep.subr.mxu0 0.0
  %886 = vmatpush1.msra.mxu0 0.0
  %887 = vmatprep.subr.mxu0 0.0
  %888 = vmatpush1.msra.mxu0 0.0
  %889 = vmatprep.subr.mxu0 0.0
  %890 = vmatpush1.msra.mxu0 0.0
  %891 = vmatprep.subr.mxu0 0.0
  %892 = vmatpush1.msra.mxu0 0.0
  %893 = vmatprep.subr.mxu0 0.0
  %894 = vmatpush1.msra.mxu0 0.0
  %895 = vmatprep.subr.mxu0 0.0
  %896 = vmatpush1.msra.mxu0 0.0
  %897 = vmatprep.subr.mxu0 0.0
  %898 = vmatpush1.msra.mxu0 0.0
  %899 = vmatprep.subr.mxu0 0.0
  %900 = vmatpush1.msra.mxu0 0.0
  %901 = vmatprep.mubr.f32.mxu0 0.0
  %902 = vmatmul.mubr.f32.gmra.mrb[0].mxu0 %v826
  %v903 = vpop.f32.mrb[0].mxu0
  %v904 = vadd.f32 0.0, %v903
  %v905 = vpop.f32.mrb[0].mxu0
  %v906 = vadd.f32 0.0, %v905
  %907 = vmatprep.mubr.f32.mxu0 0.0
  %908 = vmatmul.mubr.f32.gmra.mrb[0].mxu0 %v829
  %v909 = vpop.f32.mrb[0].mxu0
  %v910 = vadd.f32 0.0, %v909
  %v911 = vpop.f32.mrb[0].mxu0
  %v912 = vadd.f32 0.0, %v911
  %913 = vmatprep.mubr.f32.mxu0 0.0
  %914 = vmatmul.mubr.f32.gmra.mrb[0].mxu0 %v832
  %v915 = vpop.f32.mrb[0].mxu0
  %v916 = vadd.f32 0.0, %v915
  %v917 = vpop.f32.mrb[0].mxu0
  %v918 = vadd.f32 0.0, %v917
  %919 = vmatprep.mubr.f32.mxu0 0.0
  %920 = vmatmul.mubr.f32.gmra.mrb[0].mxu0 %v835
  %v921 = vpop.f32.mrb[0].mxu0
  %v922 = vadd.f32 0.0, %v921
  %v923 = vpop.f32.mrb[0].mxu0
  %v924 = vadd.f32 0.0, %v923
  %925 = vdwg.mxu0
  %926 = vmatprep.subr.mxu0 %v218
  %927 = vmatpush1.msra.mxu0 %v217
  %928 = vmatprep.subr.mxu0 0.0
  %929 = vmatpush1.msra.mxu0 0.0
  %930 = vmatprep.subr.mxu0 0.0
  %931 = vmatpush1.msra.mxu0 0.0
  %932 = vmatprep.subr.mxu0 0.0
  %933 = vmatpush1.msra.mxu0 0.0
  %934 = vmatprep.subr.mxu0 0.0
  %935 = vmatpush1.msra.mxu0 0.0
  %936 = vmatprep.subr.mxu0 0.0
  %937 = vmatpush1.msra.mxu0 0.0
  %938 = vmatprep.subr.mxu0 0.0
  %939 = vmatpush1.msra.mxu0 0.0
  %940 = vmatprep.subr.mxu0 0.0
  %941 = vmatpush1.msra.mxu0 0.0
  %942 = vmatprep.subr.mxu0 0.0
  %943 = vmatpush1.msra.mxu0 0.0
  %944 = vmatprep.subr.mxu0 0.0
  %945 = vmatpush1.msra.mxu0 0.0
  %946 = vmatprep.subr.mxu0 0.0
  %947 = vmatpush1.msra.mxu0 0.0
  %948 = vmatprep.subr.mxu0 0.0
  %949 = vmatpush1.msra.mxu0 0.0
  %950 = vmatprep.subr.mxu0 0.0
  %951 = vmatpush1.msra.mxu0 0.0
  %952 = vmatprep.subr.mxu0 0.0
  %953 = vmatpush1.msra.mxu0 0.0
  %954 = vmatprep.subr.mxu0 0.0
  %955 = vmatpush1.msra.mxu0 0.0
  %956 = vmatprep.subr.mxu0 0.0
  %957 = vmatpush1.msra.mxu0 0.0
  %958 = vmatprep.subr.mxu0 0.0
  %959 = vmatpush1.msra.mxu0 0.0
  %960 = vmatprep.subr.mxu0 0.0
  %961 = vmatpush1.msra.mxu0 0.0
  %962 = vmatprep.subr.mxu0 0.0
  %963 = vmatpush1.msra.mxu0 0.0
  %964 = vmatprep.subr.mxu0 0.0
  %965 = vmatpush1.msra.mxu0 0.0
  %966 = vmatprep.subr.mxu0 0.0
  %967 = vmatpush1.msra.mxu0 0.0
  %968 = vmatprep.subr.mxu0 0.0
  %969 = vmatpush1.msra.mxu0 0.0
  %970 = vmatprep.subr.mxu0 0.0
  %971 = vmatpush1.msra.mxu0 0.0
  %972 = vmatprep.subr.mxu0 0.0
  %973 = vmatpush1.msra.mxu0 0.0
  %974 = vmatprep.subr.mxu0 0.0
  %975 = vmatpush1.msra.mxu0 0.0
  %976 = vmatprep.subr.mxu0 0.0
  %977 = vmatpush1.msra.mxu0 0.0
  %978 = vmatprep.subr.mxu0 0.0
  %979 = vmatpush1.msra.mxu0 0.0
  %980 = vmatprep.subr.mxu0 0.0
  %981 = vmatpush1.msra.mxu0 0.0
  %982 = vmatprep.subr.mxu0 0.0
  %983 = vmatpush1.msra.mxu0 0.0
  %984 = vmatprep.subr.mxu0 0.0
  %985 = vmatpush1.msra.mxu0 0.0
  %986 = vmatprep.subr.mxu0 0.0
  %987 = vmatpush1.msra.mxu0 0.0
  %988 = vmatprep.subr.mxu0 0.0
  %989 = vmatpush1.msra.mxu0 0.0
  %990 = vmatprep.mubr.f32.mxu0 0.0
  %991 = vmatmul.mubr.f32.gmra.mrb[0].mxu0 %v826
  %v992 = vpop.f32.mrb[0].mxu0
  %v993 = vadd.f32 0.0, %v992
  %v994 = vpop.f32.mrb[0].mxu0
  %v995 = vadd.f32 0.0, %v994
  %996 = vmatprep.mubr.f32.mxu0 0.0
  %997 = vmatmul.mubr.f32.gmra.mrb[0].mxu0 %v829
  %v998 = vpop.f32.mrb[0].mxu0
  %v999 = vadd.f32 0.0, %v998
  %v1000 = vpop.f32.mrb[0].mxu0
  %v1001 = vadd.f32 0.0, %v1000
  %1002 = vmatprep.mubr.f32.mxu0 0.0
  %1003 = vmatmul.mubr.f32.gmra.mrb[0].mxu0 %v832
  %v1004 = vpop.f32.mrb[0].mxu0
  %v1005 = vadd.f32 0.0, %v1004
  %v1006 = vpop.f32.mrb[0].mxu0
  %v1007 = vadd.f32 0.0, %v1006
  %1008 = vmatprep.mubr.f32.mxu0 0.0
  %1009 = vmatmul.mubr.f32.gmra.mrb[0].mxu0 %v835
  %v1010 = vpop.f32.mrb[0].mxu0
  %v1011 = vadd.f32 0.0, %v1010
  %v1012 = vpop.f32.mrb[0].mxu0
  %v1013 = vadd.f32 0.0, %v1012
  %1014 = vdwg.mxu0
  %v1015 = vadd.f32 %v804, %v904
  %v1016 = vadd.f32 %v805, %v906
  %v1017 = vadd.f32 %v806, %v993
  %v1018 = vadd.f32 %v807, %v995
  %v1019 = vadd.f32 %v808, %v910
  %v1020 = vadd.f32 %v809, %v912
  %v1021 = vadd.f32 %v810, %v999
  %v1022 = vadd.f32 %v811, %v1001
  %v1023 = vadd.f32 %v812, %v916
  %v1024 = vadd.f32 %v813, %v918
  %v1025 = vadd.f32 %v814, %v1005
  %v1026 = vadd.f32 %v815, %v1007
  %v1027 = vadd.f32 %v816, %v922
  %v1028 = vadd.f32 %v817, %v924
  %v1029 = vadd.f32 %v818, %v1011
  %v1030 = vadd.f32 %v819, %v1013
  %v1031 = vld [vmem:[%s6] sm:$0xff]
  %v1032 = vld [vmem:[%s6 + $0x8] sm:$0xff]
  %v1033 = vld [vmem:[%s6 + $0x10] sm:$0xff]
  %v1034 = vld [vmem:[%s6 + $0x18] sm:$0xff]
  %1036 = vset.pattern.permute.xlu0 0
  %1037 = vperm.xlu0 %1036, %v1031
  %v1038 = vpop.permute.xlu0 %1037
  %1041 = vset.pattern.permute.xlu0 0
  %1042 = vperm.xlu0 %1041, %v1032
  %v1043 = vpop.permute.xlu0 %1042
  %1046 = vset.pattern.permute.xlu0 0
  %1047 = vperm.xlu0 %1046, %v1033
  %v1048 = vpop.permute.xlu0 %1047
  %1051 = vset.pattern.permute.xlu0 0
  %1052 = vperm.xlu0 %1051, %v1034
  %v1053 = vpop.permute.xlu0 %1052
  %v1055 = vmul.f32 %v1015, %v1038
  %v1056 = vmul.f32 %v1016, %v1038
  %v1057 = vmul.f32 %v1017, %v1038
  %v1058 = vmul.f32 %v1018, %v1038
  %v1059 = vmul.f32 %v1019, %v1043
  %v1060 = vmul.f32 %v1020, %v1043
  %v1061 = vmul.f32 %v1021, %v1043
  %v1062 = vmul.f32 %v1022, %v1043
  %v1063 = vmul.f32 %v1023, %v1048
  %v1064 = vmul.f32 %v1024, %v1048
  %v1065 = vmul.f32 %v1025, %v1048
  %v1066 = vmul.f32 %v1026, %v1048
  %v1067 = vmul.f32 %v1027, %v1053
  %v1068 = vmul.f32 %v1028, %v1053
  %v1069 = vmul.f32 %v1029, %v1053
  %v1070 = vmul.f32 %v1030, %v1053
  %v1071 = vld [vmem:[%s7] sm:$0xff]
  %v1072 = vld [vmem:[%s7 + $0x8] sm:$0xff]
  %v1073 = vld [vmem:[%s7 + $0x10] sm:$0xff]
  %v1074 = vld [vmem:[%s7 + $0x18] sm:$0xff]
  %1076 = vset.pattern.permute.xlu0 0
  %1077 = vperm.xlu0 %1076, %v1071
  %v1078 = vpop.permute.xlu0 %1077
  %1081 = vset.pattern.permute.xlu0 0
  %1082 = vperm.xlu0 %1081, %v1072
  %v1083 = vpop.permute.xlu0 %1082
  %1086 = vset.pattern.permute.xlu0 0
  %1087 = vperm.xlu0 %1086, %v1073
  %v1088 = vpop.permute.xlu0 %1087
  %1091 = vset.pattern.permute.xlu0 0
  %1092 = vperm.xlu0 %1091, %v1074
  %v1093 = vpop.permute.xlu0 %1092
  %v1095 = vadd.f32 %v1055, %v1078
  %v1096 = vadd.f32 %v1056, %v1078
  %v1097 = vadd.f32 %v1057, %v1078
  %v1098 = vadd.f32 %v1058, %v1078
  %v1099 = vadd.f32 %v1059, %v1083
  %v1100 = vadd.f32 %v1060, %v1083
  %v1101 = vadd.f32 %v1061, %v1083
  %v1102 = vadd.f32 %v1062, %v1083
  %v1103 = vadd.f32 %v1063, %v1088
  %v1104 = vadd.f32 %v1064, %v1088
  %v1105 = vadd.f32 %v1065, %v1088
  %v1106 = vadd.f32 %v1066, %v1088
  %v1107 = vadd.f32 %v1067, %v1093
  %v1108 = vadd.f32 %v1068, %v1093
  %v1109 = vadd.f32 %v1069, %v1093
  %v1110 = vadd.f32 %v1070, %v1093
  %v1111 = vmax.f32 %v1095, 0.0
  %v1112 = vmax.f32 %v1096, 0.0
  %v1113 = vmax.f32 %v1097, 0.0
  %v1114 = vmax.f32 %v1098, 0.0
  %v1115 = vmax.f32 %v1099, 0.0
  %v1116 = vmax.f32 %v1100, 0.0
  %v1117 = vmax.f32 %v1101, 0.0
  %v1118 = vmax.f32 %v1102, 0.0
  %v1119 = vmax.f32 %v1103, 0.0
  %v1120 = vmax.f32 %v1104, 0.0
  %v1121 = vmax.f32 %v1105, 0.0
  %v1122 = vmax.f32 %v1106, 0.0
  %v1123 = vmax.f32 %v1107, 0.0
  %v1124 = vmax.f32 %v1108, 0.0
  %v1125 = vmax.f32 %v1109, 0.0
  %v1126 = vmax.f32 %v1110, 0.0
  %v1127 = vld [vmem:[%s8] sm:$0xff]
  %v1128 = vld [vmem:[%s8 + $0x8] sm:$0xff]
  %v1129 = vld [vmem:[%s8 + $0x10] sm:$0xff]
  %v1130 = vld [vmem:[%s8 + $0x18] sm:$0xff]
  %vm1131 = vcmask 261120
  %v1133 = vsel %vm1131, %v1127, 0
  %v1136 = vsel %vm1131, %v1128, 0
  %v1139 = vsel %vm1131, %v1129, 0
  %v1142 = vsel %vm1131, %v1130, 0
  %1144 = vmatprep.subr.mxu0 %v1112
  %1145 = vmatpush1.msra.mxu0 %v1111
  %1146 = vmatprep.subr.mxu0 %v1116
  %1147 = vmatpush1.msra.mxu0 %v1115
  %1148 = vmatprep.subr.mxu0 %v1120
  %1149 = vmatpush1.msra.mxu0 %v1119
  %1150 = vmatprep.subr.mxu0 %v1124
  %1151 = vmatpush1.msra.mxu0 %v1123
  %1152 = vmatprep.subr.mxu0 0.0
  %1153 = vmatpush1.msra.mxu0 0.0
  %1154 = vmatprep.subr.mxu0 0.0
  %1155 = vmatpush1.msra.mxu0 0.0
  %1156 = vmatprep.subr.mxu0 0.0
  %1157 = vmatpush1.msra.mxu0 0.0
  %1158 = vmatprep.subr.mxu0 0.0
  %1159 = vmatpush1.msra.mxu0 0.0
  %1160 = vmatprep.subr.mxu0 0.0
  %1161 = vmatpush1.msra.mxu0 0.0
  %1162 = vmatprep.subr.mxu0 0.0
  %1163 = vmatpush1.msra.mxu0 0.0
  %1164 = vmatprep.subr.mxu0 0.0
  %1165 = vmatpush1.msra.mxu0 0.0
  %1166 = vmatprep.subr.mxu0 0.0
  %1167 = vmatpush1.msra.mxu0 0.0
  %1168 = vmatprep.subr.mxu0 0.0
  %1169 = vmatpush1.msra.mxu0 0.0
  %1170 = vmatprep.subr.mxu0 0.0
  %1171 = vmatpush1.msra.mxu0 0.0
  %1172 = vmatprep.subr.mxu0 0.0
  %1173 = vmatpush1.msra.mxu0 0.0
  %1174 = vmatprep.subr.mxu0 0.0
  %1175 = vmatpush1.msra.mxu0 0.0
  %1176 = vmatprep.subr.mxu0 0.0
  %1177 = vmatpush1.msra.mxu0 0.0
  %1178 = vmatprep.subr.mxu0 0.0
  %1179 = vmatpush1.msra.mxu0 0.0
  %1180 = vmatprep.subr.mxu0 0.0
  %1181 = vmatpush1.msra.mxu0 0.0
  %1182 = vmatprep.subr.mxu0 0.0
  %1183 = vmatpush1.msra.mxu0 0.0
  %1184 = vmatprep.subr.mxu0 0.0
  %1185 = vmatpush1.msra.mxu0 0.0
  %1186 = vmatprep.subr.mxu0 0.0
  %1187 = vmatpush1.msra.mxu0 0.0
  %1188 = vmatprep.subr.mxu0 0.0
  %1189 = vmatpush1.msra.mxu0 0.0
  %1190 = vmatprep.subr.mxu0 0.0
  %1191 = vmatpush1.msra.mxu0 0.0
  %1192 = vmatprep.subr.mxu0 0.0
  %1193 = vmatpush1.msra.mxu0 0.0
  %1194 = vmatprep.subr.mxu0 0.0
  %1195 = vmatpush1.msra.mxu0 0.0
  %1196 = vmatprep.subr.mxu0 0.0
  %1197 = vmatpush1.msra.mxu0 0.0
  %1198 = vmatprep.subr.mxu0 0.0
  %1199 = vmatpush1.msra.mxu0 0.0
  %1200 = vmatprep.subr.mxu0 0.0
  %1201 = vmatpush1.msra.mxu0 0.0
  %1202 = vmatprep.subr.mxu0 0.0
  %1203 = vmatpush1.msra.mxu0 0.0
  %1204 = vmatprep.subr.mxu0 0.0
  %1205 = vmatpush1.msra.mxu0 0.0
  %1206 = vmatprep.subr.mxu0 0.0
  %1207 = vmatpush1.msra.mxu0 0.0
  %1208 = vmatprep.mubr.f32.mxu0 0.0
  %1209 = vmatmul.mubr.f32.gmra.mrb[0].mxu0 %v1133
  %v1210 = vpop.f32.mrb[0].mxu0
  %v1211 = vadd.f32 0.0, %v1210
  %v1212 = vpop.f32.mrb[0].mxu0
  %v1213 = vadd.f32 0.0, %v1212
  %1214 = vmatprep.mubr.f32.mxu0 0.0
  %1215 = vmatmul.mubr.f32.gmra.mrb[0].mxu0 %v1136
  %v1216 = vpop.f32.mrb[0].mxu0
  %v1217 = vadd.f32 0.0, %v1216
  %v1218 = vpop.f32.mrb[0].mxu0
  %v1219 = vadd.f32 0.0, %v1218
  %1220 = vmatprep.mubr.f32.mxu0 0.0
  %1221 = vmatmul.mubr.f32.gmra.mrb[0].mxu0 %v1139
  %v1222 = vpop.f32.mrb[0].mxu0
  %v1223 = vadd.f32 0.0, %v1222
  %v1224 = vpop.f32.mrb[0].mxu0
  %v1225 = vadd.f32 0.0, %v1224
  %1226 = vmatprep.mubr.f32.mxu0 0.0
  %1227 = vmatmul.mubr.f32.gmra.mrb[0].mxu0 %v1142
  %v1228 = vpop.f32.mrb[0].mxu0
  %v1229 = vadd.f32 0.0, %v1228
  %v1230 = vpop.f32.mrb[0].mxu0
  %v1231 = vadd.f32 0.0, %v1230
  %1232 = vdwg.mxu0
  %1233 = vmatprep.subr.mxu0 %v1114
  %1234 = vmatpush1.msra.mxu0 %v1113
  %1235 = vmatprep.subr.mxu0 %v1118
  %1236 = vmatpush1.msra.mxu0 %v1117
  %1237 = vmatprep.subr.mxu0 %v1122
  %1238 = vmatpush1.msra.mxu0 %v1121
  %1239 = vmatprep.subr.mxu0 %v1126
  %1240 = vmatpush1.msra.mxu0 %v1125
  %1241 = vmatprep.subr.mxu0 0.0
  %1242 = vmatpush1.msra.mxu0 0.0
  %1243 = vmatprep.subr.mxu0 0.0
  %1244 = vmatpush1.msra.mxu0 0.0
  %1245 = vmatprep.subr.mxu0 0.0
  %1246 = vmatpush1.msra.mxu0 0.0
  %1247 = vmatprep.subr.mxu0 0.0
  %1248 = vmatpush1.msra.mxu0 0.0
  %1249 = vmatprep.subr.mxu0 0.0
  %1250 = vmatpush1.msra.mxu0 0.0
  %1251 = vmatprep.subr.mxu0 0.0
  %1252 = vmatpush1.msra.mxu0 0.0
  %1253 = vmatprep.subr.mxu0 0.0
  %1254 = vmatpush1.msra.mxu0 0.0
  %1255 = vmatprep.subr.mxu0 0.0
  %1256 = vmatpush1.msra.mxu0 0.0
  %1257 = vmatprep.subr.mxu0 0.0
  %1258 = vmatpush1.msra.mxu0 0.0
  %1259 = vmatprep.subr.mxu0 0.0
  %1260 = vmatpush1.msra.mxu0 0.0
  %1261 = vmatprep.subr.mxu0 0.0
  %1262 = vmatpush1.msra.mxu0 0.0
  %1263 = vmatprep.subr.mxu0 0.0
  %1264 = vmatpush1.msra.mxu0 0.0
  %1265 = vmatprep.subr.mxu0 0.0
  %1266 = vmatpush1.msra.mxu0 0.0
  %1267 = vmatprep.subr.mxu0 0.0
  %1268 = vmatpush1.msra.mxu0 0.0
  %1269 = vmatprep.subr.mxu0 0.0
  %1270 = vmatpush1.msra.mxu0 0.0
  %1271 = vmatprep.subr.mxu0 0.0
  %1272 = vmatpush1.msra.mxu0 0.0
  %1273 = vmatprep.subr.mxu0 0.0
  %1274 = vmatpush1.msra.mxu0 0.0
  %1275 = vmatprep.subr.mxu0 0.0
  %1276 = vmatpush1.msra.mxu0 0.0
  %1277 = vmatprep.subr.mxu0 0.0
  %1278 = vmatpush1.msra.mxu0 0.0
  %1279 = vmatprep.subr.mxu0 0.0
  %1280 = vmatpush1.msra.mxu0 0.0
  %1281 = vmatprep.subr.mxu0 0.0
  %1282 = vmatpush1.msra.mxu0 0.0
  %1283 = vmatprep.subr.mxu0 0.0
  %1284 = vmatpush1.msra.mxu0 0.0
  %1285 = vmatprep.subr.mxu0 0.0
  %1286 = vmatpush1.msra.mxu0 0.0
  %1287 = vmatprep.subr.mxu0 0.0
  %1288 = vmatpush1.msra.mxu0 0.0
  %1289 = vmatprep.subr.mxu0 0.0
  %1290 = vmatpush1.msra.mxu0 0.0
  %1291 = vmatprep.subr.mxu0 0.0
  %1292 = vmatpush1.msra.mxu0 0.0
  %1293 = vmatprep.subr.mxu0 0.0
  %1294 = vmatpush1.msra.mxu0 0.0
  %1295 = vmatprep.subr.mxu0 0.0
  %1296 = vmatpush1.msra.mxu0 0.0
  %1297 = vmatprep.mubr.f32.mxu0 0.0
  %1298 = vmatmul.mubr.f32.gmra.mrb[0].mxu0 %v1133
  %v1299 = vpop.f32.mrb[0].mxu0
  %v1300 = vadd.f32 0.0, %v1299
  %v1301 = vpop.f32.mrb[0].mxu0
  %v1302 = vadd.f32 0.0, %v1301
  %1303 = vmatprep.mubr.f32.mxu0 0.0
  %1304 = vmatmul.mubr.f32.gmra.mrb[0].mxu0 %v1136
  %v1305 = vpop.f32.mrb[0].mxu0
  %v1306 = vadd.f32 0.0, %v1305
  %v1307 = vpop.f32.mrb[0].mxu0
  %v1308 = vadd.f32 0.0, %v1307
  %1309 = vmatprep.mubr.f32.mxu0 0.0
  %1310 = vmatmul.mubr.f32.gmra.mrb[0].mxu0 %v1139
  %v1311 = vpop.f32.mrb[0].mxu0
  %v1312 = vadd.f32 0.0, %v1311
  %v1313 = vpop.f32.mrb[0].mxu0
  %v1314 = vadd.f32 0.0, %v1313
  %1315 = vmatprep.mubr.f32.mxu0 0.0
  %1316 = vmatmul.mubr.f32.gmra.mrb[0].mxu0 %v1142
  %v1317 = vpop.f32.mrb[0].mxu0
  %v1318 = vadd.f32 0.0, %v1317
  %v1319 = vpop.f32.mrb[0].mxu0
  %v1320 = vadd.f32 0.0, %v1319
  %1321 = vdwg.mxu0
  %v1322 = vpack.c.bf16 %v1217, %v1211
  %v1323 = vpack.c.bf16 %v1219, %v1213
  %v1324 = vpack.c.bf16 %v1306, %v1300
  %v1325 = vpack.c.bf16 %v1308, %v1302
  %v1326 = vpack.c.bf16 %v1229, %v1223
  %v1327 = vpack.c.bf16 %v1231, %v1225
  %v1328 = vpack.c.bf16 %v1318, %v1312
  %v1329 = vpack.c.bf16 %v1320, %v1314
  %v1338 = vunpack.c.l.b16 %v1322
  %v1339 = vunpack.c.l.b16 %v1323
  %v1340 = vunpack.c.l.b16 %v1324
  %v1341 = vunpack.c.l.b16 %v1325
  %v1342 = vunpack.c.h.b16 %v1322
  %v1343 = vunpack.c.h.b16 %v1323
  %v1344 = vunpack.c.h.b16 %v1324
  %v1345 = vunpack.c.h.b16 %v1325
  %v1346 = vunpack.c.l.b16 %v1326
  %v1347 = vunpack.c.l.b16 %v1327
  %v1348 = vunpack.c.l.b16 %v1328
  %v1349 = vunpack.c.l.b16 %v1329
  %v1350 = vunpack.c.h.b16 %v1326
  %v1351 = vunpack.c.h.b16 %v1327
  %v1352 = vunpack.c.h.b16 %v1328
  %v1353 = vunpack.c.h.b16 %v1329
  %v1354 = vpack.c.b16 %v1339, %v1338
  %v1355 = vpack.c.b16 %v1341, %v1340
  %v1356 = vpack.c.b16 %v1343, %v1342
  %v1357 = vpack.c.b16 %v1345, %v1344
  %v1358 = vpack.c.b16 %v1347, %v1346
  %v1359 = vpack.c.b16 %v1349, %v1348
  %v1360 = vpack.c.b16 %v1351, %v1350
  %v1361 = vpack.c.b16 %v1353, %v1352
  %1370 = vst [vmem:[%s67] sm:$0xff] %v1354
  %1371 = vst [vmem:[%s67 + $0x8] sm:$0xff] %v1355
  %1372 = vst [vmem:[%s67 + $0x10] sm:$0xff] %v1356
  %1373 = vst [vmem:[%s67 + $0x18] sm:$0xff] %v1357
  %1374 = vst [vmem:[%s67 + $0x20] sm:$0xff] %v1358
  %1375 = vst [vmem:[%s67 + $0x28] sm:$0xff] %v1359
  %1376 = vst [vmem:[%s67 + $0x30] sm:$0xff] %v1360
  %1377 = vst [vmem:[%s67 + $0x38] sm:$0xff] %v1361
  %p1378 = scmp.eq.s32.totalorder 0, 0
  // Predicated region
  $region38: #{decoder_block_pallas.5} parent=0 // pred_check
    %p1379 = pneg %p1378
  $region39: #{decoder_block_pallas.5} parent=0 // pred_check_branch
    %1381 = sbr.rel (%p1379) target = $region41
  $region40: #{decoder_block_pallas.5} parent=0 // pred_region
    %1382 = vst [vmem:[%s10] sm:$0xff] 0.0
    %1383 = vst [vmem:[%s10 + $0x8] sm:$0xff] 0.0
    %1384 = vst [vmem:[%s10 + $0x10] sm:$0xff] 0.0
    %1385 = vst [vmem:[%s10 + $0x18] sm:$0xff] 0.0
    %1386 = vst [vmem:[%s10 + $0x20] sm:$0xff] 0.0
    %1387 = vst [vmem:[%s10 + $0x28] sm:$0xff] 0.0
    %1388 = vst [vmem:[%s10 + $0x30] sm:$0xff] 0.0
    %1389 = vst [vmem:[%s10 + $0x38] sm:$0xff] 0.0
  $region41: #{decoder_block_pallas.5} parent=0 // pred_fallthru
    _
  %v1390 = vld [vmem:[%s10] sm:$0xff]
  %v1391 = vld [vmem:[%s10 + $0x8] sm:$0xff]
  %v1392 = vld [vmem:[%s10 + $0x10] sm:$0xff]
  %v1393 = vld [vmem:[%s10 + $0x18] sm:$0xff]
  %v1394 = vadd.f32 %v1211, %v1213
  %v1395 = vadd.f32 %v1394, %v1300
  %v1396 = vadd.f32 %v1395, %v1302
  %1397 = vadd.xlane.f32.xlu0 %v1396
  %v1398 = vpop.xlane.xlu0 %1397
  %v1399 = vadd.f32 %v1217, %v1219
  %v1400 = vadd.f32 %v1399, %v1306
  %v1401 = vadd.f32 %v1400, %v1308
  %1402 = vadd.xlane.f32.xlu0 %v1401
  %v1403 = vpop.xlane.xlu0 %1402
  %v1404 = vadd.f32 %v1223, %v1225
  %v1405 = vadd.f32 %v1404, %v1312
  %v1406 = vadd.f32 %v1405, %v1314
  %1407 = vadd.xlane.f32.xlu0 %v1406
  %v1408 = vpop.xlane.xlu0 %1407
  %v1409 = vadd.f32 %v1229, %v1231
  %v1410 = vadd.f32 %v1409, %v1318
  %v1411 = vadd.f32 %v1410, %v1320
  %1412 = vadd.xlane.f32.xlu0 %v1411
  %v1413 = vpop.xlane.xlu0 %1412
  %v1414 = vadd.f32 %v1390, %v1398
  %v1415 = vadd.f32 %v1391, %v1403
  %v1416 = vadd.f32 %v1392, %v1408
  %v1417 = vadd.f32 %v1393, %v1413
  %1418 = vst [vmem:[%s10] sm:$0xff] %v1414
  %1419 = vst [vmem:[%s10 + $0x8] sm:$0xff] %v1415
  %1420 = vst [vmem:[%s10 + $0x10] sm:$0xff] %v1416
  %1421 = vst [vmem:[%s10 + $0x18] sm:$0xff] %v1417
  %s1422 = scalar_lea.vmem %s10, 32
  %v1423 = vld [vmem:[%s1422] sm:$0xff]
  %v1424 = vld [vmem:[%s1422 + $0x8] sm:$0xff]
  %v1425 = vld [vmem:[%s1422 + $0x10] sm:$0xff]
  %v1426 = vld [vmem:[%s1422 + $0x18] sm:$0xff]
  %v1427 = vmul.f32 %v1211, %v1211
  %v1428 = vmul.f32 %v1213, %v1213
  %v1429 = vmul.f32 %v1300, %v1300
  %v1430 = vmul.f32 %v1302, %v1302
  %v1431 = vmul.f32 %v1217, %v1217
  %v1432 = vmul.f32 %v1219, %v1219
  %v1433 = vmul.f32 %v1306, %v1306
  %v1434 = vmul.f32 %v1308, %v1308
  %v1435 = vmul.f32 %v1223, %v1223
  %v1436 = vmul.f32 %v1225, %v1225
  %v1437 = vmul.f32 %v1312, %v1312
  %v1438 = vmul.f32 %v1314, %v1314
  %v1439 = vmul.f32 %v1229, %v1229
  %v1440 = vmul.f32 %v1231, %v1231
  %v1441 = vmul.f32 %v1318, %v1318
  %v1442 = vmul.f32 %v1320, %v1320
  %v1443 = vadd.f32 %v1427, %v1428
  %v1444 = vadd.f32 %v1443, %v1429
  %v1445 = vadd.f32 %v1444, %v1430
  %1446 = vadd.xlane.f32.xlu0 %v1445
  %v1447 = vpop.xlane.xlu0 %1446
  %v1448 = vadd.f32 %v1431, %v1432
  %v1449 = vadd.f32 %v1448, %v1433
  %v1450 = vadd.f32 %v1449, %v1434
  %1451 = vadd.xlane.f32.xlu0 %v1450
  %v1452 = vpop.xlane.xlu0 %1451
  %v1453 = vadd.f32 %v1435, %v1436
  %v1454 = vadd.f32 %v1453, %v1437
  %v1455 = vadd.f32 %v1454, %v1438
  %1456 = vadd.xlane.f32.xlu0 %v1455
  %v1457 = vpop.xlane.xlu0 %1456
  %v1458 = vadd.f32 %v1439, %v1440
  %v1459 = vadd.f32 %v1458, %v1441
  %v1460 = vadd.f32 %v1459, %v1442
  %1461 = vadd.xlane.f32.xlu0 %v1460
  %v1462 = vpop.xlane.xlu0 %1461
  %v1463 = vadd.f32 %v1423, %v1447
  %v1464 = vadd.f32 %v1424, %v1452
  %v1465 = vadd.f32 %v1425, %v1457
  %v1466 = vadd.f32 %v1426, %v1462
  %1467 = vst [vmem:[%s1422] sm:$0xff] %v1463
  %1468 = vst [vmem:[%s1422 + $0x8] sm:$0xff] %v1464
  %1469 = vst [vmem:[%s1422 + $0x10] sm:$0xff] %v1465
  %1470 = vst [vmem:[%s1422 + $0x18] sm:$0xff] %v1466
  %s1471 = sadd.s32 0, 0
  %s1472 = smul.u32 4, %s1471
  %p1473 = scmp.lt.s32.totalorder %s1472, 3
  %s1474 = scalar_select %p1473, %s1472, 3
  %s1475 = smul.addr %s1474, 4
  %s1476 = scalar_lea.vmem %s9, %s1475
  // Predicated region
  $region42: #{decoder_block_pallas.5} parent=0 // pred_check
    _
  $region43: #{decoder_block_pallas.5} parent=0 // pred_check_branch
    %1478 = sbr.rel (0) target = $region45
  $region44: #{decoder_block_pallas.5} parent=0 // pred_region
    %s1479 = sadd.s32 0, 0
    %s1480 = smul.u32 4, %s1479
  $region45: #{decoder_block_pallas.5} parent=0 // pred_fallthru
    _
  // Predicated region
  $region46: #{decoder_block_pallas.5} parent=0 // pred_check
    _
  $region47: #{decoder_block_pallas.5} parent=0 // pred_check_branch
    %1482 = sbr.rel (0) target = $region49
  $region48: #{decoder_block_pallas.5} parent=0 // pred_region
    _
  $region49: #{decoder_block_pallas.5} parent=0 // pred_fallthru
    _
  // Predicated region
  $region50: #{decoder_block_pallas.5} parent=0 // pred_check
    _
  $region51: #{decoder_block_pallas.5} parent=0 // pred_check_branch
    %1484 = sbr.rel (0) target = $region53
  $region52: #{decoder_block_pallas.5} parent=0 // pred_region
    %s1485 = sadd.s32 0, 0
    %s1486 = smul.u32 4, %s1485
    %p1487 = scmp.lt.s32.totalorder %s1486, 3
    %s1488 = scalar_select %p1487, %s1486, 3
    %s1489 = smul.addr %s1488, 4
    %s1490 = scalar_lea.vmem %s9, %s1489
  $region53: #{decoder_block_pallas.5} parent=0 // pred_fallthru
    _
  // Predicated region
  $region54: #{decoder_block_pallas.5} parent=0 // pred_check
    _
  $region55: #{decoder_block_pallas.5} parent=0 // pred_check_branch
    %1492 = sbr.rel (0) target = $region57
  $region56: #{decoder_block_pallas.5} parent=0 // pred_region
    _
  $region57: #{decoder_block_pallas.5} parent=0 // pred_fallthru
    _

</llo_original>
